<compile_context>
chip_gen: v5e
topology: v5e:2x2
jax: 0.10.0
libtpu: 0.0.40
codegen_flags: <defaults>
</compile_context>

<pallas_src>
import functools
import math

import jax
import jax.numpy as jnp
from jax.experimental import pallas as pl
from jax.experimental.pallas import tpu as pltpu

# ---------------- model config (small, synthetic) ----------------
VOCAB = 100
HIDDEN = 128          # BERT hidden size (stand-in for 768)
NUM_HEADS = 2
HEAD_DIM = HIDDEN // NUM_HEADS
INTERMEDIATE = 256
NUM_LAYERS = 2
MAX_POS = 32
NUM_LABELS = 3
LN_EPS = 1e-12
PAD_LABELS = 128      # lane-dense padded width for the classifier output


# ---------------- in-kernel helpers ----------------
def _gelu(x):
    # GELU (tanh approximation)
    # TODO(synk): PyTorch BertIntermediate default is exact erf GELU; tanh approx differs ~1e-3.
    return 0.5 * x * (1.0 + jnp.tanh(0.7978845608028654 * (x + 0.044715 * x * x * x)))


def _layernorm(x, g, b, eps):
    mu = jnp.mean(x, axis=-1, keepdims=True)
    var = jnp.mean((x - mu) * (x - mu), axis=-1, keepdims=True)
    return (x - mu) * jax.lax.rsqrt(var + eps) * g + b


# ---------------- Pallas kernels ----------------
def emb_ln_kernel(x_ref, g_ref, b_ref, o_ref, *, eps):
    x = x_ref[...].astype(jnp.float32)
    o_ref[...] = _layernorm(x, g_ref[...], b_ref[...], eps).astype(o_ref.dtype)


def encoder_layer_kernel(x_ref, mask_ref, wqkv_ref, bqkv_ref, wo_ref, bo_ref,
                         ln1g_ref, ln1b_ref, w1_ref, b1_ref, w2_ref, b2_ref,
                         ln2g_ref, ln2b_ref, o_ref, ctx_ref,
                         *, B, S, nh, hd, scale, eps):
    H = nh * hd
    x = x_ref[...].astype(jnp.float32)                       # [M, H]
    mask = mask_ref[...]                                     # [B, S] additive

    # Fused Q/K/V projection: one [M, H] x [H, 3H] matmul.
    qkv = jnp.dot(x, wqkv_ref[...],
                  preferred_element_type=jnp.float32) + bqkv_ref[...]   # [M, 3H]

    # Per-batch / per-head attention; static Python loops (B, nh tiny & static).
    for b in range(B):
        r0 = b * S
        m_b = mask[b, :][None, :]                            # [1, S] -> bcast [S, S]
        for h in range(nh):
            c0 = h * hd
            q_bh = qkv[r0:r0 + S, c0:c0 + hd]                # [S, hd]
            k_bh = qkv[r0:r0 + S, H + c0:H + c0 + hd]        # [S, hd]
            v_bh = qkv[r0:r0 + S, 2 * H + c0:2 * H + c0 + hd]
            s = jnp.dot(q_bh, k_bh.T,
                        preferred_element_type=jnp.float32) * scale + m_b
            s = s - jnp.max(s, axis=-1, keepdims=True)
            p = jnp.exp(s)
            p = p * pl.reciprocal(jnp.sum(p, axis=-1, keepdims=True), approx=True)
            ctx_ref[r0:r0 + S, c0:c0 + hd] = jnp.dot(
                p, v_bh, preferred_element_type=jnp.float32)

    # Attention output projection + residual + LN1.
    attn = jnp.dot(ctx_ref[...], wo_ref[...],
                   preferred_element_type=jnp.float32) + bo_ref[...]
    h1 = _layernorm(x + attn, ln1g_ref[...], ln1b_ref[...], eps)

    # FFN (GELU) + residual + LN2.
    ffn = _gelu(jnp.dot(h1, w1_ref[...],
                        preferred_element_type=jnp.float32) + b1_ref[...])
    ffn = jnp.dot(ffn, w2_ref[...],
                  preferred_element_type=jnp.float32) + b2_ref[...]
    o_ref[...] = _layernorm(h1 + ffn, ln2g_ref[...], ln2b_ref[...], eps).astype(o_ref.dtype)


def classifier_kernel(x_ref, wc_ref, bc_ref, wo_ref, bo_ref, o_ref):
    # dropout(eval)=identity -> dense -> tanh -> dropout -> out_proj (lane-padded)
    x = x_ref[...].astype(jnp.float32)
    z = jnp.tanh(jnp.dot(x, wc_ref[...],
                         preferred_element_type=jnp.float32) + bc_ref[...])
    y = jnp.dot(z, wo_ref[...], preferred_element_type=jnp.float32) + bo_ref[...]
    o_ref[...] = y.astype(o_ref.dtype)


# ---------------- pallas_call plumbing ----------------
def _full_spec(shape):
    n = len(shape)
    return pl.BlockSpec(shape, lambda i, _n=n: (0,) * _n)


def _pallas_full(kernel, inputs, out_shape, scratch_shapes=()):
    """Single-grid-step call: every operand is one full VMEM-resident block."""
    return pl.pallas_call(
        kernel,
        out_shape=out_shape,
        grid=(1,),
        in_specs=[_full_spec(a.shape) for a in inputs],
        out_specs=_full_spec(out_shape.shape),
        scratch_shapes=list(scratch_shapes),
        compiler_params=pltpu.CompilerParams(dimension_semantics=("arbitrary",)),
    )(*inputs)


# ---------------- parameter init (deterministic, synthetic) ----------------
def init_params(key):
    def nrm(k, shape):
        return 0.02 * jax.random.normal(k, shape, dtype=jnp.float32)

    keys = iter(jax.random.split(key, 8 + NUM_LAYERS * 16))
    H, I = HIDDEN, INTERMEDIATE
    p = {
        "word_emb": nrm(next(keys), (VOCAB, H)),
        "pos_emb": nrm(next(keys), (MAX_POS, H)),
        "type_emb": nrm(next(keys), (2, H)),
        "emb_ln_g": jnp.ones((1, H), jnp.float32),
        "emb_ln_b": jnp.zeros((1, H), jnp.float32),
        "layers": [],
    }
    for _ in range(NUM_LAYERS):
        wq, wk, wv = nrm(next(keys), (H, H)), nrm(next(keys), (H, H)), nrm(next(keys), (H, H))
        layer = {
            # fused QKV projection weights
            "wqkv": jnp.concatenate([wq, wk, wv], axis=1),          # [H, 3H]
            "bqkv": jnp.zeros((1, 3 * H), jnp.float32),
            "wo": nrm(next(keys), (H, H)), "bo": jnp.zeros((1, H), jnp.float32),
            "ln1_g": jnp.ones((1, H), jnp.float32), "ln1_b": jnp.zeros((1, H), jnp.float32),
            "w1": nrm(next(keys), (H, I)), "b1": jnp.zeros((1, I), jnp.float32),
            "w2": nrm(next(keys), (I, H)), "b2": jnp.zeros((1, H), jnp.float32),
            "ln2_g": jnp.ones((1, H), jnp.float32), "ln2_b": jnp.zeros((1, H), jnp.float32),
        }
        p["layers"].append(layer)
    # Classifier(hidden=HIDDEN, num_labels=NUM_LABELS); out_proj zero-padded to 128 lanes.
    p["cls_w"] = nrm(next(keys), (H, H))
    p["cls_b"] = jnp.zeros((1, H), jnp.float32)
    out_w = nrm(next(keys), (H, NUM_LABELS))
    p["out_w_pad"] = jnp.zeros((H, PAD_LABELS), jnp.float32).at[:, :NUM_LABELS].set(out_w)
    p["out_b_pad"] = jnp.zeros((1, PAD_LABELS), jnp.float32)
    return p


# ---------------- forward (BertEncoder.forward) ----------------
def bert_encoder_forward(params, tokens):
    B, S = tokens.shape
    H = HIDDEN
    M = B * S

    # mask = (tokens != 0); BERT-style additive mask.
    maskf = (tokens != 0).astype(jnp.float32)
    add_mask = (1.0 - maskf) * -10000.0                      # [B, S]

    # BERT embeddings (gather is JAX glue), token_type_ids = 0.
    x = (params["word_emb"][tokens]
         + params["pos_emb"][:S][None, :, :]
         + params["type_emb"][0][None, None, :])
    x = x.reshape(M, H)

    x = _pallas_full(
        functools.partial(emb_ln_kernel, eps=LN_EPS),
        [x, params["emb_ln_g"], params["emb_ln_b"]],
        jax.ShapeDtypeStruct((M, H), jnp.float32))

    scale = 1.0 / math.sqrt(HEAD_DIM)
    for lp in params["layers"]:
        x = _pallas_full(
            functools.partial(encoder_layer_kernel, B=B, S=S, nh=NUM_HEADS,
                              hd=HEAD_DIM, scale=scale, eps=LN_EPS),
            [x, add_mask,
             lp["wqkv"], lp["bqkv"],
             lp["wo"], lp["bo"],
             lp["ln1_g"], lp["ln1_b"],
             lp["w1"], lp["b1"],
             lp["w2"], lp["b2"],
             lp["ln2_g"], lp["ln2_b"]],
            jax.ShapeDtypeStruct((M, H), jnp.float32),
            scratch_shapes=[pltpu.VMEM((M, H), jnp.float32)])

    # z = bert_output[0] (last hidden state); Classifier fused in one kernel.
    y = _pallas_full(
        classifier_kernel,
        [x, params["cls_w"], params["cls_b"], params["out_w_pad"], params["out_b_pad"]],
        jax.ShapeDtypeStruct((M, PAD_LABELS), jnp.float32))
    return y[:, :NUM_LABELS].reshape(B, S, NUM_LABELS)


if __name__ == "__main__":
    key = jax.random.PRNGKey(0)
    pkey, tkey = jax.random.split(key)
    params = init_params(pkey)

    B, S = 2, 8
    tokens = jax.random.randint(tkey, (B, S), 1, VOCAB, dtype=jnp.int32)
    # pad the tail of the second sequence with zeros to exercise the attention mask
    tokens = tokens.at[1, 6:].set(0)

    out = jax.jit(bert_encoder_forward)(params, tokens)
    out = jax.block_until_ready(out)
    assert out.shape == (B, S, NUM_LABELS) and out.dtype == jnp.float32
    assert bool(jnp.all(jnp.isfinite(out)))
    print("KERNEL_OK")
</pallas_src>

<mosaic_0001>
module attributes {stable_mosaic.version = 11 : i64} {
  func.func @emb_ln_kernel(%arg0: i32, %arg1: memref<16x128xf32, #tpu.memory_space<vmem>>, %arg2: memref<1x128xf32, #tpu.memory_space<vmem>>, %arg3: memref<1x128xf32, #tpu.memory_space<vmem>>, %arg4: memref<16x128xf32, #tpu.memory_space<vmem>>) attributes {dimension_semantics = [#tpu.dimension_semantics<arbitrary>], iteration_bounds = array<i64: 1>, scalar_prefetch = 0 : i64, scratch_operands = 0 : i64, tpu.core_type = #tpu.core_type<tc>, window_params = [{pipeline_mode = #tpu.pipeline_mode<synchronous>, transform_indices = @transform_0, window_bounds = array<i64: 16, 128>}, {pipeline_mode = #tpu.pipeline_mode<synchronous>, transform_indices = @transform_1, window_bounds = array<i64: 1, 128>}, {pipeline_mode = #tpu.pipeline_mode<synchronous>, transform_indices = @transform_2, window_bounds = array<i64: 1, 128>}, {pipeline_mode = #tpu.pipeline_mode<synchronous>, transform_indices = @transform_3, window_bounds = array<i64: 16, 128>}]} {
    %c0 = arith.constant 0 : index
    %c0_0 = arith.constant 0 : index
    %0 = vector.load %arg1[%c0, %c0_0] : memref<16x128xf32, #tpu.memory_space<vmem>>, vector<16x128xf32>
    %c0_1 = arith.constant 0 : index
    %c0_2 = arith.constant 0 : index
    %1 = vector.load %arg2[%c0_1, %c0_2] : memref<1x128xf32, #tpu.memory_space<vmem>>, vector<1x128xf32>
    %c0_3 = arith.constant 0 : index
    %c0_4 = arith.constant 0 : index
    %2 = vector.load %arg3[%c0_3, %c0_4] : memref<1x128xf32, #tpu.memory_space<vmem>>, vector<1x128xf32>
    %cst = arith.constant dense<0.000000e+00> : vector<16xf32>
    %3 = vector.multi_reduction <add>, %0, %cst [1] : vector<16x128xf32> to vector<16xf32>
    %4 = vector.shape_cast %3 : vector<16xf32> to vector<16x1xf32>
    %cst_5 = arith.constant 1.280000e+02 : f32
    %5 = vector.broadcast %cst_5 : f32 to vector<16x1xf32>
    %6 = arith.divf %4, %5 : vector<16x1xf32>
    %7 = vector.broadcast %6 : vector<16x1xf32> to vector<16x128xf32>
    %8 = arith.subf %0, %7 : vector<16x128xf32>
    %9 = vector.broadcast %6 : vector<16x1xf32> to vector<16x128xf32>
    %10 = arith.subf %0, %9 : vector<16x128xf32>
    %11 = arith.mulf %8, %10 : vector<16x128xf32>
    %cst_6 = arith.constant dense<0.000000e+00> : vector<16xf32>
    %12 = vector.multi_reduction <add>, %11, %cst_6 [1] : vector<16x128xf32> to vector<16xf32>
    %13 = vector.shape_cast %12 : vector<16xf32> to vector<16x1xf32>
    %cst_7 = arith.constant 1.280000e+02 : f32
    %14 = vector.broadcast %cst_7 : f32 to vector<16x1xf32>
    %15 = arith.divf %13, %14 : vector<16x1xf32>
    %16 = vector.broadcast %6 : vector<16x1xf32> to vector<16x128xf32>
    %17 = arith.subf %0, %16 : vector<16x128xf32>
    %cst_8 = arith.constant 9.99999996E-13 : f32
    %18 = vector.broadcast %cst_8 : f32 to vector<16x1xf32>
    %19 = arith.addf %15, %18 : vector<16x1xf32>
    %20 = math.rsqrt %19 : vector<16x1xf32>
    %21 = vector.broadcast %20 : vector<16x1xf32> to vector<16x128xf32>
    %22 = arith.mulf %17, %21 : vector<16x128xf32>
    %23 = vector.broadcast %1 : vector<1x128xf32> to vector<16x128xf32>
    %24 = arith.mulf %22, %23 : vector<16x128xf32>
    %25 = vector.broadcast %2 : vector<1x128xf32> to vector<16x128xf32>
    %26 = arith.addf %24, %25 : vector<16x128xf32>
    %c0_9 = arith.constant 0 : index
    %c0_10 = arith.constant 0 : index
    %27 = vector.load %arg4[%c0_9, %c0_10] : memref<16x128xf32, #tpu.memory_space<vmem>>, vector<16x128xf32>
    tpu.vector_store %arg4[%c0_9, %c0_10], %26 {strides = array<i32>} : memref<16x128xf32, #tpu.memory_space<vmem>>, vector<16x128xf32>,
    return
  }
  func.func @transform_0(%arg0: i32) -> (i32, i32) {
    %c0_i32 = arith.constant 0 : i32
    %c0_i32_0 = arith.constant 0 : i32
    %c0_i32_1 = arith.constant 0 : i32
    return %c0_i32, %c0_i32_0 : i32, i32
  }
  func.func @transform_1(%arg0: i32) -> (i32, i32) {
    %c0_i32 = arith.constant 0 : i32
    %c0_i32_0 = arith.constant 0 : i32
    %c0_i32_1 = arith.constant 0 : i32
    return %c0_i32, %c0_i32_0 : i32, i32
  }
  func.func @transform_2(%arg0: i32) -> (i32, i32) {
    %c0_i32 = arith.constant 0 : i32
    %c0_i32_0 = arith.constant 0 : i32
    %c0_i32_1 = arith.constant 0 : i32
    return %c0_i32, %c0_i32_0 : i32, i32
  }
  func.func @transform_3(%arg0: i32) -> (i32, i32) {
    %c0_i32 = arith.constant 0 : i32
    %c0_i32_0 = arith.constant 0 : i32
    %c0_i32_1 = arith.constant 0 : i32
    return %c0_i32, %c0_i32_0 : i32, i32
  }
}

module attributes {stable_mosaic.version = 11 : i64} {
  func.func @encoder_layer_kernel(%arg0: i32, %arg1: memref<16x128xf32, #tpu.memory_space<vmem>>, %arg2: memref<2x8xf32, #tpu.memory_space<vmem>>, %arg3: memref<128x384xf32, #tpu.memory_space<vmem>>, %arg4: memref<1x384xf32, #tpu.memory_space<vmem>>, %arg5: memref<128x128xf32, #tpu.memory_space<vmem>>, %arg6: memref<1x128xf32, #tpu.memory_space<vmem>>, %arg7: memref<1x128xf32, #tpu.memory_space<vmem>>, %arg8: memref<1x128xf32, #tpu.memory_space<vmem>>, %arg9: memref<128x256xf32, #tpu.memory_space<vmem>>, %arg10: memref<1x256xf32, #tpu.memory_space<vmem>>, %arg11: memref<256x128xf32, #tpu.memory_space<vmem>>, %arg12: memref<1x128xf32, #tpu.memory_space<vmem>>, %arg13: memref<1x128xf32, #tpu.memory_space<vmem>>, %arg14: memref<1x128xf32, #tpu.memory_space<vmem>>, %arg15: memref<16x128xf32, #tpu.memory_space<vmem>>, %arg16: memref<16x128xf32, #tpu.memory_space<vmem>>) attributes {dimension_semantics = [#tpu.dimension_semantics<arbitrary>], iteration_bounds = array<i64: 1>, scalar_prefetch = 0 : i64, scratch_operands = 1 : i64, tpu.core_type = #tpu.core_type<tc>, window_params = [{pipeline_mode = #tpu.pipeline_mode<synchronous>, transform_indices = @transform_0, window_bounds = array<i64: 16, 128>}, {pipeline_mode = #tpu.pipeline_mode<synchronous>, transform_indices = @transform_1, window_bounds = array<i64: 2, 8>}, {pipeline_mode = #tpu.pipeline_mode<synchronous>, transform_indices = @transform_2, window_bounds = array<i64: 128, 384>}, {pipeline_mode = #tpu.pipeline_mode<synchronous>, transform_indices = @transform_3, window_bounds = array<i64: 1, 384>}, {pipeline_mode = #tpu.pipeline_mode<synchronous>, transform_indices = @transform_4, window_bounds = array<i64: 128, 128>}, {pipeline_mode = #tpu.pipeline_mode<synchronous>, transform_indices = @transform_5, window_bounds = array<i64: 1, 128>}, {pipeline_mode = #tpu.pipeline_mode<synchronous>, transform_indices = @transform_6, window_bounds = array<i64: 1, 128>}, {pipeline_mode = #tpu.pipeline_mode<synchronous>, transform_indices = @transform_7, window_bounds = array<i64: 1, 128>}, {pipeline_mode = #tpu.pipeline_mode<synchronous>, transform_indices = @transform_8, window_bounds = array<i64: 128, 256>}, {pipeline_mode = #tpu.pipeline_mode<synchronous>, transform_indices = @transform_9, window_bounds = array<i64: 1, 256>}, {pipeline_mode = #tpu.pipeline_mode<synchronous>, transform_indices = @transform_10, window_bounds = array<i64: 256, 128>}, {pipeline_mode = #tpu.pipeline_mode<synchronous>, transform_indices = @transform_11, window_bounds = array<i64: 1, 128>}, {pipeline_mode = #tpu.pipeline_mode<synchronous>, transform_indices = @transform_12, window_bounds = array<i64: 1, 128>}, {pipeline_mode = #tpu.pipeline_mode<synchronous>, transform_indices = @transform_13, window_bounds = array<i64: 1, 128>}, {pipeline_mode = #tpu.pipeline_mode<synchronous>, transform_indices = @transform_14, window_bounds = array<i64: 16, 128>}]} {
    %c0 = arith.constant 0 : index
    %c0_0 = arith.constant 0 : index
    %0 = vector.load %arg1[%c0, %c0_0] : memref<16x128xf32, #tpu.memory_space<vmem>>, vector<16x128xf32>
    %c0_1 = arith.constant 0 : index
    %c0_2 = arith.constant 0 : index
    %1 = vector.load %arg2[%c0_1, %c0_2] : memref<2x8xf32, #tpu.memory_space<vmem>>, vector<2x8xf32>
    %c0_3 = arith.constant 0 : index
    %c0_4 = arith.constant 0 : index
    %2 = vector.load %arg3[%c0_3, %c0_4] : memref<128x384xf32, #tpu.memory_space<vmem>>, vector<128x384xf32>
    %cst = arith.constant dense<0.000000e+00> : vector<16x384xf32>
    %3 = tpu.matmul %0, %2, %cst {dimension_numbers = #tpu.dot_dimension_numbers<[1], [0], [0], [1], [0, 0, 1, 1], [], []>} : vector<16x128xf32>, vector<128x384xf32>, vector<16x384xf32> -> vector<16x384xf32>
    %c0_5 = arith.constant 0 : index
    %c0_6 = arith.constant 0 : index
    %4 = vector.load %arg4[%c0_5, %c0_6] : memref<1x384xf32, #tpu.memory_space<vmem>>, vector<1x384xf32>
    %5 = vector.broadcast %4 : vector<1x384xf32> to vector<16x384xf32>
    %6 = arith.addf %3, %5 : vector<16x384xf32>
    %7 = vector.extract_strided_slice %1 {offsets = [0, 0], sizes = [1, 8], strides = [1, 1]} : vector<2x8xf32> to vector<1x8xf32>
    %8 = vector.shape_cast %7 : vector<1x8xf32> to vector<8xf32>
    %9 = vector.shape_cast %8 : vector<8xf32> to vector<1x8xf32>
    %10 = vector.extract_strided_slice %6 {offsets = [0, 0], sizes = [8, 64], strides = [1, 1]} : vector<16x384xf32> to vector<8x64xf32>
    %11 = vector.extract_strided_slice %6 {offsets = [0, 128], sizes = [8, 64], strides = [1, 1]} : vector<16x384xf32> to vector<8x64xf32>
    %12 = vector.extract_strided_slice %6 {offsets = [0, 256], sizes = [8, 64], strides = [1, 1]} : vector<16x384xf32> to vector<8x64xf32>
    %13 = tpu.transpose %11, [1, 0] : vector<8x64xf32> -> vector<64x8xf32>
    %cst_7 = arith.constant dense<0.000000e+00> : vector<8x8xf32>
    %14 = tpu.matmul %10, %13, %cst_7 {dimension_numbers = #tpu.dot_dimension_numbers<[1], [0], [0], [1], [0, 0, 1, 1], [], []>} : vector<8x64xf32>, vector<64x8xf32>, vector<8x8xf32> -> vector<8x8xf32>
    %cst_8 = arith.constant 1.250000e-01 : f32
    %15 = vector.broadcast %cst_8 : f32 to vector<8x8xf32>
    %16 = arith.mulf %14, %15 : vector<8x8xf32>
    %17 = vector.broadcast %9 : vector<1x8xf32> to vector<8x8xf32>
    %18 = arith.addf %16, %17 : vector<8x8xf32>
    %cst_9 = arith.constant dense<0xFF800000> : vector<8xf32>
    %19 = vector.multi_reduction <maximumf>, %18, %cst_9 [1] : vector<8x8xf32> to vector<8xf32>
    %20 = vector.shape_cast %19 : vector<8xf32> to vector<8x1xf32>
    %21 = vector.broadcast %20 : vector<8x1xf32> to vector<8x8xf32>
    %22 = arith.subf %18, %21 : vector<8x8xf32>
    %23 = math.exp %22 : vector<8x8xf32>
    %cst_10 = arith.constant dense<0.000000e+00> : vector<8xf32>
    %24 = vector.multi_reduction <add>, %23, %cst_10 [1] : vector<8x8xf32> to vector<8xf32>
    %25 = vector.shape_cast %24 : vector<8xf32> to vector<8x1xf32>
    %26 = tpu.reciprocal %25 {approx = true} : vector<8x1xf32> -> vector<8x1xf32>
    %27 = vector.broadcast %26 : vector<8x1xf32> to vector<8x8xf32>
    %28 = arith.mulf %23, %27 : vector<8x8xf32>
    %cst_11 = arith.constant dense<0.000000e+00> : vector<8x64xf32>
    %29 = tpu.matmul %28, %12, %cst_11 {dimension_numbers = #tpu.dot_dimension_numbers<[1], [0], [0], [1], [0, 0, 1, 1], [], []>} : vector<8x8xf32>, vector<8x64xf32>, vector<8x64xf32> -> vector<8x64xf32>
    %c0_12 = arith.constant 0 : index
    %c0_13 = arith.constant 0 : index
    %30 = vector.load %arg16[%c0_12, %c0_13] : memref<16x128xf32, #tpu.memory_space<vmem>>, vector<8x64xf32>
    tpu.vector_store %arg16[%c0_12, %c0_13], %29 {strides = array<i32>} : memref<16x128xf32, #tpu.memory_space<vmem>>, vector<8x64xf32>,
    %31 = vector.extract_strided_slice %6 {offsets = [0, 64], sizes = [8, 64], strides = [1, 1]} : vector<16x384xf32> to vector<8x64xf32>
    %32 = vector.extract_strided_slice %6 {offsets = [0, 192], sizes = [8, 64], strides = [1, 1]} : vector<16x384xf32> to vector<8x64xf32>
    %33 = vector.extract_strided_slice %6 {offsets = [0, 320], sizes = [8, 64], strides = [1, 1]} : vector<16x384xf32> to vector<8x64xf32>
    %34 = tpu.transpose %32, [1, 0] : vector<8x64xf32> -> vector<64x8xf32>
    %cst_14 = arith.constant dense<0.000000e+00> : vector<8x8xf32>
    %35 = tpu.matmul %31, %34, %cst_14 {dimension_numbers = #tpu.dot_dimension_numbers<[1], [0], [0], [1], [0, 0, 1, 1], [], []>} : vector<8x64xf32>, vector<64x8xf32>, vector<8x8xf32> -> vector<8x8xf32>
    %cst_15 = arith.constant 1.250000e-01 : f32
    %36 = vector.broadcast %cst_15 : f32 to vector<8x8xf32>
    %37 = arith.mulf %35, %36 : vector<8x8xf32>
    %38 = vector.broadcast %9 : vector<1x8xf32> to vector<8x8xf32>
    %39 = arith.addf %37, %38 : vector<8x8xf32>
    %cst_16 = arith.constant dense<0xFF800000> : vector<8xf32>
    %40 = vector.multi_reduction <maximumf>, %39, %cst_16 [1] : vector<8x8xf32> to vector<8xf32>
    %41 = vector.shape_cast %40 : vector<8xf32> to vector<8x1xf32>
    %42 = vector.broadcast %41 : vector<8x1xf32> to vector<8x8xf32>
    %43 = arith.subf %39, %42 : vector<8x8xf32>
    %44 = math.exp %43 : vector<8x8xf32>
    %cst_17 = arith.constant dense<0.000000e+00> : vector<8xf32>
    %45 = vector.multi_reduction <add>, %44, %cst_17 [1] : vector<8x8xf32> to vector<8xf32>
    %46 = vector.shape_cast %45 : vector<8xf32> to vector<8x1xf32>
    %47 = tpu.reciprocal %46 {approx = true} : vector<8x1xf32> -> vector<8x1xf32>
    %48 = vector.broadcast %47 : vector<8x1xf32> to vector<8x8xf32>
    %49 = arith.mulf %44, %48 : vector<8x8xf32>
    %cst_18 = arith.constant dense<0.000000e+00> : vector<8x64xf32>
    %50 = tpu.matmul %49, %33, %cst_18 {dimension_numbers = #tpu.dot_dimension_numbers<[1], [0], [0], [1], [0, 0, 1, 1], [], []>} : vector<8x8xf32>, vector<8x64xf32>, vector<8x64xf32> -> vector<8x64xf32>
    %c0_19 = arith.constant 0 : index
    %c64 = arith.constant 64 : index
    %51 = vector.load %arg16[%c0_19, %c64] : memref<16x128xf32, #tpu.memory_space<vmem>>, vector<8x64xf32>
    tpu.vector_store %arg16[%c0_19, %c64], %50 {strides = array<i32>} : memref<16x128xf32, #tpu.memory_space<vmem>>, vector<8x64xf32>,
    %52 = vector.extract_strided_slice %1 {offsets = [1, 0], sizes = [1, 8], strides = [1, 1]} : vector<2x8xf32> to vector<1x8xf32>
    %53 = vector.shape_cast %52 : vector<1x8xf32> to vector<8xf32>
    %54 = vector.shape_cast %53 : vector<8xf32> to vector<1x8xf32>
    %55 = vector.extract_strided_slice %6 {offsets = [8, 0], sizes = [8, 64], strides = [1, 1]} : vector<16x384xf32> to vector<8x64xf32>
    %56 = vector.extract_strided_slice %6 {offsets = [8, 128], sizes = [8, 64], strides = [1, 1]} : vector<16x384xf32> to vector<8x64xf32>
    %57 = vector.extract_strided_slice %6 {offsets = [8, 256], sizes = [8, 64], strides = [1, 1]} : vector<16x384xf32> to vector<8x64xf32>
    %58 = tpu.transpose %56, [1, 0] : vector<8x64xf32> -> vector<64x8xf32>
    %cst_20 = arith.constant dense<0.000000e+00> : vector<8x8xf32>
    %59 = tpu.matmul %55, %58, %cst_20 {dimension_numbers = #tpu.dot_dimension_numbers<[1], [0], [0], [1], [0, 0, 1, 1], [], []>} : vector<8x64xf32>, vector<64x8xf32>, vector<8x8xf32> -> vector<8x8xf32>
    %cst_21 = arith.constant 1.250000e-01 : f32
    %60 = vector.broadcast %cst_21 : f32 to vector<8x8xf32>
    %61 = arith.mulf %59, %60 : vector<8x8xf32>
    %62 = vector.broadcast %54 : vector<1x8xf32> to vector<8x8xf32>
    %63 = arith.addf %61, %62 : vector<8x8xf32>
    %cst_22 = arith.constant dense<0xFF800000> : vector<8xf32>
    %64 = vector.multi_reduction <maximumf>, %63, %cst_22 [1] : vector<8x8xf32> to vector<8xf32>
    %65 = vector.shape_cast %64 : vector<8xf32> to vector<8x1xf32>
    %66 = vector.broadcast %65 : vector<8x1xf32> to vector<8x8xf32>
    %67 = arith.subf %63, %66 : vector<8x8xf32>
    %68 = math.exp %67 : vector<8x8xf32>
    %cst_23 = arith.constant dense<0.000000e+00> : vector<8xf32>
    %69 = vector.multi_reduction <add>, %68, %cst_23 [1] : vector<8x8xf32> to vector<8xf32>
    %70 = vector.shape_cast %69 : vector<8xf32> to vector<8x1xf32>
    %71 = tpu.reciprocal %70 {approx = true} : vector<8x1xf32> -> vector<8x1xf32>
    %72 = vector.broadcast %71 : vector<8x1xf32> to vector<8x8xf32>
    %73 = arith.mulf %68, %72 : vector<8x8xf32>
    %cst_24 = arith.constant dense<0.000000e+00> : vector<8x64xf32>
    %74 = tpu.matmul %73, %57, %cst_24 {dimension_numbers = #tpu.dot_dimension_numbers<[1], [0], [0], [1], [0, 0, 1, 1], [], []>} : vector<8x8xf32>, vector<8x64xf32>, vector<8x64xf32> -> vector<8x64xf32>
    %c8 = arith.constant 8 : index
    %c0_25 = arith.constant 0 : index
    %75 = vector.load %arg16[%c8, %c0_25] : memref<16x128xf32, #tpu.memory_space<vmem>>, vector<8x64xf32>
    tpu.vector_store %arg16[%c8, %c0_25], %74 {strides = array<i32>} : memref<16x128xf32, #tpu.memory_space<vmem>>, vector<8x64xf32>,
    %76 = vector.extract_strided_slice %6 {offsets = [8, 64], sizes = [8, 64], strides = [1, 1]} : vector<16x384xf32> to vector<8x64xf32>
    %77 = vector.extract_strided_slice %6 {offsets = [8, 192], sizes = [8, 64], strides = [1, 1]} : vector<16x384xf32> to vector<8x64xf32>
    %78 = vector.extract_strided_slice %6 {offsets = [8, 320], sizes = [8, 64], strides = [1, 1]} : vector<16x384xf32> to vector<8x64xf32>
    %79 = tpu.transpose %77, [1, 0] : vector<8x64xf32> -> vector<64x8xf32>
    %cst_26 = arith.constant dense<0.000000e+00> : vector<8x8xf32>
    %80 = tpu.matmul %76, %79, %cst_26 {dimension_numbers = #tpu.dot_dimension_numbers<[1], [0], [0], [1], [0, 0, 1, 1], [], []>} : vector<8x64xf32>, vector<64x8xf32>, vector<8x8xf32> -> vector<8x8xf32>
    %cst_27 = arith.constant 1.250000e-01 : f32
    %81 = vector.broadcast %cst_27 : f32 to vector<8x8xf32>
    %82 = arith.mulf %80, %81 : vector<8x8xf32>
    %83 = vector.broadcast %54 : vector<1x8xf32> to vector<8x8xf32>
    %84 = arith.addf %82, %83 : vector<8x8xf32>
    %cst_28 = arith.constant dense<0xFF800000> : vector<8xf32>
    %85 = vector.multi_reduction <maximumf>, %84, %cst_28 [1] : vector<8x8xf32> to vector<8xf32>
    %86 = vector.shape_cast %85 : vector<8xf32> to vector<8x1xf32>
    %87 = vector.broadcast %86 : vector<8x1xf32> to vector<8x8xf32>
    %88 = arith.subf %84, %87 : vector<8x8xf32>
    %89 = math.exp %88 : vector<8x8xf32>
    %cst_29 = arith.constant dense<0.000000e+00> : vector<8xf32>
    %90 = vector.multi_reduction <add>, %89, %cst_29 [1] : vector<8x8xf32> to vector<8xf32>
    %91 = vector.shape_cast %90 : vector<8xf32> to vector<8x1xf32>
    %92 = tpu.reciprocal %91 {approx = true} : vector<8x1xf32> -> vector<8x1xf32>
    %93 = vector.broadcast %92 : vector<8x1xf32> to vector<8x8xf32>
    %94 = arith.mulf %89, %93 : vector<8x8xf32>
    %cst_30 = arith.constant dense<0.000000e+00> : vector<8x64xf32>
    %95 = tpu.matmul %94, %78, %cst_30 {dimension_numbers = #tpu.dot_dimension_numbers<[1], [0], [0], [1], [0, 0, 1, 1], [], []>} : vector<8x8xf32>, vector<8x64xf32>, vector<8x64xf32> -> vector<8x64xf32>
    %c8_31 = arith.constant 8 : index
    %c64_32 = arith.constant 64 : index
    %96 = vector.load %arg16[%c8_31, %c64_32] : memref<16x128xf32, #tpu.memory_space<vmem>>, vector<8x64xf32>
    tpu.vector_store %arg16[%c8_31, %c64_32], %95 {strides = array<i32>} : memref<16x128xf32, #tpu.memory_space<vmem>>, vector<8x64xf32>,
    %c0_33 = arith.constant 0 : index
    %c0_34 = arith.constant 0 : index
    %97 = vector.load %arg16[%c0_33, %c0_34] : memref<16x128xf32, #tpu.memory_space<vmem>>, vector<16x128xf32>
    %c0_35 = arith.constant 0 : index
    %c0_36 = arith.constant 0 : index
    %98 = vector.load %arg5[%c0_35, %c0_36] : memref<128x128xf32, #tpu.memory_space<vmem>>, vector<128x128xf32>
    %cst_37 = arith.constant dense<0.000000e+00> : vector<16x128xf32>
    %99 = tpu.matmul %97, %98, %cst_37 {dimension_numbers = #tpu.dot_dimension_numbers<[1], [0], [0], [1], [0, 0, 1, 1], [], []>} : vector<16x128xf32>, vector<128x128xf32>, vector<16x128xf32> -> vector<16x128xf32>
    %c0_38 = arith.constant 0 : index
    %c0_39 = arith.constant 0 : index
    %100 = vector.load %arg6[%c0_38, %c0_39] : memref<1x128xf32, #tpu.memory_space<vmem>>, vector<1x128xf32>
    %101 = vector.broadcast %100 : vector<1x128xf32> to vector<16x128xf32>
    %102 = arith.addf %99, %101 : vector<16x128xf32>
    %103 = arith.addf %0, %102 : vector<16x128xf32>
    %c0_40 = arith.constant 0 : index
    %c0_41 = arith.constant 0 : index
    %104 = vector.load %arg7[%c0_40, %c0_41] : memref<1x128xf32, #tpu.memory_space<vmem>>, vector<1x128xf32>
    %c0_42 = arith.constant 0 : index
    %c0_43 = arith.constant 0 : index
    %105 = vector.load %arg8[%c0_42, %c0_43] : memref<1x128xf32, #tpu.memory_space<vmem>>, vector<1x128xf32>
    %cst_44 = arith.constant dense<0.000000e+00> : vector<16xf32>
    %106 = vector.multi_reduction <add>, %103, %cst_44 [1] : vector<16x128xf32> to vector<16xf32>
    %107 = vector.shape_cast %106 : vector<16xf32> to vector<16x1xf32>
    %cst_45 = arith.constant 1.280000e+02 : f32
    %108 = vector.broadcast %cst_45 : f32 to vector<16x1xf32>
    %109 = arith.divf %107, %108 : vector<16x1xf32>
    %110 = vector.broadcast %109 : vector<16x1xf32> to vector<16x128xf32>
    %111 = arith.subf %103, %110 : vector<16x128xf32>
    %112 = vector.broadcast %109 : vector<16x1xf32> to vector<16x128xf32>
    %113 = arith.subf %103, %112 : vector<16x128xf32>
    %114 = arith.mulf %111, %113 : vector<16x128xf32>
    %cst_46 = arith.constant dense<0.000000e+00> : vector<16xf32>
    %115 = vector.multi_reduction <add>, %114, %cst_46 [1] : vector<16x128xf32> to vector<16xf32>
    %116 = vector.shape_cast %115 : vector<16xf32> to vector<16x1xf32>
    %cst_47 = arith.constant 1.280000e+02 : f32
    %117 = vector.broadcast %cst_47 : f32 to vector<16x1xf32>
    %118 = arith.divf %116, %117 : vector<16x1xf32>
    %119 = vector.broadcast %109 : vector<16x1xf32> to vector<16x128xf32>
    %120 = arith.subf %103, %119 : vector<16x128xf32>
    %cst_48 = arith.constant 9.99999996E-13 : f32
    %121 = vector.broadcast %cst_48 : f32 to vector<16x1xf32>
    %122 = arith.addf %118, %121 : vector<16x1xf32>
    %123 = math.rsqrt %122 : vector<16x1xf32>
    %124 = vector.broadcast %123 : vector<16x1xf32> to vector<16x128xf32>
    %125 = arith.mulf %120, %124 : vector<16x128xf32>
    %126 = vector.broadcast %104 : vector<1x128xf32> to vector<16x128xf32>
    %127 = arith.mulf %125, %126 : vector<16x128xf32>
    %128 = vector.broadcast %105 : vector<1x128xf32> to vector<16x128xf32>
    %129 = arith.addf %127, %128 : vector<16x128xf32>
    %c0_49 = arith.constant 0 : index
    %c0_50 = arith.constant 0 : index
    %130 = vector.load %arg9[%c0_49, %c0_50] : memref<128x256xf32, #tpu.memory_space<vmem>>, vector<128x256xf32>
    %cst_51 = arith.constant dense<0.000000e+00> : vector<16x256xf32>
    %131 = tpu.matmul %129, %130, %cst_51 {dimension_numbers = #tpu.dot_dimension_numbers<[1], [0], [0], [1], [0, 0, 1, 1], [], []>} : vector<16x128xf32>, vector<128x256xf32>, vector<16x256xf32> -> vector<16x256xf32>
    %c0_52 = arith.constant 0 : index
    %c0_53 = arith.constant 0 : index
    %132 = vector.load %arg10[%c0_52, %c0_53] : memref<1x256xf32, #tpu.memory_space<vmem>>, vector<1x256xf32>
    %133 = vector.broadcast %132 : vector<1x256xf32> to vector<16x256xf32>
    %134 = arith.addf %131, %133 : vector<16x256xf32>
    %cst_54 = arith.constant 5.000000e-01 : f32
    %135 = vector.broadcast %cst_54 : f32 to vector<16x256xf32>
    %136 = arith.mulf %135, %134 : vector<16x256xf32>
    %cst_55 = arith.constant 4.471500e-02 : f32
    %137 = vector.broadcast %cst_55 : f32 to vector<16x256xf32>
    %138 = arith.mulf %137, %134 : vector<16x256xf32>
    %139 = arith.mulf %138, %134 : vector<16x256xf32>
    %140 = arith.mulf %139, %134 : vector<16x256xf32>
    %141 = arith.addf %134, %140 : vector<16x256xf32>
    %cst_56 = arith.constant 0.797884583 : f32
    %142 = vector.broadcast %cst_56 : f32 to vector<16x256xf32>
    %143 = arith.mulf %142, %141 : vector<16x256xf32>
    %144 = math.tanh %143 : vector<16x256xf32>
    %cst_57 = arith.constant 1.000000e+00 : f32
    %145 = vector.broadcast %cst_57 : f32 to vector<16x256xf32>
    %146 = arith.addf %145, %144 : vector<16x256xf32>
    %147 = arith.mulf %136, %146 : vector<16x256xf32>
    %c0_58 = arith.constant 0 : index
    %c0_59 = arith.constant 0 : index
    %148 = vector.load %arg11[%c0_58, %c0_59] : memref<256x128xf32, #tpu.memory_space<vmem>>, vector<256x128xf32>
    %cst_60 = arith.constant dense<0.000000e+00> : vector<16x128xf32>
    %149 = tpu.matmul %147, %148, %cst_60 {dimension_numbers = #tpu.dot_dimension_numbers<[1], [0], [0], [1], [0, 0, 1, 1], [], []>} : vector<16x256xf32>, vector<256x128xf32>, vector<16x128xf32> -> vector<16x128xf32>
    %c0_61 = arith.constant 0 : index
    %c0_62 = arith.constant 0 : index
    %150 = vector.load %arg12[%c0_61, %c0_62] : memref<1x128xf32, #tpu.memory_space<vmem>>, vector<1x128xf32>
    %151 = vector.broadcast %150 : vector<1x128xf32> to vector<16x128xf32>
    %152 = arith.addf %149, %151 : vector<16x128xf32>
    %153 = arith.addf %129, %152 : vector<16x128xf32>
    %c0_63 = arith.constant 0 : index
    %c0_64 = arith.constant 0 : index
    %154 = vector.load %arg13[%c0_63, %c0_64] : memref<1x128xf32, #tpu.memory_space<vmem>>, vector<1x128xf32>
    %c0_65 = arith.constant 0 : index
    %c0_66 = arith.constant 0 : index
    %155 = vector.load %arg14[%c0_65, %c0_66] : memref<1x128xf32, #tpu.memory_space<vmem>>, vector<1x128xf32>
    %cst_67 = arith.constant dense<0.000000e+00> : vector<16xf32>
    %156 = vector.multi_reduction <add>, %153, %cst_67 [1] : vector<16x128xf32> to vector<16xf32>
    %157 = vector.shape_cast %156 : vector<16xf32> to vector<16x1xf32>
    %cst_68 = arith.constant 1.280000e+02 : f32
    %158 = vector.broadcast %cst_68 : f32 to vector<16x1xf32>
    %159 = arith.divf %157, %158 : vector<16x1xf32>
    %160 = vector.broadcast %159 : vector<16x1xf32> to vector<16x128xf32>
    %161 = arith.subf %153, %160 : vector<16x128xf32>
    %162 = vector.broadcast %159 : vector<16x1xf32> to vector<16x128xf32>
    %163 = arith.subf %153, %162 : vector<16x128xf32>
    %164 = arith.mulf %161, %163 : vector<16x128xf32>
    %cst_69 = arith.constant dense<0.000000e+00> : vector<16xf32>
    %165 = vector.multi_reduction <add>, %164, %cst_69 [1] : vector<16x128xf32> to vector<16xf32>
    %166 = vector.shape_cast %165 : vector<16xf32> to vector<16x1xf32>
    %cst_70 = arith.constant 1.280000e+02 : f32
    %167 = vector.broadcast %cst_70 : f32 to vector<16x1xf32>
    %168 = arith.divf %166, %167 : vector<16x1xf32>
    %169 = vector.broadcast %159 : vector<16x1xf32> to vector<16x128xf32>
    %170 = arith.subf %153, %169 : vector<16x128xf32>
    %cst_71 = arith.constant 9.99999996E-13 : f32
    %171 = vector.broadcast %cst_71 : f32 to vector<16x1xf32>
    %172 = arith.addf %168, %171 : vector<16x1xf32>
    %173 = math.rsqrt %172 : vector<16x1xf32>
    %174 = vector.broadcast %173 : vector<16x1xf32> to vector<16x128xf32>
    %175 = arith.mulf %170, %174 : vector<16x128xf32>
    %176 = vector.broadcast %154 : vector<1x128xf32> to vector<16x128xf32>
    %177 = arith.mulf %175, %176 : vector<16x128xf32>
    %178 = vector.broadcast %155 : vector<1x128xf32> to vector<16x128xf32>
    %179 = arith.addf %177, %178 : vector<16x128xf32>
    %c0_72 = arith.constant 0 : index
    %c0_73 = arith.constant 0 : index
    %180 = vector.load %arg15[%c0_72, %c0_73] : memref<16x128xf32, #tpu.memory_space<vmem>>, vector<16x128xf32>
    tpu.vector_store %arg15[%c0_72, %c0_73], %179 {strides = array<i32>} : memref<16x128xf32, #tpu.memory_space<vmem>>, vector<16x128xf32>,
    return
  }
  func.func @transform_0(%arg0: i32) -> (i32, i32) {
    %c0_i32 = arith.constant 0 : i32
    %c0_i32_0 = arith.constant 0 : i32
    %c0_i32_1 = arith.constant 0 : i32
    return %c0_i32, %c0_i32_0 : i32, i32
  }
  func.func @transform_1(%arg0: i32) -> (i32, i32) {
    %c0_i32 = arith.constant 0 : i32
    %c0_i32_0 = arith.constant 0 : i32
    %c0_i32_1 = arith.constant 0 : i32
    return %c0_i32, %c0_i32_0 : i32, i32
  }
  func.func @transform_2(%arg0: i32) -> (i32, i32) {
    %c0_i32 = arith.constant 0 : i32
    %c0_i32_0 = arith.constant 0 : i32
    %c0_i32_1 = arith.constant 0 : i32
    return %c0_i32, %c0_i32_0 : i32, i32
  }
  func.func @transform_3(%arg0: i32) -> (i32, i32) {
    %c0_i32 = arith.constant 0 : i32
    %c0_i32_0 = arith.constant 0 : i32
    %c0_i32_1 = arith.constant 0 : i32
    return %c0_i32, %c0_i32_0 : i32, i32
  }
  func.func @transform_4(%arg0: i32) -> (i32, i32) {
    %c0_i32 = arith.constant 0 : i32
    %c0_i32_0 = arith.constant 0 : i32
    %c0_i32_1 = arith.constant 0 : i32
    return %c0_i32, %c0_i32_0 : i32, i32
  }
  func.func @transform_5(%arg0: i32) -> (i32, i32) {
    %c0_i32 = arith.constant 0 : i32
    %c0_i32_0 = arith.constant 0 : i32
    %c0_i32_1 = arith.constant 0 : i32
    return %c0_i32, %c0_i32_0 : i32, i32
  }
  func.func @transform_6(%arg0: i32) -> (i32, i32) {
    %c0_i32 = arith.constant 0 : i32
    %c0_i32_0 = arith.constant 0 : i32
    %c0_i32_1 = arith.constant 0 : i32
    return %c0_i32, %c0_i32_0 : i32, i32
  }
  func.func @transform_7(%arg0: i32) -> (i32, i32) {
    %c0_i32 = arith.constant 0 : i32
    %c0_i32_0 = arith.constant 0 : i32
    %c0_i32_1 = arith.constant 0 : i32
    return %c0_i32, %c0_i32_0 : i32, i32
  }
  func.func @transform_8(%arg0: i32) -> (i32, i32) {
    %c0_i32 = arith.constant 0 : i32
    %c0_i32_0 = arith.constant 0 : i32
    %c0_i32_1 = arith.constant 0 : i32
    return %c0_i32, %c0_i32_0 : i32, i32
  }
  func.func @transform_9(%arg0: i32) -> (i32, i32) {
    %c0_i32 = arith.constant 0 : i32
    %c0_i32_0 = arith.constant 0 : i32
    %c0_i32_1 = arith.constant 0 : i32
    return %c0_i32, %c0_i32_0 : i32, i32
  }
  func.func @transform_10(%arg0: i32) -> (i32, i32) {
    %c0_i32 = arith.constant 0 : i32
    %c0_i32_0 = arith.constant 0 : i32
    %c0_i32_1 = arith.constant 0 : i32
    return %c0_i32, %c0_i32_0 : i32, i32
  }
  func.func @transform_11(%arg0: i32) -> (i32, i32) {
    %c0_i32 = arith.constant 0 : i32
    %c0_i32_0 = arith.constant 0 : i32
    %c0_i32_1 = arith.constant 0 : i32
    return %c0_i32, %c0_i32_0 : i32, i32
  }
  func.func @transform_12(%arg0: i32) -> (i32, i32) {
    %c0_i32 = arith.constant 0 : i32
    %c0_i32_0 = arith.constant 0 : i32
    %c0_i32_1 = arith.constant 0 : i32
    return %c0_i32, %c0_i32_0 : i32, i32
  }
  func.func @transform_13(%arg0: i32) -> (i32, i32) {
    %c0_i32 = arith.constant 0 : i32
    %c0_i32_0 = arith.constant 0 : i32
    %c0_i32_1 = arith.constant 0 : i32
    return %c0_i32, %c0_i32_0 : i32, i32
  }
  func.func @transform_14(%arg0: i32) -> (i32, i32) {
    %c0_i32 = arith.constant 0 : i32
    %c0_i32_0 = arith.constant 0 : i32
    %c0_i32_1 = arith.constant 0 : i32
    return %c0_i32, %c0_i32_0 : i32, i32
  }
}

module attributes {stable_mosaic.version = 11 : i64} {
  func.func @classifier_kernel(%arg0: i32, %arg1: memref<16x128xf32, #tpu.memory_space<vmem>>, %arg2: memref<128x128xf32, #tpu.memory_space<vmem>>, %arg3: memref<1x128xf32, #tpu.memory_space<vmem>>, %arg4: memref<128x128xf32, #tpu.memory_space<vmem>>, %arg5: memref<1x128xf32, #tpu.memory_space<vmem>>, %arg6: memref<16x128xf32, #tpu.memory_space<vmem>>) attributes {dimension_semantics = [#tpu.dimension_semantics<arbitrary>], iteration_bounds = array<i64: 1>, scalar_prefetch = 0 : i64, scratch_operands = 0 : i64, tpu.core_type = #tpu.core_type<tc>, window_params = [{pipeline_mode = #tpu.pipeline_mode<synchronous>, transform_indices = @transform_0, window_bounds = array<i64: 16, 128>}, {pipeline_mode = #tpu.pipeline_mode<synchronous>, transform_indices = @transform_1, window_bounds = array<i64: 128, 128>}, {pipeline_mode = #tpu.pipeline_mode<synchronous>, transform_indices = @transform_2, window_bounds = array<i64: 1, 128>}, {pipeline_mode = #tpu.pipeline_mode<synchronous>, transform_indices = @transform_3, window_bounds = array<i64: 128, 128>}, {pipeline_mode = #tpu.pipeline_mode<synchronous>, transform_indices = @transform_4, window_bounds = array<i64: 1, 128>}, {pipeline_mode = #tpu.pipeline_mode<synchronous>, transform_indices = @transform_5, window_bounds = array<i64: 16, 128>}]} {
    %c0 = arith.constant 0 : index
    %c0_0 = arith.constant 0 : index
    %0 = vector.load %arg1[%c0, %c0_0] : memref<16x128xf32, #tpu.memory_space<vmem>>, vector<16x128xf32>
    %c0_1 = arith.constant 0 : index
    %c0_2 = arith.constant 0 : index
    %1 = vector.load %arg2[%c0_1, %c0_2] : memref<128x128xf32, #tpu.memory_space<vmem>>, vector<128x128xf32>
    %cst = arith.constant dense<0.000000e+00> : vector<16x128xf32>
    %2 = tpu.matmul %0, %1, %cst {dimension_numbers = #tpu.dot_dimension_numbers<[1], [0], [0], [1], [0, 0, 1, 1], [], []>} : vector<16x128xf32>, vector<128x128xf32>, vector<16x128xf32> -> vector<16x128xf32>
    %c0_3 = arith.constant 0 : index
    %c0_4 = arith.constant 0 : index
    %3 = vector.load %arg3[%c0_3, %c0_4] : memref<1x128xf32, #tpu.memory_space<vmem>>, vector<1x128xf32>
    %4 = vector.broadcast %3 : vector<1x128xf32> to vector<16x128xf32>
    %5 = arith.addf %2, %4 : vector<16x128xf32>
    %6 = math.tanh %5 : vector<16x128xf32>
    %c0_5 = arith.constant 0 : index
    %c0_6 = arith.constant 0 : index
    %7 = vector.load %arg4[%c0_5, %c0_6] : memref<128x128xf32, #tpu.memory_space<vmem>>, vector<128x128xf32>
    %cst_7 = arith.constant dense<0.000000e+00> : vector<16x128xf32>
    %8 = tpu.matmul %6, %7, %cst_7 {dimension_numbers = #tpu.dot_dimension_numbers<[1], [0], [0], [1], [0, 0, 1, 1], [], []>} : vector<16x128xf32>, vector<128x128xf32>, vector<16x128xf32> -> vector<16x128xf32>
    %c0_8 = arith.constant 0 : index
    %c0_9 = arith.constant 0 : index
    %9 = vector.load %arg5[%c0_8, %c0_9] : memref<1x128xf32, #tpu.memory_space<vmem>>, vector<1x128xf32>
    %10 = vector.broadcast %9 : vector<1x128xf32> to vector<16x128xf32>
    %11 = arith.addf %8, %10 : vector<16x128xf32>
    %c0_10 = arith.constant 0 : index
    %c0_11 = arith.constant 0 : index
    %12 = vector.load %arg6[%c0_10, %c0_11] : memref<16x128xf32, #tpu.memory_space<vmem>>, vector<16x128xf32>
    tpu.vector_store %arg6[%c0_10, %c0_11], %11 {strides = array<i32>} : memref<16x128xf32, #tpu.memory_space<vmem>>, vector<16x128xf32>,
    return
  }
  func.func @transform_0(%arg0: i32) -> (i32, i32) {
    %c0_i32 = arith.constant 0 : i32
    %c0_i32_0 = arith.constant 0 : i32
    %c0_i32_1 = arith.constant 0 : i32
    return %c0_i32, %c0_i32_0 : i32, i32
  }
  func.func @transform_1(%arg0: i32) -> (i32, i32) {
    %c0_i32 = arith.constant 0 : i32
    %c0_i32_0 = arith.constant 0 : i32
    %c0_i32_1 = arith.constant 0 : i32
    return %c0_i32, %c0_i32_0 : i32, i32
  }
  func.func @transform_2(%arg0: i32) -> (i32, i32) {
    %c0_i32 = arith.constant 0 : i32
    %c0_i32_0 = arith.constant 0 : i32
    %c0_i32_1 = arith.constant 0 : i32
    return %c0_i32, %c0_i32_0 : i32, i32
  }
  func.func @transform_3(%arg0: i32) -> (i32, i32) {
    %c0_i32 = arith.constant 0 : i32
    %c0_i32_0 = arith.constant 0 : i32
    %c0_i32_1 = arith.constant 0 : i32
    return %c0_i32, %c0_i32_0 : i32, i32
  }
  func.func @transform_4(%arg0: i32) -> (i32, i32) {
    %c0_i32 = arith.constant 0 : i32
    %c0_i32_0 = arith.constant 0 : i32
    %c0_i32_1 = arith.constant 0 : i32
    return %c0_i32, %c0_i32_0 : i32, i32
  }
  func.func @transform_5(%arg0: i32) -> (i32, i32) {
    %c0_i32 = arith.constant 0 : i32
    %c0_i32_0 = arith.constant 0 : i32
    %c0_i32_1 = arith.constant 0 : i32
    return %c0_i32, %c0_i32_0 : i32, i32
  }
}

module attributes {stable_mosaic.version = 11 : i64} {
  func.func @encoder_layer_kernel(%arg0: i32, %arg1: memref<16x128xf32, #tpu.memory_space<vmem>>, %arg2: memref<2x8xf32, #tpu.memory_space<vmem>>, %arg3: memref<128x384xf32, #tpu.memory_space<vmem>>, %arg4: memref<1x384xf32, #tpu.memory_space<vmem>>, %arg5: memref<128x128xf32, #tpu.memory_space<vmem>>, %arg6: memref<1x128xf32, #tpu.memory_space<vmem>>, %arg7: memref<1x128xf32, #tpu.memory_space<vmem>>, %arg8: memref<1x128xf32, #tpu.memory_space<vmem>>, %arg9: memref<128x256xf32, #tpu.memory_space<vmem>>, %arg10: memref<1x256xf32, #tpu.memory_space<vmem>>, %arg11: memref<256x128xf32, #tpu.memory_space<vmem>>, %arg12: memref<1x128xf32, #tpu.memory_space<vmem>>, %arg13: memref<1x128xf32, #tpu.memory_space<vmem>>, %arg14: memref<1x128xf32, #tpu.memory_space<vmem>>, %arg15: memref<16x128xf32, #tpu.memory_space<vmem>>, %arg16: memref<16x128xf32, #tpu.memory_space<vmem>>) attributes {dimension_semantics = [#tpu.dimension_semantics<arbitrary>], iteration_bounds = array<i64: 1>, scalar_prefetch = 0 : i64, scratch_operands = 1 : i64, tpu.core_type = #tpu.core_type<tc>, window_params = [{pipeline_mode = #tpu.pipeline_mode<synchronous>, transform_indices = @transform_0, window_bounds = array<i64: 16, 128>}, {pipeline_mode = #tpu.pipeline_mode<synchronous>, transform_indices = @transform_1, window_bounds = array<i64: 2, 8>}, {pipeline_mode = #tpu.pipeline_mode<synchronous>, transform_indices = @transform_2, window_bounds = array<i64: 128, 384>}, {pipeline_mode = #tpu.pipeline_mode<synchronous>, transform_indices = @transform_3, window_bounds = array<i64: 1, 384>}, {pipeline_mode = #tpu.pipeline_mode<synchronous>, transform_indices = @transform_4, window_bounds = array<i64: 128, 128>}, {pipeline_mode = #tpu.pipeline_mode<synchronous>, transform_indices = @transform_5, window_bounds = array<i64: 1, 128>}, {pipeline_mode = #tpu.pipeline_mode<synchronous>, transform_indices = @transform_6, window_bounds = array<i64: 1, 128>}, {pipeline_mode = #tpu.pipeline_mode<synchronous>, transform_indices = @transform_7, window_bounds = array<i64: 1, 128>}, {pipeline_mode = #tpu.pipeline_mode<synchronous>, transform_indices = @transform_8, window_bounds = array<i64: 128, 256>}, {pipeline_mode = #tpu.pipeline_mode<synchronous>, transform_indices = @transform_9, window_bounds = array<i64: 1, 256>}, {pipeline_mode = #tpu.pipeline_mode<synchronous>, transform_indices = @transform_10, window_bounds = array<i64: 256, 128>}, {pipeline_mode = #tpu.pipeline_mode<synchronous>, transform_indices = @transform_11, window_bounds = array<i64: 1, 128>}, {pipeline_mode = #tpu.pipeline_mode<synchronous>, transform_indices = @transform_12, window_bounds = array<i64: 1, 128>}, {pipeline_mode = #tpu.pipeline_mode<synchronous>, transform_indices = @transform_13, window_bounds = array<i64: 1, 128>}, {pipeline_mode = #tpu.pipeline_mode<synchronous>, transform_indices = @transform_14, window_bounds = array<i64: 16, 128>}]} {
    %c0 = arith.constant 0 : index
    %c0_0 = arith.constant 0 : index
    %0 = vector.load %arg1[%c0, %c0_0] : memref<16x128xf32, #tpu.memory_space<vmem>>, vector<16x128xf32>
    %c0_1 = arith.constant 0 : index
    %c0_2 = arith.constant 0 : index
    %1 = vector.load %arg2[%c0_1, %c0_2] : memref<2x8xf32, #tpu.memory_space<vmem>>, vector<2x8xf32>
    %c0_3 = arith.constant 0 : index
    %c0_4 = arith.constant 0 : index
    %2 = vector.load %arg3[%c0_3, %c0_4] : memref<128x384xf32, #tpu.memory_space<vmem>>, vector<128x384xf32>
    %cst = arith.constant dense<0.000000e+00> : vector<16x384xf32>
    %3 = tpu.matmul %0, %2, %cst {dimension_numbers = #tpu.dot_dimension_numbers<[1], [0], [0], [1], [0, 0, 1, 1], [], []>} : vector<16x128xf32>, vector<128x384xf32>, vector<16x384xf32> -> vector<16x384xf32>
    %c0_5 = arith.constant 0 : index
    %c0_6 = arith.constant 0 : index
    %4 = vector.load %arg4[%c0_5, %c0_6] : memref<1x384xf32, #tpu.memory_space<vmem>>, vector<1x384xf32>
    %5 = vector.broadcast %4 : vector<1x384xf32> to vector<16x384xf32>
    %6 = arith.addf %3, %5 : vector<16x384xf32>
    %7 = vector.extract_strided_slice %1 {offsets = [0, 0], sizes = [1, 8], strides = [1, 1]} : vector<2x8xf32> to vector<1x8xf32>
    %8 = vector.shape_cast %7 : vector<1x8xf32> to vector<8xf32>
    %9 = vector.shape_cast %8 : vector<8xf32> to vector<1x8xf32>
    %10 = vector.extract_strided_slice %6 {offsets = [0, 0], sizes = [8, 64], strides = [1, 1]} : vector<16x384xf32> to vector<8x64xf32>
    %11 = vector.extract_strided_slice %6 {offsets = [0, 128], sizes = [8, 64], strides = [1, 1]} : vector<16x384xf32> to vector<8x64xf32>
    %12 = vector.extract_strided_slice %6 {offsets = [0, 256], sizes = [8, 64], strides = [1, 1]} : vector<16x384xf32> to vector<8x64xf32>
    %13 = tpu.transpose %11, [1, 0] : vector<8x64xf32> -> vector<64x8xf32>
    %cst_7 = arith.constant dense<0.000000e+00> : vector<8x8xf32>
    %14 = tpu.matmul %10, %13, %cst_7 {dimension_numbers = #tpu.dot_dimension_numbers<[1], [0], [0], [1], [0, 0, 1, 1], [], []>} : vector<8x64xf32>, vector<64x8xf32>, vector<8x8xf32> -> vector<8x8xf32>
    %cst_8 = arith.constant 1.250000e-01 : f32
    %15 = vector.broadcast %cst_8 : f32 to vector<8x8xf32>
    %16 = arith.mulf %14, %15 : vector<8x8xf32>
    %17 = vector.broadcast %9 : vector<1x8xf32> to vector<8x8xf32>
    %18 = arith.addf %16, %17 : vector<8x8xf32>
    %cst_9 = arith.constant dense<0xFF800000> : vector<8xf32>
    %19 = vector.multi_reduction <maximumf>, %18, %cst_9 [1] : vector<8x8xf32> to vector<8xf32>
    %20 = vector.shape_cast %19 : vector<8xf32> to vector<8x1xf32>
    %21 = vector.broadcast %20 : vector<8x1xf32> to vector<8x8xf32>
    %22 = arith.subf %18, %21 : vector<8x8xf32>
    %23 = math.exp %22 : vector<8x8xf32>
    %cst_10 = arith.constant dense<0.000000e+00> : vector<8xf32>
    %24 = vector.multi_reduction <add>, %23, %cst_10 [1] : vector<8x8xf32> to vector<8xf32>
    %25 = vector.shape_cast %24 : vector<8xf32> to vector<8x1xf32>
    %26 = tpu.reciprocal %25 {approx = true} : vector<8x1xf32> -> vector<8x1xf32>
    %27 = vector.broadcast %26 : vector<8x1xf32> to vector<8x8xf32>
    %28 = arith.mulf %23, %27 : vector<8x8xf32>
    %cst_11 = arith.constant dense<0.000000e+00> : vector<8x64xf32>
    %29 = tpu.matmul %28, %12, %cst_11 {dimension_numbers = #tpu.dot_dimension_numbers<[1], [0], [0], [1], [0, 0, 1, 1], [], []>} : vector<8x8xf32>, vector<8x64xf32>, vector<8x64xf32> -> vector<8x64xf32>
    %c0_12 = arith.constant 0 : index
    %c0_13 = arith.constant 0 : index
    %30 = vector.load %arg16[%c0_12, %c0_13] : memref<16x128xf32, #tpu.memory_space<vmem>>, vector<8x64xf32>
    tpu.vector_store %arg16[%c0_12, %c0_13], %29 {strides = array<i32>} : memref<16x128xf32, #tpu.memory_space<vmem>>, vector<8x64xf32>,
    %31 = vector.extract_strided_slice %6 {offsets = [0, 64], sizes = [8, 64], strides = [1, 1]} : vector<16x384xf32> to vector<8x64xf32>
    %32 = vector.extract_strided_slice %6 {offsets = [0, 192], sizes = [8, 64], strides = [1, 1]} : vector<16x384xf32> to vector<8x64xf32>
    %33 = vector.extract_strided_slice %6 {offsets = [0, 320], sizes = [8, 64], strides = [1, 1]} : vector<16x384xf32> to vector<8x64xf32>
    %34 = tpu.transpose %32, [1, 0] : vector<8x64xf32> -> vector<64x8xf32>
    %cst_14 = arith.constant dense<0.000000e+00> : vector<8x8xf32>
    %35 = tpu.matmul %31, %34, %cst_14 {dimension_numbers = #tpu.dot_dimension_numbers<[1], [0], [0], [1], [0, 0, 1, 1], [], []>} : vector<8x64xf32>, vector<64x8xf32>, vector<8x8xf32> -> vector<8x8xf32>
    %cst_15 = arith.constant 1.250000e-01 : f32
    %36 = vector.broadcast %cst_15 : f32 to vector<8x8xf32>
    %37 = arith.mulf %35, %36 : vector<8x8xf32>
    %38 = vector.broadcast %9 : vector<1x8xf32> to vector<8x8xf32>
    %39 = arith.addf %37, %38 : vector<8x8xf32>
    %cst_16 = arith.constant dense<0xFF800000> : vector<8xf32>
    %40 = vector.multi_reduction <maximumf>, %39, %cst_16 [1] : vector<8x8xf32> to vector<8xf32>
    %41 = vector.shape_cast %40 : vector<8xf32> to vector<8x1xf32>
    %42 = vector.broadcast %41 : vector<8x1xf32> to vector<8x8xf32>
    %43 = arith.subf %39, %42 : vector<8x8xf32>
    %44 = math.exp %43 : vector<8x8xf32>
    %cst_17 = arith.constant dense<0.000000e+00> : vector<8xf32>
    %45 = vector.multi_reduction <add>, %44, %cst_17 [1] : vector<8x8xf32> to vector<8xf32>
    %46 = vector.shape_cast %45 : vector<8xf32> to vector<8x1xf32>
    %47 = tpu.reciprocal %46 {approx = true} : vector<8x1xf32> -> vector<8x1xf32>
    %48 = vector.broadcast %47 : vector<8x1xf32> to vector<8x8xf32>
    %49 = arith.mulf %44, %48 : vector<8x8xf32>
    %cst_18 = arith.constant dense<0.000000e+00> : vector<8x64xf32>
    %50 = tpu.matmul %49, %33, %cst_18 {dimension_numbers = #tpu.dot_dimension_numbers<[1], [0], [0], [1], [0, 0, 1, 1], [], []>} : vector<8x8xf32>, vector<8x64xf32>, vector<8x64xf32> -> vector<8x64xf32>
    %c0_19 = arith.constant 0 : index
    %c64 = arith.constant 64 : index
    %51 = vector.load %arg16[%c0_19, %c64] : memref<16x128xf32, #tpu.memory_space<vmem>>, vector<8x64xf32>
    tpu.vector_store %arg16[%c0_19, %c64], %50 {strides = array<i32>} : memref<16x128xf32, #tpu.memory_space<vmem>>, vector<8x64xf32>,
    %52 = vector.extract_strided_slice %1 {offsets = [1, 0], sizes = [1, 8], strides = [1, 1]} : vector<2x8xf32> to vector<1x8xf32>
    %53 = vector.shape_cast %52 : vector<1x8xf32> to vector<8xf32>
    %54 = vector.shape_cast %53 : vector<8xf32> to vector<1x8xf32>
    %55 = vector.extract_strided_slice %6 {offsets = [8, 0], sizes = [8, 64], strides = [1, 1]} : vector<16x384xf32> to vector<8x64xf32>
    %56 = vector.extract_strided_slice %6 {offsets = [8, 128], sizes = [8, 64], strides = [1, 1]} : vector<16x384xf32> to vector<8x64xf32>
    %57 = vector.extract_strided_slice %6 {offsets = [8, 256], sizes = [8, 64], strides = [1, 1]} : vector<16x384xf32> to vector<8x64xf32>
    %58 = tpu.transpose %56, [1, 0] : vector<8x64xf32> -> vector<64x8xf32>
    %cst_20 = arith.constant dense<0.000000e+00> : vector<8x8xf32>
    %59 = tpu.matmul %55, %58, %cst_20 {dimension_numbers = #tpu.dot_dimension_numbers<[1], [0], [0], [1], [0, 0, 1, 1], [], []>} : vector<8x64xf32>, vector<64x8xf32>, vector<8x8xf32> -> vector<8x8xf32>
    %cst_21 = arith.constant 1.250000e-01 : f32
    %60 = vector.broadcast %cst_21 : f32 to vector<8x8xf32>
    %61 = arith.mulf %59, %60 : vector<8x8xf32>
    %62 = vector.broadcast %54 : vector<1x8xf32> to vector<8x8xf32>
    %63 = arith.addf %61, %62 : vector<8x8xf32>
    %cst_22 = arith.constant dense<0xFF800000> : vector<8xf32>
    %64 = vector.multi_reduction <maximumf>, %63, %cst_22 [1] : vector<8x8xf32> to vector<8xf32>
    %65 = vector.shape_cast %64 : vector<8xf32> to vector<8x1xf32>
    %66 = vector.broadcast %65 : vector<8x1xf32> to vector<8x8xf32>
    %67 = arith.subf %63, %66 : vector<8x8xf32>
    %68 = math.exp %67 : vector<8x8xf32>
    %cst_23 = arith.constant dense<0.000000e+00> : vector<8xf32>
    %69 = vector.multi_reduction <add>, %68, %cst_23 [1] : vector<8x8xf32> to vector<8xf32>
    %70 = vector.shape_cast %69 : vector<8xf32> to vector<8x1xf32>
    %71 = tpu.reciprocal %70 {approx = true} : vector<8x1xf32> -> vector<8x1xf32>
    %72 = vector.broadcast %71 : vector<8x1xf32> to vector<8x8xf32>
    %73 = arith.mulf %68, %72 : vector<8x8xf32>
    %cst_24 = arith.constant dense<0.000000e+00> : vector<8x64xf32>
    %74 = tpu.matmul %73, %57, %cst_24 {dimension_numbers = #tpu.dot_dimension_numbers<[1], [0], [0], [1], [0, 0, 1, 1], [], []>} : vector<8x8xf32>, vector<8x64xf32>, vector<8x64xf32> -> vector<8x64xf32>
    %c8 = arith.constant 8 : index
    %c0_25 = arith.constant 0 : index
    %75 = vector.load %arg16[%c8, %c0_25] : memref<16x128xf32, #tpu.memory_space<vmem>>, vector<8x64xf32>
    tpu.vector_store %arg16[%c8, %c0_25], %74 {strides = array<i32>} : memref<16x128xf32, #tpu.memory_space<vmem>>, vector<8x64xf32>,
    %76 = vector.extract_strided_slice %6 {offsets = [8, 64], sizes = [8, 64], strides = [1, 1]} : vector<16x384xf32> to vector<8x64xf32>
    %77 = vector.extract_strided_slice %6 {offsets = [8, 192], sizes = [8, 64], strides = [1, 1]} : vector<16x384xf32> to vector<8x64xf32>
    %78 = vector.extract_strided_slice %6 {offsets = [8, 320], sizes = [8, 64], strides = [1, 1]} : vector<16x384xf32> to vector<8x64xf32>
    %79 = tpu.transpose %77, [1, 0] : vector<8x64xf32> -> vector<64x8xf32>
    %cst_26 = arith.constant dense<0.000000e+00> : vector<8x8xf32>
    %80 = tpu.matmul %76, %79, %cst_26 {dimension_numbers = #tpu.dot_dimension_numbers<[1], [0], [0], [1], [0, 0, 1, 1], [], []>} : vector<8x64xf32>, vector<64x8xf32>, vector<8x8xf32> -> vector<8x8xf32>
    %cst_27 = arith.constant 1.250000e-01 : f32
    %81 = vector.broadcast %cst_27 : f32 to vector<8x8xf32>
    %82 = arith.mulf %80, %81 : vector<8x8xf32>
    %83 = vector.broadcast %54 : vector<1x8xf32> to vector<8x8xf32>
    %84 = arith.addf %82, %83 : vector<8x8xf32>
    %cst_28 = arith.constant dense<0xFF800000> : vector<8xf32>
    %85 = vector.multi_reduction <maximumf>, %84, %cst_28 [1] : vector<8x8xf32> to vector<8xf32>
    %86 = vector.shape_cast %85 : vector<8xf32> to vector<8x1xf32>
    %87 = vector.broadcast %86 : vector<8x1xf32> to vector<8x8xf32>
    %88 = arith.subf %84, %87 : vector<8x8xf32>
    %89 = math.exp %88 : vector<8x8xf32>
    %cst_29 = arith.constant dense<0.000000e+00> : vector<8xf32>
    %90 = vector.multi_reduction <add>, %89, %cst_29 [1] : vector<8x8xf32> to vector<8xf32>
    %91 = vector.shape_cast %90 : vector<8xf32> to vector<8x1xf32>
    %92 = tpu.reciprocal %91 {approx = true} : vector<8x1xf32> -> vector<8x1xf32>
    %93 = vector.broadcast %92 : vector<8x1xf32> to vector<8x8xf32>
    %94 = arith.mulf %89, %93 : vector<8x8xf32>
    %cst_30 = arith.constant dense<0.000000e+00> : vector<8x64xf32>
    %95 = tpu.matmul %94, %78, %cst_30 {dimension_numbers = #tpu.dot_dimension_numbers<[1], [0], [0], [1], [0, 0, 1, 1], [], []>} : vector<8x8xf32>, vector<8x64xf32>, vector<8x64xf32> -> vector<8x64xf32>
    %c8_31 = arith.constant 8 : index
    %c64_32 = arith.constant 64 : index
    %96 = vector.load %arg16[%c8_31, %c64_32] : memref<16x128xf32, #tpu.memory_space<vmem>>, vector<8x64xf32>
    tpu.vector_store %arg16[%c8_31, %c64_32], %95 {strides = array<i32>} : memref<16x128xf32, #tpu.memory_space<vmem>>, vector<8x64xf32>,
    %c0_33 = arith.constant 0 : index
    %c0_34 = arith.constant 0 : index
    %97 = vector.load %arg16[%c0_33, %c0_34] : memref<16x128xf32, #tpu.memory_space<vmem>>, vector<16x128xf32>
    %c0_35 = arith.constant 0 : index
    %c0_36 = arith.constant 0 : index
    %98 = vector.load %arg5[%c0_35, %c0_36] : memref<128x128xf32, #tpu.memory_space<vmem>>, vector<128x128xf32>
    %cst_37 = arith.constant dense<0.000000e+00> : vector<16x128xf32>
    %99 = tpu.matmul %97, %98, %cst_37 {dimension_numbers = #tpu.dot_dimension_numbers<[1], [0], [0], [1], [0, 0, 1, 1], [], []>} : vector<16x128xf32>, vector<128x128xf32>, vector<16x128xf32> -> vector<16x128xf32>
    %c0_38 = arith.constant 0 : index
    %c0_39 = arith.constant 0 : index
    %100 = vector.load %arg6[%c0_38, %c0_39] : memref<1x128xf32, #tpu.memory_space<vmem>>, vector<1x128xf32>
    %101 = vector.broadcast %100 : vector<1x128xf32> to vector<16x128xf32>
    %102 = arith.addf %99, %101 : vector<16x128xf32>
    %103 = arith.addf %0, %102 : vector<16x128xf32>
    %c0_40 = arith.constant 0 : index
    %c0_41 = arith.constant 0 : index
    %104 = vector.load %arg7[%c0_40, %c0_41] : memref<1x128xf32, #tpu.memory_space<vmem>>, vector<1x128xf32>
    %c0_42 = arith.constant 0 : index
    %c0_43 = arith.constant 0 : index
    %105 = vector.load %arg8[%c0_42, %c0_43] : memref<1x128xf32, #tpu.memory_space<vmem>>, vector<1x128xf32>
    %cst_44 = arith.constant dense<0.000000e+00> : vector<16xf32>
    %106 = vector.multi_reduction <add>, %103, %cst_44 [1] : vector<16x128xf32> to vector<16xf32>
    %107 = vector.shape_cast %106 : vector<16xf32> to vector<16x1xf32>
    %cst_45 = arith.constant 1.280000e+02 : f32
    %108 = vector.broadcast %cst_45 : f32 to vector<16x1xf32>
    %109 = arith.divf %107, %108 : vector<16x1xf32>
    %110 = vector.broadcast %109 : vector<16x1xf32> to vector<16x128xf32>
    %111 = arith.subf %103, %110 : vector<16x128xf32>
    %112 = vector.broadcast %109 : vector<16x1xf32> to vector<16x128xf32>
    %113 = arith.subf %103, %112 : vector<16x128xf32>
    %114 = arith.mulf %111, %113 : vector<16x128xf32>
    %cst_46 = arith.constant dense<0.000000e+00> : vector<16xf32>
    %115 = vector.multi_reduction <add>, %114, %cst_46 [1] : vector<16x128xf32> to vector<16xf32>
    %116 = vector.shape_cast %115 : vector<16xf32> to vector<16x1xf32>
    %cst_47 = arith.constant 1.280000e+02 : f32
    %117 = vector.broadcast %cst_47 : f32 to vector<16x1xf32>
    %118 = arith.divf %116, %117 : vector<16x1xf32>
    %119 = vector.broadcast %109 : vector<16x1xf32> to vector<16x128xf32>
    %120 = arith.subf %103, %119 : vector<16x128xf32>
    %cst_48 = arith.constant 9.99999996E-13 : f32
    %121 = vector.broadcast %cst_48 : f32 to vector<16x1xf32>
    %122 = arith.addf %118, %121 : vector<16x1xf32>
    %123 = math.rsqrt %122 : vector<16x1xf32>
    %124 = vector.broadcast %123 : vector<16x1xf32> to vector<16x128xf32>
    %125 = arith.mulf %120, %124 : vector<16x128xf32>
    %126 = vector.broadcast %104 : vector<1x128xf32> to vector<16x128xf32>
    %127 = arith.mulf %125, %126 : vector<16x128xf32>
    %128 = vector.broadcast %105 : vector<1x128xf32> to vector<16x128xf32>
    %129 = arith.addf %127, %128 : vector<16x128xf32>
    %c0_49 = arith.constant 0 : index
    %c0_50 = arith.constant 0 : index
    %130 = vector.load %arg9[%c0_49, %c0_50] : memref<128x256xf32, #tpu.memory_space<vmem>>, vector<128x256xf32>
    %cst_51 = arith.constant dense<0.000000e+00> : vector<16x256xf32>
    %131 = tpu.matmul %129, %130, %cst_51 {dimension_numbers = #tpu.dot_dimension_numbers<[1], [0], [0], [1], [0, 0, 1, 1], [], []>} : vector<16x128xf32>, vector<128x256xf32>, vector<16x256xf32> -> vector<16x256xf32>
    %c0_52 = arith.constant 0 : index
    %c0_53 = arith.constant 0 : index
    %132 = vector.load %arg10[%c0_52, %c0_53] : memref<1x256xf32, #tpu.memory_space<vmem>>, vector<1x256xf32>
    %133 = vector.broadcast %132 : vector<1x256xf32> to vector<16x256xf32>
    %134 = arith.addf %131, %133 : vector<16x256xf32>
    %cst_54 = arith.constant 5.000000e-01 : f32
    %135 = vector.broadcast %cst_54 : f32 to vector<16x256xf32>
    %136 = arith.mulf %135, %134 : vector<16x256xf32>
    %cst_55 = arith.constant 4.471500e-02 : f32
    %137 = vector.broadcast %cst_55 : f32 to vector<16x256xf32>
    %138 = arith.mulf %137, %134 : vector<16x256xf32>
    %139 = arith.mulf %138, %134 : vector<16x256xf32>
    %140 = arith.mulf %139, %134 : vector<16x256xf32>
    %141 = arith.addf %134, %140 : vector<16x256xf32>
    %cst_56 = arith.constant 0.797884583 : f32
    %142 = vector.broadcast %cst_56 : f32 to vector<16x256xf32>
    %143 = arith.mulf %142, %141 : vector<16x256xf32>
    %144 = math.tanh %143 : vector<16x256xf32>
    %cst_57 = arith.constant 1.000000e+00 : f32
    %145 = vector.broadcast %cst_57 : f32 to vector<16x256xf32>
    %146 = arith.addf %145, %144 : vector<16x256xf32>
    %147 = arith.mulf %136, %146 : vector<16x256xf32>
    %c0_58 = arith.constant 0 : index
    %c0_59 = arith.constant 0 : index
    %148 = vector.load %arg11[%c0_58, %c0_59] : memref<256x128xf32, #tpu.memory_space<vmem>>, vector<256x128xf32>
    %cst_60 = arith.constant dense<0.000000e+00> : vector<16x128xf32>
    %149 = tpu.matmul %147, %148, %cst_60 {dimension_numbers = #tpu.dot_dimension_numbers<[1], [0], [0], [1], [0, 0, 1, 1], [], []>} : vector<16x256xf32>, vector<256x128xf32>, vector<16x128xf32> -> vector<16x128xf32>
    %c0_61 = arith.constant 0 : index
    %c0_62 = arith.constant 0 : index
    %150 = vector.load %arg12[%c0_61, %c0_62] : memref<1x128xf32, #tpu.memory_space<vmem>>, vector<1x128xf32>
    %151 = vector.broadcast %150 : vector<1x128xf32> to vector<16x128xf32>
    %152 = arith.addf %149, %151 : vector<16x128xf32>
    %153 = arith.addf %129, %152 : vector<16x128xf32>
    %c0_63 = arith.constant 0 : index
    %c0_64 = arith.constant 0 : index
    %154 = vector.load %arg13[%c0_63, %c0_64] : memref<1x128xf32, #tpu.memory_space<vmem>>, vector<1x128xf32>
    %c0_65 = arith.constant 0 : index
    %c0_66 = arith.constant 0 : index
    %155 = vector.load %arg14[%c0_65, %c0_66] : memref<1x128xf32, #tpu.memory_space<vmem>>, vector<1x128xf32>
    %cst_67 = arith.constant dense<0.000000e+00> : vector<16xf32>
    %156 = vector.multi_reduction <add>, %153, %cst_67 [1] : vector<16x128xf32> to vector<16xf32>
    %157 = vector.shape_cast %156 : vector<16xf32> to vector<16x1xf32>
    %cst_68 = arith.constant 1.280000e+02 : f32
    %158 = vector.broadcast %cst_68 : f32 to vector<16x1xf32>
    %159 = arith.divf %157, %158 : vector<16x1xf32>
    %160 = vector.broadcast %159 : vector<16x1xf32> to vector<16x128xf32>
    %161 = arith.subf %153, %160 : vector<16x128xf32>
    %162 = vector.broadcast %159 : vector<16x1xf32> to vector<16x128xf32>
    %163 = arith.subf %153, %162 : vector<16x128xf32>
    %164 = arith.mulf %161, %163 : vector<16x128xf32>
    %cst_69 = arith.constant dense<0.000000e+00> : vector<16xf32>
    %165 = vector.multi_reduction <add>, %164, %cst_69 [1] : vector<16x128xf32> to vector<16xf32>
    %166 = vector.shape_cast %165 : vector<16xf32> to vector<16x1xf32>
    %cst_70 = arith.constant 1.280000e+02 : f32
    %167 = vector.broadcast %cst_70 : f32 to vector<16x1xf32>
    %168 = arith.divf %166, %167 : vector<16x1xf32>
    %169 = vector.broadcast %159 : vector<16x1xf32> to vector<16x128xf32>
    %170 = arith.subf %153, %169 : vector<16x128xf32>
    %cst_71 = arith.constant 9.99999996E-13 : f32
    %171 = vector.broadcast %cst_71 : f32 to vector<16x1xf32>
    %172 = arith.addf %168, %171 : vector<16x1xf32>
    %173 = math.rsqrt %172 : vector<16x1xf32>
    %174 = vector.broadcast %173 : vector<16x1xf32> to vector<16x128xf32>
    %175 = arith.mulf %170, %174 : vector<16x128xf32>
    %176 = vector.broadcast %154 : vector<1x128xf32> to vector<16x128xf32>
    %177 = arith.mulf %175, %176 : vector<16x128xf32>
    %178 = vector.broadcast %155 : vector<1x128xf32> to vector<16x128xf32>
    %179 = arith.addf %177, %178 : vector<16x128xf32>
    %c0_72 = arith.constant 0 : index
    %c0_73 = arith.constant 0 : index
    %180 = vector.load %arg15[%c0_72, %c0_73] : memref<16x128xf32, #tpu.memory_space<vmem>>, vector<16x128xf32>
    tpu.vector_store %arg15[%c0_72, %c0_73], %179 {strides = array<i32>} : memref<16x128xf32, #tpu.memory_space<vmem>>, vector<16x128xf32>,
    return
  }
  func.func @transform_0(%arg0: i32) -> (i32, i32) {
    %c0_i32 = arith.constant 0 : i32
    %c0_i32_0 = arith.constant 0 : i32
    %c0_i32_1 = arith.constant 0 : i32
    return %c0_i32, %c0_i32_0 : i32, i32
  }
  func.func @transform_1(%arg0: i32) -> (i32, i32) {
    %c0_i32 = arith.constant 0 : i32
    %c0_i32_0 = arith.constant 0 : i32
    %c0_i32_1 = arith.constant 0 : i32
    return %c0_i32, %c0_i32_0 : i32, i32
  }
  func.func @transform_2(%arg0: i32) -> (i32, i32) {
    %c0_i32 = arith.constant 0 : i32
    %c0_i32_0 = arith.constant 0 : i32
    %c0_i32_1 = arith.constant 0 : i32
    return %c0_i32, %c0_i32_0 : i32, i32
  }
  func.func @transform_3(%arg0: i32) -> (i32, i32) {
    %c0_i32 = arith.constant 0 : i32
    %c0_i32_0 = arith.constant 0 : i32
    %c0_i32_1 = arith.constant 0 : i32
    return %c0_i32, %c0_i32_0 : i32, i32
  }
  func.func @transform_4(%arg0: i32) -> (i32, i32) {
    %c0_i32 = arith.constant 0 : i32
    %c0_i32_0 = arith.constant 0 : i32
    %c0_i32_1 = arith.constant 0 : i32
    return %c0_i32, %c0_i32_0 : i32, i32
  }
  func.func @transform_5(%arg0: i32) -> (i32, i32) {
    %c0_i32 = arith.constant 0 : i32
    %c0_i32_0 = arith.constant 0 : i32
    %c0_i32_1 = arith.constant 0 : i32
    return %c0_i32, %c0_i32_0 : i32, i32
  }
  func.func @transform_6(%arg0: i32) -> (i32, i32) {
    %c0_i32 = arith.constant 0 : i32
    %c0_i32_0 = arith.constant 0 : i32
    %c0_i32_1 = arith.constant 0 : i32
    return %c0_i32, %c0_i32_0 : i32, i32
  }
  func.func @transform_7(%arg0: i32) -> (i32, i32) {
    %c0_i32 = arith.constant 0 : i32
    %c0_i32_0 = arith.constant 0 : i32
    %c0_i32_1 = arith.constant 0 : i32
    return %c0_i32, %c0_i32_0 : i32, i32
  }
  func.func @transform_8(%arg0: i32) -> (i32, i32) {
    %c0_i32 = arith.constant 0 : i32
    %c0_i32_0 = arith.constant 0 : i32
    %c0_i32_1 = arith.constant 0 : i32
    return %c0_i32, %c0_i32_0 : i32, i32
  }
  func.func @transform_9(%arg0: i32) -> (i32, i32) {
    %c0_i32 = arith.constant 0 : i32
    %c0_i32_0 = arith.constant 0 : i32
    %c0_i32_1 = arith.constant 0 : i32
    return %c0_i32, %c0_i32_0 : i32, i32
  }
  func.func @transform_10(%arg0: i32) -> (i32, i32) {
    %c0_i32 = arith.constant 0 : i32
    %c0_i32_0 = arith.constant 0 : i32
    %c0_i32_1 = arith.constant 0 : i32
    return %c0_i32, %c0_i32_0 : i32, i32
  }
  func.func @transform_11(%arg0: i32) -> (i32, i32) {
    %c0_i32 = arith.constant 0 : i32
    %c0_i32_0 = arith.constant 0 : i32
    %c0_i32_1 = arith.constant 0 : i32
    return %c0_i32, %c0_i32_0 : i32, i32
  }
  func.func @transform_12(%arg0: i32) -> (i32, i32) {
    %c0_i32 = arith.constant 0 : i32
    %c0_i32_0 = arith.constant 0 : i32
    %c0_i32_1 = arith.constant 0 : i32
    return %c0_i32, %c0_i32_0 : i32, i32
  }
  func.func @transform_13(%arg0: i32) -> (i32, i32) {
    %c0_i32 = arith.constant 0 : i32
    %c0_i32_0 = arith.constant 0 : i32
    %c0_i32_1 = arith.constant 0 : i32
    return %c0_i32, %c0_i32_0 : i32, i32
  }
  func.func @transform_14(%arg0: i32) -> (i32, i32) {
    %c0_i32 = arith.constant 0 : i32
    %c0_i32_0 = arith.constant 0 : i32
    %c0_i32_1 = arith.constant 0 : i32
    return %c0_i32, %c0_i32_0 : i32, i32
  }
}

</mosaic_0001>

<llo_original>
// kernel: bert_encoder_forward.4
$region0: #{bert_encoder_forward.4}
  #allocation0 [shape = 'u32[]', space=smem, size = 0x4, offset = 0x4, fixed_abs, tag = 'smem constant byte address 0x4 - core index']
  #allocation1 [shape = 'u32[72,128]{1,0:T(1,128)}', space=vmem, size = 0x9000, scoped, tag = 'internal scratch']
  %s0 = inlined_call_operand.vmem [shape: f32[16,128], index: 0, kind: input, shape index: {}]
  %s1 = inlined_call_operand.vmem [shape: f32[1,128], index: 1, kind: input, shape index: {}]
  %s2 = inlined_call_operand.vmem [shape: f32[1,128], index: 2, kind: input, shape index: {}]
  %s3 = inlined_call_operand.vmem [shape: f32[16,128], index: 3, kind: output, shape index: {}]
  %s4 = sld [smem:[#allocation0]]
  $region22: #{bert_encoder_forward.4} parent=0
    _
  %s6 = ssub.s32 1, %s4
  %s7 = scalar_select 0, %s6, %s4
  // Predicated region
  $region2: #{bert_encoder_forward.4} parent=0 // pred_check
    _
  $region3: #{bert_encoder_forward.4} parent=0 // pred_check_branch
    %9 = sbr.rel (0) target = $region5
  $region4: #{bert_encoder_forward.4} parent=0 // pred_region
    _
  $region5: #{bert_encoder_forward.4} parent=0 // pred_fallthru
    _
  // Predicated region
  $region6: #{bert_encoder_forward.4} parent=0 // pred_check
    _
  $region7: #{bert_encoder_forward.4} parent=0 // pred_check_branch
    %11 = sbr.rel (0) target = $region9
  $region8: #{bert_encoder_forward.4} parent=0 // pred_region
    _
  $region9: #{bert_encoder_forward.4} parent=0 // pred_fallthru
    _
  // Predicated region
  $region10: #{bert_encoder_forward.4} parent=0 // pred_check
    _
  $region11: #{bert_encoder_forward.4} parent=0 // pred_check_branch
    %13 = sbr.rel (0) target = $region13
  $region12: #{bert_encoder_forward.4} parent=0 // pred_region
    _
  $region13: #{bert_encoder_forward.4} parent=0 // pred_fallthru
    _
  %v14 = vld [vmem:[%s0] sm:$0xff]
  %v15 = vld [vmem:[%s0 + $0x8] sm:$0xff]
  %v16 = vld [vmem:[%s1] sm:$0x1]
  %v17 = vld [vmem:[%s2] sm:$0x1]
  %18 = vadd.xlane.f32.xlu0 %v14
  %v19 = vpop.xlane.xlu0 %18
  %20 = vadd.xlane.f32.xlu0 %v15
  %v21 = vpop.xlane.xlu0 %20
  %v22 = vrcp.pop 128.0
  %v23 = vmul.f32 128.0, %v22
  %v24 = vsub.f32 1.0, %v23
  %v25 = vmul.f32 %v22, %v24
  %v26 = vadd.f32 %v22, %v25
  %vm27 = vweird.f32 %v22
  %v28 = vsel %vm27, %v22, %v26
  %v29 = vmul.f32 %v19, %v28
  %v30 = vmul.f32 %v21, %v28
  %v31 = vsub.f32 %v14, %v29
  %v32 = vsub.f32 %v15, %v30
  %v33 = vmul.f32 %v31, %v31
  %v34 = vmul.f32 %v32, %v32
  %35 = vadd.xlane.f32.xlu0 %v33
  %v36 = vpop.xlane.xlu0 %35
  %37 = vadd.xlane.f32.xlu0 %v34
  %v38 = vpop.xlane.xlu0 %37
  %v39 = vmul.f32 %v36, %v28
  %v40 = vmul.f32 %v38, %v28
  %v41 = vadd.f32 %v39, 1e-12
  %v42 = vadd.f32 %v40, 1e-12
  %v43 = vrsqrt.pop %v41
  %v44 = vmul.f32 %v43, %v41
  %v45 = vmul.f32 %v44, %v43
  %v46 = vmul.f32 0.5, %v45
  %v47 = vsub.f32 1.5, %v46
  %v48 = vmul.f32 %v43, %v47
  %vm49 = vweird.f32 %v41
  %vm50 = vweird.f32 %v43
  %vm51 = vmor %vm49, %vm50
  %v52 = vsel %vm51, %v43, %v48
  %v53 = vrsqrt.pop %v42
  %v54 = vmul.f32 %v53, %v42
  %v55 = vmul.f32 %v54, %v53
  %v56 = vmul.f32 0.5, %v55
  %v57 = vsub.f32 1.5, %v56
  %v58 = vmul.f32 %v53, %v57
  %vm59 = vweird.f32 %v42
  %vm60 = vweird.f32 %v53
  %vm61 = vmor %vm59, %vm60
  %v62 = vsel %vm61, %v53, %v58
  %v63 = vmul.f32 %v31, %v52
  %v64 = vmul.f32 %v32, %v62
  %v66 = vperm.slane %v16, 0
  %v68 = vmul.f32 %v63, %v66
  %v69 = vmul.f32 %v64, %v66
  %v71 = vperm.slane %v17, 0
  %v73 = vadd.f32 %v68, %v71
  %v74 = vadd.f32 %v69, %v71
  %75 = vst [vmem:[%s3] sm:$0xff] %v73
  %76 = vst [vmem:[%s3 + $0x8] sm:$0xff] %v74
  // Predicated region
  $region14: #{bert_encoder_forward.4} parent=0 // pred_check
    _
  $region15: #{bert_encoder_forward.4} parent=0 // pred_check_branch
    %78 = sbr.rel (0) target = $region17
  $region16: #{bert_encoder_forward.4} parent=0 // pred_region
    _
  $region17: #{bert_encoder_forward.4} parent=0 // pred_fallthru
    _
  // Predicated region
  $region18: #{bert_encoder_forward.4} parent=0 // pred_check
    _
  $region19: #{bert_encoder_forward.4} parent=0 // pred_check_branch
    %80 = sbr.rel (0) target = $region21
  $region20: #{bert_encoder_forward.4} parent=0 // pred_region
    _
  $region21: #{bert_encoder_forward.4} parent=0 // pred_fallthru
    _

// kernel: bert_encoder_forward.7
$region0: #{bert_encoder_forward.7}
  #allocation0 [shape = 'u32[]', space=smem, size = 0x4, offset = 0x4, fixed_abs, tag = 'smem constant byte address 0x4 - core index']
  #allocation1 [shape = 'u32[72,128]{1,0:T(1,128)}', space=vmem, size = 0x9000, scoped, tag = 'internal scratch']
  %s0 = inlined_call_operand.vmem [shape: f32[16,128], index: 0, kind: input, shape index: {}]
  %s1 = inlined_call_operand.hbm [shape: f32[128,128], index: 1, kind: input, shape index: {}]
  %s2 = inlined_call_operand.vmem [shape: f32[1,128], index: 2, kind: input, shape index: {}]
  %s3 = inlined_call_operand.hbm [shape: f32[128,128], index: 3, kind: input, shape index: {}]
  %s4 = inlined_call_operand.vmem [shape: f32[1,128], index: 4, kind: input, shape index: {}]
  %s5 = inlined_call_operand.vmem [shape: f32[16,128], index: 5, kind: output, shape index: {}]
  %s6 = sld [smem:[#allocation0]]
  $region38: #{bert_encoder_forward.7} parent=0
    _
  %s8 = ssub.s32 1, %s6
  %s9 = scalar_select 0, %s8, %s6
  $region1: #{bert_encoder_forward.7} parent=0
    #allocation2 [shape = 'u8[65536]{0}', space=vmem, size = 0x10000, scoped, tag = 'input window, operand 1, single buffered']
    #allocation3 [shape = 's32[1]{0}', space=sflag, size = 0x4, scoped, tag = 'scoped memory for bert_encoder_forward.7']
    #allocation4 [shape = 'u8[65536]{0}', space=vmem, size = 0x10000, scoped, tag = 'input window, operand 3, single buffered']
    #allocation5 [shape = 's32[1]{0}', space=sflag, size = 0x4, scoped, tag = 'scoped memory for bert_encoder_forward.7']
    %10 = vsyncpa [#allocation3], 0
    %11 = vsyncpa [#allocation5], 0
    // Predicated region
    $region2: #{bert_encoder_forward.7} parent=1 // pred_check
      _
    $region3: #{bert_encoder_forward.7} parent=1 // pred_check_branch
      %13 = sbr.rel (0) target = $region5
    $region4: #{bert_encoder_forward.7} parent=1 // pred_region
      _
    $region5: #{bert_encoder_forward.7} parent=1 // pred_fallthru
      _
    // Predicated region
    $region6: #{bert_encoder_forward.7} parent=1 // pred_check
      _
    $region7: #{bert_encoder_forward.7} parent=1 // pred_check_branch
      %15 = sbr.rel (0) target = $region9
    $region8: #{bert_encoder_forward.7} parent=1 // pred_region
      %17 = vsyncadd [#allocation3], 0
      %s18 = sshll.u32 %s1, 4
      %s19 = int_to_ptr.hbm [resolvable:$true] %s18
      %s20 = sshll.u32 [#allocation2], 4
      %s21 = int_to_ptr.vmem [resolvable:$true] %s20
      %26 = dma.hbm_to_vmem [thread:$0]  %s19, 2048, %s21, [#allocation3], 128, 128, 8
    $region9: #{bert_encoder_forward.7} parent=1 // pred_fallthru
      _
    // Predicated region
    $region10: #{bert_encoder_forward.7} parent=1 // pred_check
      _
    $region11: #{bert_encoder_forward.7} parent=1 // pred_check_branch
      %28 = sbr.rel (0) target = $region13
    $region12: #{bert_encoder_forward.7} parent=1 // pred_region
      _
    $region13: #{bert_encoder_forward.7} parent=1 // pred_fallthru
      _
    // Predicated region
    $region14: #{bert_encoder_forward.7} parent=1 // pred_check
      _
    $region15: #{bert_encoder_forward.7} parent=1 // pred_check_branch
      %30 = sbr.rel (0) target = $region17
    $region16: #{bert_encoder_forward.7} parent=1 // pred_region
      %32 = vsyncadd [#allocation5], 0
      %s33 = sshll.u32 %s3, 4
      %s34 = int_to_ptr.hbm [resolvable:$true] %s33
      %s35 = sshll.u32 [#allocation4], 4
      %s36 = int_to_ptr.vmem [resolvable:$true] %s35
      %41 = dma.hbm_to_vmem [thread:$0]  %s34, 2048, %s36, [#allocation5], 128, 128, 8
    $region17: #{bert_encoder_forward.7} parent=1 // pred_fallthru
      _
    // Predicated region
    $region18: #{bert_encoder_forward.7} parent=1 // pred_check
      _
    $region19: #{bert_encoder_forward.7} parent=1 // pred_check_branch
      %43 = sbr.rel (0) target = $region21
    $region20: #{bert_encoder_forward.7} parent=1 // pred_region
      _
    $region21: #{bert_encoder_forward.7} parent=1 // pred_fallthru
      _
    // Predicated region
    $region22: #{bert_encoder_forward.7} parent=1 // pred_check
      _
    $region23: #{bert_encoder_forward.7} parent=1 // pred_check_branch
      %45 = sbr.rel (0) target = $region25
    $region24: #{bert_encoder_forward.7} parent=1 // pred_region
      %47 = dma.done [#allocation3], 2048
    $region25: #{bert_encoder_forward.7} parent=1 // pred_fallthru
      _
    // Predicated region
    $region26: #{bert_encoder_forward.7} parent=1 // pred_check
      _
    $region27: #{bert_encoder_forward.7} parent=1 // pred_check_branch
      %49 = sbr.rel (0) target = $region29
    $region28: #{bert_encoder_forward.7} parent=1 // pred_region
      %51 = dma.done [#allocation5], 2048
    $region29: #{bert_encoder_forward.7} parent=1 // pred_fallthru
      _
    %v52 = vld [vmem:[%s0] sm:$0xff]
    %v53 = vld [vmem:[%s0 + $0x8] sm:$0xff]
    %v54 = vld [vmem:[#allocation2] sm:$0xff]
    %v55 = vld [vmem:[#allocation2 + $0x8] sm:$0xff]
    %v56 = vld [vmem:[#allocation2 + $0x10] sm:$0xff]
    %v57 = vld [vmem:[#allocation2 + $0x18] sm:$0xff]
    %v58 = vld [vmem:[#allocation2 + $0x20] sm:$0xff]
    %v59 = vld [vmem:[#allocation2 + $0x28] sm:$0xff]
    %v60 = vld [vmem:[#allocation2 + $0x30] sm:$0xff]
    %v61 = vld [vmem:[#allocation2 + $0x38] sm:$0xff]
    %v62 = vld [vmem:[#allocation2 + $0x40] sm:$0xff]
    %v63 = vld [vmem:[#allocation2 + $0x48] sm:$0xff]
    %v64 = vld [vmem:[#allocation2 + $0x50] sm:$0xff]
    %v65 = vld [vmem:[#allocation2 + $0x58] sm:$0xff]
    %v66 = vld [vmem:[#allocation2 + $0x60] sm:$0xff]
    %v67 = vld [vmem:[#allocation2 + $0x68] sm:$0xff]
    %v68 = vld [vmem:[#allocation2 + $0x70] sm:$0xff]
    %v69 = vld [vmem:[#allocation2 + $0x78] sm:$0xff]
    %v70 = vld [vmem:[%s2] sm:$0x1]
    %v72 = vperm.slane %v70, 0
    %74 = vmatpush.msra.mxu0 %v69
    %75 = vmatpush.msra.mxu0 %v68
    %76 = vmatpush.msra.mxu0 %v67
    %77 = vmatpush.msra.mxu0 %v66
    %78 = vmatpush.msra.mxu0 %v65
    %79 = vmatpush.msra.mxu0 %v64
    %80 = vmatpush.msra.mxu0 %v63
    %81 = vmatpush.msra.mxu0 %v62
    %82 = vmatpush.msra.mxu0 %v61
    %83 = vmatpush.msra.mxu0 %v60
    %84 = vmatpush.msra.mxu0 %v59
    %85 = vmatpush.msra.mxu0 %v58
    %86 = vmatpush.msra.mxu0 %v57
    %87 = vmatpush.msra.mxu0 %v56
    %88 = vmatpush.msra.mxu0 %v55
    %89 = vmatpush.msra.mxu0 %v54
    %90 = vmatmul.f32.gmra.mxu0 %v52
    %v91 = vpop.f32.mrf.mxu0
    %v92 = vadd.f32 %v72, %v91
    %93 = vmatmul.f32.gmra.mxu0 %v53
    %v94 = vpop.f32.mrf.mxu0
    %v95 = vadd.f32 %v72, %v94
    %96 = vdwg.mxu0
    %v97 = vtanh.pop %v92
    %v98 = vtanh.pop %v95
    %v99 = vld [vmem:[#allocation4] sm:$0xff]
    %v100 = vld [vmem:[#allocation4 + $0x8] sm:$0xff]
    %v101 = vld [vmem:[#allocation4 + $0x10] sm:$0xff]
    %v102 = vld [vmem:[#allocation4 + $0x18] sm:$0xff]
    %v103 = vld [vmem:[#allocation4 + $0x20] sm:$0xff]
    %v104 = vld [vmem:[#allocation4 + $0x28] sm:$0xff]
    %v105 = vld [vmem:[#allocation4 + $0x30] sm:$0xff]
    %v106 = vld [vmem:[#allocation4 + $0x38] sm:$0xff]
    %v107 = vld [vmem:[#allocation4 + $0x40] sm:$0xff]
    %v108 = vld [vmem:[#allocation4 + $0x48] sm:$0xff]
    %v109 = vld [vmem:[#allocation4 + $0x50] sm:$0xff]
    %v110 = vld [vmem:[#allocation4 + $0x58] sm:$0xff]
    %v111 = vld [vmem:[#allocation4 + $0x60] sm:$0xff]
    %v112 = vld [vmem:[#allocation4 + $0x68] sm:$0xff]
    %v113 = vld [vmem:[#allocation4 + $0x70] sm:$0xff]
    %v114 = vld [vmem:[#allocation4 + $0x78] sm:$0xff]
    %v115 = vld [vmem:[%s4] sm:$0x1]
    %v117 = vperm.slane %v115, 0
    %119 = vmatpush.msra.mxu0 %v114
    %120 = vmatpush.msra.mxu0 %v113
    %121 = vmatpush.msra.mxu0 %v112
    %122 = vmatpush.msra.mxu0 %v111
    %123 = vmatpush.msra.mxu0 %v110
    %124 = vmatpush.msra.mxu0 %v109
    %125 = vmatpush.msra.mxu0 %v108
    %126 = vmatpush.msra.mxu0 %v107
    %127 = vmatpush.msra.mxu0 %v106
    %128 = vmatpush.msra.mxu0 %v105
    %129 = vmatpush.msra.mxu0 %v104
    %130 = vmatpush.msra.mxu0 %v103
    %131 = vmatpush.msra.mxu0 %v102
    %132 = vmatpush.msra.mxu0 %v101
    %133 = vmatpush.msra.mxu0 %v100
    %134 = vmatpush.msra.mxu0 %v99
    %135 = vmatmul.f32.gmra.mxu0 %v97
    %v136 = vpop.f32.mrf.mxu0
    %v137 = vadd.f32 %v117, %v136
    %138 = vmatmul.f32.gmra.mxu0 %v98
    %v139 = vpop.f32.mrf.mxu0
    %v140 = vadd.f32 %v117, %v139
    %141 = vdwg.mxu0
    %142 = vst [vmem:[%s5] sm:$0xff] %v137
    %143 = vst [vmem:[%s5 + $0x8] sm:$0xff] %v140
    // Predicated region
    $region30: #{bert_encoder_forward.7} parent=1 // pred_check
      _
    $region31: #{bert_encoder_forward.7} parent=1 // pred_check_branch
      %145 = sbr.rel (0) target = $region33
    $region32: #{bert_encoder_forward.7} parent=1 // pred_region
      _
    $region33: #{bert_encoder_forward.7} parent=1 // pred_fallthru
      _
    // Predicated region
    $region34: #{bert_encoder_forward.7} parent=1 // pred_check
      _
    $region35: #{bert_encoder_forward.7} parent=1 // pred_check_branch
      %147 = sbr.rel (0) target = $region37
    $region36: #{bert_encoder_forward.7} parent=1 // pred_region
      _
    $region37: #{bert_encoder_forward.7} parent=1 // pred_fallthru
      _
    %148 = vsyncpa [#allocation3], 1
    %149 = vsyncpa [#allocation5], 1

// kernel: bert_encoder_forward.5
$region0: #{bert_encoder_forward.5}
  #allocation0 [shape = 'u32[]', space=smem, size = 0x4, offset = 0x4, fixed_abs, tag = 'smem constant byte address 0x4 - core index']
  #allocation1 [shape = 'u32[72,128]{1,0:T(1,128)}', space=vmem, size = 0x9000, scoped, tag = 'internal scratch']
  #allocation2 [shape = 'f32[16,128]{1,0:T(8,128)}', space=vmem, size = 0x2000, scoped, tag = 'scratch operand']
  %s0 = inlined_call_operand.vmem [shape: f32[16,128], index: 0, kind: input, shape index: {}]
  %s1 = inlined_call_operand.vmem [shape: f32[2,8], index: 1, kind: input, shape index: {}]
  %s2 = inlined_call_operand.hbm [shape: f32[128,384], index: 2, kind: input, shape index: {}]
  %s3 = inlined_call_operand.vmem [shape: f32[1,384], index: 3, kind: input, shape index: {}]
  %s4 = inlined_call_operand.vmem [shape: f32[128,128], index: 4, kind: input, shape index: {}]
  %s5 = inlined_call_operand.vmem [shape: f32[1,128], index: 5, kind: input, shape index: {}]
  %s6 = inlined_call_operand.vmem [shape: f32[1,128], index: 6, kind: input, shape index: {}]
  %s7 = inlined_call_operand.vmem [shape: f32[1,128], index: 7, kind: input, shape index: {}]
  %s8 = inlined_call_operand.hbm [shape: f32[128,256], index: 8, kind: input, shape index: {}]
  %s9 = inlined_call_operand.vmem [shape: f32[1,256], index: 9, kind: input, shape index: {}]
  %s10 = inlined_call_operand.hbm [shape: f32[256,128], index: 10, kind: input, shape index: {}]
  %s11 = inlined_call_operand.vmem [shape: f32[1,128], index: 11, kind: input, shape index: {}]
  %s12 = inlined_call_operand.vmem [shape: f32[1,128], index: 12, kind: input, shape index: {}]
  %s13 = inlined_call_operand.vmem [shape: f32[1,128], index: 13, kind: input, shape index: {}]
  %s14 = inlined_call_operand.vmem [shape: f32[16,128], index: 14, kind: output, shape index: {}]
  %s15 = sld [smem:[#allocation0]]
  $region78: #{bert_encoder_forward.5} parent=0
    _
  %s17 = ssub.s32 1, %s15
  %s18 = scalar_select 0, %s17, %s15
  $region1: #{bert_encoder_forward.5} parent=0
    #allocation3 [shape = 'u8[196608]{0}', space=vmem, size = 0x30000, scoped, tag = 'input window, operand 2, single buffered']
    #allocation4 [shape = 's32[1]{0}', space=sflag, size = 0x4, scoped, tag = 'scoped memory for bert_encoder_forward.5']
    #allocation5 [shape = 'u8[131072]{0}', space=vmem, size = 0x20000, scoped, tag = 'input window, operand 8, single buffered']
    #allocation6 [shape = 's32[1]{0}', space=sflag, size = 0x4, scoped, tag = 'scoped memory for bert_encoder_forward.5']
    #allocation7 [shape = 'u8[131072]{0}', space=vmem, size = 0x20000, scoped, tag = 'input window, operand 10, single buffered']
    %19 = vsyncpa [#allocation4], 0
    %20 = vsyncpa [#allocation6], 0
    // Predicated region
    $region2: #{bert_encoder_forward.5} parent=1 // pred_check
      _
    $region3: #{bert_encoder_forward.5} parent=1 // pred_check_branch
      %22 = sbr.rel (0) target = $region5
    $region4: #{bert_encoder_forward.5} parent=1 // pred_region
      _
    $region5: #{bert_encoder_forward.5} parent=1 // pred_fallthru
      _
    // Predicated region
    $region6: #{bert_encoder_forward.5} parent=1 // pred_check
      _
    $region7: #{bert_encoder_forward.5} parent=1 // pred_check_branch
      %24 = sbr.rel (0) target = $region9
    $region8: #{bert_encoder_forward.5} parent=1 // pred_region
      _
    $region9: #{bert_encoder_forward.5} parent=1 // pred_fallthru
      _
    // Predicated region
    $region10: #{bert_encoder_forward.5} parent=1 // pred_check
      _
    $region11: #{bert_encoder_forward.5} parent=1 // pred_check_branch
      %26 = sbr.rel (0) target = $region13
    $region12: #{bert_encoder_forward.5} parent=1 // pred_region
      %28 = vsyncadd [#allocation4], 0
      %s29 = sshll.u32 %s2, 4
      %s30 = int_to_ptr.hbm [resolvable:$true] %s29
      %s31 = sshll.u32 [#allocation3], 4
      %s32 = int_to_ptr.vmem [resolvable:$true] %s31
      %37 = dma.hbm_to_vmem [thread:$0]  %s30, 6144, %s32, [#allocation4], 384, 384, 24
    $region13: #{bert_encoder_forward.5} parent=1 // pred_fallthru
      _
    // Predicated region
    $region14: #{bert_encoder_forward.5} parent=1 // pred_check
      _
    $region15: #{bert_encoder_forward.5} parent=1 // pred_check_branch
      %39 = sbr.rel (0) target = $region17
    $region16: #{bert_encoder_forward.5} parent=1 // pred_region
      _
    $region17: #{bert_encoder_forward.5} parent=1 // pred_fallthru
      _
    // Predicated region
    $region18: #{bert_encoder_forward.5} parent=1 // pred_check
      _
    $region19: #{bert_encoder_forward.5} parent=1 // pred_check_branch
      %41 = sbr.rel (0) target = $region21
    $region20: #{bert_encoder_forward.5} parent=1 // pred_region
      _
    $region21: #{bert_encoder_forward.5} parent=1 // pred_fallthru
      _
    // Predicated region
    $region22: #{bert_encoder_forward.5} parent=1 // pred_check
      _
    $region23: #{bert_encoder_forward.5} parent=1 // pred_check_branch
      %43 = sbr.rel (0) target = $region25
    $region24: #{bert_encoder_forward.5} parent=1 // pred_region
      _
    $region25: #{bert_encoder_forward.5} parent=1 // pred_fallthru
      _
    // Predicated region
    $region26: #{bert_encoder_forward.5} parent=1 // pred_check
      _
    $region27: #{bert_encoder_forward.5} parent=1 // pred_check_branch
      %45 = sbr.rel (0) target = $region29
    $region28: #{bert_encoder_forward.5} parent=1 // pred_region
      _
    $region29: #{bert_encoder_forward.5} parent=1 // pred_fallthru
      _
    // Predicated region
    $region30: #{bert_encoder_forward.5} parent=1 // pred_check
      _
    $region31: #{bert_encoder_forward.5} parent=1 // pred_check_branch
      %47 = sbr.rel (0) target = $region33
    $region32: #{bert_encoder_forward.5} parent=1 // pred_region
      _
    $region33: #{bert_encoder_forward.5} parent=1 // pred_fallthru
      _
    // Predicated region
    $region34: #{bert_encoder_forward.5} parent=1 // pred_check
      _
    $region35: #{bert_encoder_forward.5} parent=1 // pred_check_branch
      %49 = sbr.rel (0) target = $region37
    $region36: #{bert_encoder_forward.5} parent=1 // pred_region
      %51 = vsyncadd [#allocation6], 0
      %s52 = sshll.u32 %s8, 4
      %s53 = int_to_ptr.hbm [resolvable:$true] %s52
      %s54 = sshll.u32 [#allocation5], 4
      %s55 = int_to_ptr.vmem [resolvable:$true] %s54
      %60 = dma.hbm_to_vmem [thread:$0]  %s53, 4096, %s55, [#allocation6], 256, 256, 16
    $region37: #{bert_encoder_forward.5} parent=1 // pred_fallthru
      _
    // Predicated region
    $region38: #{bert_encoder_forward.5} parent=1 // pred_check
      _
    $region39: #{bert_encoder_forward.5} parent=1 // pred_check_branch
      %62 = sbr.rel (0) target = $region41
    $region40: #{bert_encoder_forward.5} parent=1 // pred_region
      _
    $region41: #{bert_encoder_forward.5} parent=1 // pred_fallthru
      _
    // Predicated region
    $region42: #{bert_encoder_forward.5} parent=1 // pred_check
      _
    $region43: #{bert_encoder_forward.5} parent=1 // pred_check_branch
      %64 = sbr.rel (0) target = $region45
    $region44: #{bert_encoder_forward.5} parent=1 // pred_region
      %66 = vsyncadd [#allocation6], 0
      %s67 = sshll.u32 %s10, 4
      %s68 = int_to_ptr.hbm [resolvable:$true] %s67
      %s69 = sshll.u32 [#allocation7], 4
      %s70 = int_to_ptr.vmem [resolvable:$true] %s69
      %75 = dma.hbm_to_vmem [thread:$0]  %s68, 4096, %s70, [#allocation6], 128, 128, 8
    $region45: #{bert_encoder_forward.5} parent=1 // pred_fallthru
      _
    // Predicated region
    $region46: #{bert_encoder_forward.5} parent=1 // pred_check
      _
    $region47: #{bert_encoder_forward.5} parent=1 // pred_check_branch
      %77 = sbr.rel (0) target = $region49
    $region48: #{bert_encoder_forward.5} parent=1 // pred_region
      _
    $region49: #{bert_encoder_forward.5} parent=1 // pred_fallthru
      _
    // Predicated region
    $region50: #{bert_encoder_forward.5} parent=1 // pred_check
      _
    $region51: #{bert_encoder_forward.5} parent=1 // pred_check_branch
      %79 = sbr.rel (0) target = $region53
    $region52: #{bert_encoder_forward.5} parent=1 // pred_region
      _
    $region53: #{bert_encoder_forward.5} parent=1 // pred_fallthru
      _
    // Predicated region
    $region54: #{bert_encoder_forward.5} parent=1 // pred_check
      _
    $region55: #{bert_encoder_forward.5} parent=1 // pred_check_branch
      %81 = sbr.rel (0) target = $region57
    $region56: #{bert_encoder_forward.5} parent=1 // pred_region
      _
    $region57: #{bert_encoder_forward.5} parent=1 // pred_fallthru
      _
    // Predicated region
    $region58: #{bert_encoder_forward.5} parent=1 // pred_check
      _
    $region59: #{bert_encoder_forward.5} parent=1 // pred_check_branch
      %83 = sbr.rel (0) target = $region61
    $region60: #{bert_encoder_forward.5} parent=1 // pred_region
      %85 = dma.done [#allocation4], 6144
    $region61: #{bert_encoder_forward.5} parent=1 // pred_fallthru
      _
    // Predicated region
    $region62: #{bert_encoder_forward.5} parent=1 // pred_check
      _
    $region63: #{bert_encoder_forward.5} parent=1 // pred_check_branch
      %87 = sbr.rel (0) target = $region65
    $region64: #{bert_encoder_forward.5} parent=1 // pred_region
      %89 = dma.done [#allocation6], 4096
    $region65: #{bert_encoder_forward.5} parent=1 // pred_fallthru
      _
    // Predicated region
    $region66: #{bert_encoder_forward.5} parent=1 // pred_check
      _
    $region67: #{bert_encoder_forward.5} parent=1 // pred_check_branch
      %91 = sbr.rel (0) target = $region69
    $region68: #{bert_encoder_forward.5} parent=1 // pred_region
      %93 = dma.done [#allocation6], 4096
    $region69: #{bert_encoder_forward.5} parent=1 // pred_fallthru
      _
    %v94 = vld [vmem:[%s0] sm:$0xff]
    %v95 = vld [vmem:[%s0 + $0x8] sm:$0xff]
    %v96 = vld [vmem:[%s1] sm:$0x3]
    %v97 = vld [vmem:[#allocation3] sm:$0xff]
    %v98 = vld [vmem:[#allocation3 + $0x8] sm:$0xff]
    %v99 = vld [vmem:[#allocation3 + $0x10] sm:$0xff]
    %v100 = vld [vmem:[#allocation3 + $0x18] sm:$0xff]
    %v101 = vld [vmem:[#allocation3 + $0x20] sm:$0xff]
    %v102 = vld [vmem:[#allocation3 + $0x28] sm:$0xff]
    %v103 = vld [vmem:[#allocation3 + $0x30] sm:$0xff]
    %v104 = vld [vmem:[#allocation3 + $0x38] sm:$0xff]
    %v105 = vld [vmem:[#allocation3 + $0x40] sm:$0xff]
    %v106 = vld [vmem:[#allocation3 + $0x48] sm:$0xff]
    %v107 = vld [vmem:[#allocation3 + $0x50] sm:$0xff]
    %v108 = vld [vmem:[#allocation3 + $0x58] sm:$0xff]
    %v109 = vld [vmem:[#allocation3 + $0x60] sm:$0xff]
    %v110 = vld [vmem:[#allocation3 + $0x68] sm:$0xff]
    %v111 = vld [vmem:[#allocation3 + $0x70] sm:$0xff]
    %v112 = vld [vmem:[#allocation3 + $0x78] sm:$0xff]
    %v113 = vld [vmem:[#allocation3 + $0x80] sm:$0xff]
    %v114 = vld [vmem:[#allocation3 + $0x88] sm:$0xff]
    %v115 = vld [vmem:[#allocation3 + $0x90] sm:$0xff]
    %v116 = vld [vmem:[#allocation3 + $0x98] sm:$0xff]
    %v117 = vld [vmem:[#allocation3 + $0xa0] sm:$0xff]
    %v118 = vld [vmem:[#allocation3 + $0xa8] sm:$0xff]
    %v119 = vld [vmem:[#allocation3 + $0xb0] sm:$0xff]
    %v120 = vld [vmem:[#allocation3 + $0xb8] sm:$0xff]
    %v121 = vld [vmem:[#allocation3 + $0xc0] sm:$0xff]
    %v122 = vld [vmem:[#allocation3 + $0xc8] sm:$0xff]
    %v123 = vld [vmem:[#allocation3 + $0xd0] sm:$0xff]
    %v124 = vld [vmem:[#allocation3 + $0xd8] sm:$0xff]
    %v125 = vld [vmem:[#allocation3 + $0xe0] sm:$0xff]
    %v126 = vld [vmem:[#allocation3 + $0xe8] sm:$0xff]
    %v127 = vld [vmem:[#allocation3 + $0xf0] sm:$0xff]
    %v128 = vld [vmem:[#allocation3 + $0xf8] sm:$0xff]
    %v129 = vld [vmem:[#allocation3 + $0x100] sm:$0xff]
    %v130 = vld [vmem:[#allocation3 + $0x108] sm:$0xff]
    %v131 = vld [vmem:[#allocation3 + $0x110] sm:$0xff]
    %v132 = vld [vmem:[#allocation3 + $0x118] sm:$0xff]
    %v133 = vld [vmem:[#allocation3 + $0x120] sm:$0xff]
    %v134 = vld [vmem:[#allocation3 + $0x128] sm:$0xff]
    %v135 = vld [vmem:[#allocation3 + $0x130] sm:$0xff]
    %v136 = vld [vmem:[#allocation3 + $0x138] sm:$0xff]
    %v137 = vld [vmem:[#allocation3 + $0x140] sm:$0xff]
    %v138 = vld [vmem:[#allocation3 + $0x148] sm:$0xff]
    %v139 = vld [vmem:[#allocation3 + $0x150] sm:$0xff]
    %v140 = vld [vmem:[#allocation3 + $0x158] sm:$0xff]
    %v141 = vld [vmem:[#allocation3 + $0x160] sm:$0xff]
    %v142 = vld [vmem:[#allocation3 + $0x168] sm:$0xff]
    %v143 = vld [vmem:[#allocation3 + $0x170] sm:$0xff]
    %v144 = vld [vmem:[#allocation3 + $0x178] sm:$0xff]
    %v145 = vld [vmem:[%s3] sm:$0x7]
    %v147 = vperm.slane %v145, 0
    %v148 = vperm.slane %v145, 1
    %v149 = vperm.slane %v145, 2
    %153 = vmatpush.msra.mxu0 %v142
    %154 = vmatpush.msra.mxu0 %v139
    %155 = vmatpush.msra.mxu0 %v136
    %156 = vmatpush.msra.mxu0 %v133
    %157 = vmatpush.msra.mxu0 %v130
    %158 = vmatpush.msra.mxu0 %v127
    %159 = vmatpush.msra.mxu0 %v124
    %160 = vmatpush.msra.mxu0 %v121
    %161 = vmatpush.msra.mxu0 %v118
    %162 = vmatpush.msra.mxu0 %v115
    %163 = vmatpush.msra.mxu0 %v112
    %164 = vmatpush.msra.mxu0 %v109
    %165 = vmatpush.msra.mxu0 %v106
    %166 = vmatpush.msra.mxu0 %v103
    %167 = vmatpush.msra.mxu0 %v100
    %168 = vmatpush.msra.mxu0 %v97
    %169 = vmatmul.f32.gmra.mxu0 %v94
    %v170 = vpop.f32.mrf.mxu0
    %v171 = vadd.f32 %v147, %v170
    %172 = vmatmul.f32.gmra.mxu0 %v95
    %v173 = vpop.f32.mrf.mxu0
    %v174 = vadd.f32 %v147, %v173
    %175 = vdwg.mxu0
    %176 = vmatpush.msra.mxu0 %v143
    %177 = vmatpush.msra.mxu0 %v140
    %178 = vmatpush.msra.mxu0 %v137
    %179 = vmatpush.msra.mxu0 %v134
    %180 = vmatpush.msra.mxu0 %v131
    %181 = vmatpush.msra.mxu0 %v128
    %182 = vmatpush.msra.mxu0 %v125
    %183 = vmatpush.msra.mxu0 %v122
    %184 = vmatpush.msra.mxu0 %v119
    %185 = vmatpush.msra.mxu0 %v116
    %186 = vmatpush.msra.mxu0 %v113
    %187 = vmatpush.msra.mxu0 %v110
    %188 = vmatpush.msra.mxu0 %v107
    %189 = vmatpush.msra.mxu0 %v104
    %190 = vmatpush.msra.mxu0 %v101
    %191 = vmatpush.msra.mxu0 %v98
    %192 = vmatmul.f32.gmra.mxu0 %v94
    %v193 = vpop.f32.mrf.mxu0
    %v194 = vadd.f32 %v148, %v193
    %195 = vmatmul.f32.gmra.mxu0 %v95
    %v196 = vpop.f32.mrf.mxu0
    %v197 = vadd.f32 %v148, %v196
    %198 = vdwg.mxu0
    %199 = vmatpush.msra.mxu0 %v144
    %200 = vmatpush.msra.mxu0 %v141
    %201 = vmatpush.msra.mxu0 %v138
    %202 = vmatpush.msra.mxu0 %v135
    %203 = vmatpush.msra.mxu0 %v132
    %204 = vmatpush.msra.mxu0 %v129
    %205 = vmatpush.msra.mxu0 %v126
    %206 = vmatpush.msra.mxu0 %v123
    %207 = vmatpush.msra.mxu0 %v120
    %208 = vmatpush.msra.mxu0 %v117
    %209 = vmatpush.msra.mxu0 %v114
    %210 = vmatpush.msra.mxu0 %v111
    %211 = vmatpush.msra.mxu0 %v108
    %212 = vmatpush.msra.mxu0 %v105
    %213 = vmatpush.msra.mxu0 %v102
    %214 = vmatpush.msra.mxu0 %v99
    %215 = vmatmul.f32.gmra.mxu0 %v94
    %v216 = vpop.f32.mrf.mxu0
    %v217 = vadd.f32 %v149, %v216
    %218 = vmatmul.f32.gmra.mxu0 %v95
    %v219 = vpop.f32.mrf.mxu0
    %v220 = vadd.f32 %v149, %v219
    %221 = vdwg.mxu0
    %vm222 = vcmask 523264
    %v224 = vsel %vm222, %v171, 0
    %v227 = vsel %vm222, %v194, 0
    %229 = vmatpush.xpose.msra.mxu0 0.0
    %230 = vmatpush.xpose.msra.mxu0 0.0
    %231 = vmatpush.xpose.msra.mxu0 0.0
    %232 = vmatpush.xpose.msra.mxu0 0.0
    %233 = vmatpush.xpose.msra.mxu0 0.0
    %234 = vmatpush.xpose.msra.mxu0 0.0
    %235 = vmatpush.xpose.msra.mxu0 0.0
    %236 = vmatpush.xpose.msra.mxu0 0.0
    %237 = vmatpush.xpose.msra.mxu0 0.0
    %238 = vmatpush.xpose.msra.mxu0 0.0
    %239 = vmatpush.xpose.msra.mxu0 0.0
    %240 = vmatpush.xpose.msra.mxu0 0.0
    %241 = vmatpush.xpose.msra.mxu0 0.0
    %242 = vmatpush.xpose.msra.mxu0 0.0
    %243 = vmatpush.xpose.msra.mxu0 0.0
    %244 = vmatpush.xpose.msra.mxu0 %v227
    %245 = vmatmul.f32.gmra.mxu0 %v224
    %v246 = vpop.f32.mrf.mxu0
    %v247 = vadd.f32 0.0, %v246
    %248 = vdwg.mxu0
    %v249 = vmul.f32 %v247, 0.125
    %v250 = vperm.slane %v96, 0
    %v251 = vadd.f32 %v249, %v250
    %vm252 = vcmask 64512
    %v253 = vsel %vm252, %v251, -inf
    %254 = vmax.xlane.f32.xlu0 %v253
    %v255 = vpop.xlane.xlu0 %254
    %v256 = vsub.f32 %v251, %v255
    %v257 = vmul.f32 %v256, 1.442695
    %v258 = vpow.pop %v257
    %v259 = vsel %vm252, %v258, 0.0
    %260 = vadd.xlane.f32.xlu0 %v259
    %v261 = vpop.xlane.xlu0 %260
    %v262 = vrcp.pop %v261
    %v263 = vmul.f32 %v258, %v262
    %v265 = vsel %vm252, %v263, 0
    %267 = vmatpush.msra.mxu0 0.0
    %268 = vmatpush.msra.mxu0 0.0
    %269 = vmatpush.msra.mxu0 0.0
    %270 = vmatpush.msra.mxu0 0.0
    %271 = vmatpush.msra.mxu0 0.0
    %272 = vmatpush.msra.mxu0 0.0
    %273 = vmatpush.msra.mxu0 0.0
    %274 = vmatpush.msra.mxu0 0.0
    %275 = vmatpush.msra.mxu0 0.0
    %276 = vmatpush.msra.mxu0 0.0
    %277 = vmatpush.msra.mxu0 0.0
    %278 = vmatpush.msra.mxu0 0.0
    %279 = vmatpush.msra.mxu0 0.0
    %280 = vmatpush.msra.mxu0 0.0
    %281 = vmatpush.msra.mxu0 0.0
    %282 = vmatpush.msra.mxu0 %v217
    %283 = vmatmul.f32.gmra.mxu0 %v265
    %v284 = vpop.f32.mrf.mxu0
    %v285 = vadd.f32 0.0, %v284
    %286 = vdwg.mxu0
    %287 = vst.msk [vmem:[#allocation2] sm:$0xff] %vm222, %v285
    %288 = vrot.lane.b32.xlu0 %v171, 64
    %v289 = vpop.permute.xlu0 %288
    %290 = vrot.lane.b32.xlu0 %v194, 64
    %v291 = vpop.permute.xlu0 %290
    %v292 = vsel %vm222, %v289, 0
    %v294 = vsel %vm222, %v291, 0
    %296 = vmatpush.xpose.msra.mxu0 0.0
    %297 = vmatpush.xpose.msra.mxu0 0.0
    %298 = vmatpush.xpose.msra.mxu0 0.0
    %299 = vmatpush.xpose.msra.mxu0 0.0
    %300 = vmatpush.xpose.msra.mxu0 0.0
    %301 = vmatpush.xpose.msra.mxu0 0.0
    %302 = vmatpush.xpose.msra.mxu0 0.0
    %303 = vmatpush.xpose.msra.mxu0 0.0
    %304 = vmatpush.xpose.msra.mxu0 0.0
    %305 = vmatpush.xpose.msra.mxu0 0.0
    %306 = vmatpush.xpose.msra.mxu0 0.0
    %307 = vmatpush.xpose.msra.mxu0 0.0
    %308 = vmatpush.xpose.msra.mxu0 0.0
    %309 = vmatpush.xpose.msra.mxu0 0.0
    %310 = vmatpush.xpose.msra.mxu0 0.0
    %311 = vmatpush.xpose.msra.mxu0 %v294
    %312 = vmatmul.f32.gmra.mxu0 %v292
    %v313 = vpop.f32.mrf.mxu0
    %v314 = vadd.f32 0.0, %v313
    %315 = vdwg.mxu0
    %v316 = vmul.f32 %v314, 0.125
    %v317 = vadd.f32 %v316, %v250
    %v318 = vsel %vm252, %v317, -inf
    %319 = vmax.xlane.f32.xlu0 %v318
    %v320 = vpop.xlane.xlu0 %319
    %v321 = vsub.f32 %v317, %v320
    %v322 = vmul.f32 %v321, 1.442695
    %v323 = vpow.pop %v322
    %v324 = vsel %vm252, %v323, 0.0
    %325 = vadd.xlane.f32.xlu0 %v324
    %v326 = vpop.xlane.xlu0 %325
    %v327 = vrcp.pop %v326
    %v328 = vmul.f32 %v323, %v327
    %330 = vrot.lane.b32.xlu0 %v217, 64
    %v331 = vpop.permute.xlu0 %330
    %v334 = vsel %vm252, %v328, 0
    %336 = vmatpush.msra.mxu0 0.0
    %337 = vmatpush.msra.mxu0 0.0
    %338 = vmatpush.msra.mxu0 0.0
    %339 = vmatpush.msra.mxu0 0.0
    %340 = vmatpush.msra.mxu0 0.0
    %341 = vmatpush.msra.mxu0 0.0
    %342 = vmatpush.msra.mxu0 0.0
    %343 = vmatpush.msra.mxu0 0.0
    %344 = vmatpush.msra.mxu0 0.0
    %345 = vmatpush.msra.mxu0 0.0
    %346 = vmatpush.msra.mxu0 0.0
    %347 = vmatpush.msra.mxu0 0.0
    %348 = vmatpush.msra.mxu0 0.0
    %349 = vmatpush.msra.mxu0 0.0
    %350 = vmatpush.msra.mxu0 0.0
    %351 = vmatpush.msra.mxu0 %v331
    %352 = vmatmul.f32.gmra.mxu0 %v334
    %v353 = vpop.f32.mrf.mxu0
    %v354 = vadd.f32 0.0, %v353
    %355 = vdwg.mxu0
    %357 = vrot.lane.b32.xlu0 %v354, 64
    %v358 = vpop.permute.xlu0 %357
    %vm360 = vcmask 1048064
    %361 = vst.msk [vmem:[#allocation2] sm:$0xff] %vm360, %v358
    %v363 = vsel %vm222, %v174, 0
    %v366 = vsel %vm222, %v197, 0
    %368 = vmatpush.xpose.msra.mxu0 0.0
    %369 = vmatpush.xpose.msra.mxu0 0.0
    %370 = vmatpush.xpose.msra.mxu0 0.0
    %371 = vmatpush.xpose.msra.mxu0 0.0
    %372 = vmatpush.xpose.msra.mxu0 0.0
    %373 = vmatpush.xpose.msra.mxu0 0.0
    %374 = vmatpush.xpose.msra.mxu0 0.0
    %375 = vmatpush.xpose.msra.mxu0 0.0
    %376 = vmatpush.xpose.msra.mxu0 0.0
    %377 = vmatpush.xpose.msra.mxu0 0.0
    %378 = vmatpush.xpose.msra.mxu0 0.0
    %379 = vmatpush.xpose.msra.mxu0 0.0
    %380 = vmatpush.xpose.msra.mxu0 0.0
    %381 = vmatpush.xpose.msra.mxu0 0.0
    %382 = vmatpush.xpose.msra.mxu0 0.0
    %383 = vmatpush.xpose.msra.mxu0 %v366
    %384 = vmatmul.f32.gmra.mxu0 %v363
    %v385 = vpop.f32.mrf.mxu0
    %v386 = vadd.f32 0.0, %v385
    %387 = vdwg.mxu0
    %v388 = vmul.f32 %v386, 0.125
    %v389 = vperm.slane %v96, 1
    %v390 = vadd.f32 %v388, %v389
    %v391 = vsel %vm252, %v390, -inf
    %392 = vmax.xlane.f32.xlu0 %v391
    %v393 = vpop.xlane.xlu0 %392
    %v394 = vsub.f32 %v390, %v393
    %v395 = vmul.f32 %v394, 1.442695
    %v396 = vpow.pop %v395
    %v397 = vsel %vm252, %v396, 0.0
    %398 = vadd.xlane.f32.xlu0 %v397
    %v399 = vpop.xlane.xlu0 %398
    %v400 = vrcp.pop %v399
    %v401 = vmul.f32 %v396, %v400
    %v403 = vsel %vm252, %v401, 0
    %405 = vmatpush.msra.mxu0 0.0
    %406 = vmatpush.msra.mxu0 0.0
    %407 = vmatpush.msra.mxu0 0.0
    %408 = vmatpush.msra.mxu0 0.0
    %409 = vmatpush.msra.mxu0 0.0
    %410 = vmatpush.msra.mxu0 0.0
    %411 = vmatpush.msra.mxu0 0.0
    %412 = vmatpush.msra.mxu0 0.0
    %413 = vmatpush.msra.mxu0 0.0
    %414 = vmatpush.msra.mxu0 0.0
    %415 = vmatpush.msra.mxu0 0.0
    %416 = vmatpush.msra.mxu0 0.0
    %417 = vmatpush.msra.mxu0 0.0
    %418 = vmatpush.msra.mxu0 0.0
    %419 = vmatpush.msra.mxu0 0.0
    %420 = vmatpush.msra.mxu0 %v220
    %421 = vmatmul.f32.gmra.mxu0 %v403
    %v422 = vpop.f32.mrf.mxu0
    %v423 = vadd.f32 0.0, %v422
    %424 = vdwg.mxu0
    %425 = vst.msk [vmem:[#allocation2 + $0x8] sm:$0xff] %vm222, %v423
    %426 = vrot.lane.b32.xlu0 %v174, 64
    %v427 = vpop.permute.xlu0 %426
    %428 = vrot.lane.b32.xlu0 %v197, 64
    %v429 = vpop.permute.xlu0 %428
    %v430 = vsel %vm222, %v427, 0
    %v432 = vsel %vm222, %v429, 0
    %434 = vmatpush.xpose.msra.mxu0 0.0
    %435 = vmatpush.xpose.msra.mxu0 0.0
    %436 = vmatpush.xpose.msra.mxu0 0.0
    %437 = vmatpush.xpose.msra.mxu0 0.0
    %438 = vmatpush.xpose.msra.mxu0 0.0
    %439 = vmatpush.xpose.msra.mxu0 0.0
    %440 = vmatpush.xpose.msra.mxu0 0.0
    %441 = vmatpush.xpose.msra.mxu0 0.0
    %442 = vmatpush.xpose.msra.mxu0 0.0
    %443 = vmatpush.xpose.msra.mxu0 0.0
    %444 = vmatpush.xpose.msra.mxu0 0.0
    %445 = vmatpush.xpose.msra.mxu0 0.0
    %446 = vmatpush.xpose.msra.mxu0 0.0
    %447 = vmatpush.xpose.msra.mxu0 0.0
    %448 = vmatpush.xpose.msra.mxu0 0.0
    %449 = vmatpush.xpose.msra.mxu0 %v432
    %450 = vmatmul.f32.gmra.mxu0 %v430
    %v451 = vpop.f32.mrf.mxu0
    %v452 = vadd.f32 0.0, %v451
    %453 = vdwg.mxu0
    %v454 = vmul.f32 %v452, 0.125
    %v455 = vadd.f32 %v454, %v389
    %v456 = vsel %vm252, %v455, -inf
    %457 = vmax.xlane.f32.xlu0 %v456
    %v458 = vpop.xlane.xlu0 %457
    %v459 = vsub.f32 %v455, %v458
    %v460 = vmul.f32 %v459, 1.442695
    %v461 = vpow.pop %v460
    %v462 = vsel %vm252, %v461, 0.0
    %463 = vadd.xlane.f32.xlu0 %v462
    %v464 = vpop.xlane.xlu0 %463
    %v465 = vrcp.pop %v464
    %v466 = vmul.f32 %v461, %v465
    %468 = vrot.lane.b32.xlu0 %v220, 64
    %v469 = vpop.permute.xlu0 %468
    %v472 = vsel %vm252, %v466, 0
    %474 = vmatpush.msra.mxu0 0.0
    %475 = vmatpush.msra.mxu0 0.0
    %476 = vmatpush.msra.mxu0 0.0
    %477 = vmatpush.msra.mxu0 0.0
    %478 = vmatpush.msra.mxu0 0.0
    %479 = vmatpush.msra.mxu0 0.0
    %480 = vmatpush.msra.mxu0 0.0
    %481 = vmatpush.msra.mxu0 0.0
    %482 = vmatpush.msra.mxu0 0.0
    %483 = vmatpush.msra.mxu0 0.0
    %484 = vmatpush.msra.mxu0 0.0
    %485 = vmatpush.msra.mxu0 0.0
    %486 = vmatpush.msra.mxu0 0.0
    %487 = vmatpush.msra.mxu0 0.0
    %488 = vmatpush.msra.mxu0 0.0
    %489 = vmatpush.msra.mxu0 %v469
    %490 = vmatmul.f32.gmra.mxu0 %v472
    %v491 = vpop.f32.mrf.mxu0
    %v492 = vadd.f32 0.0, %v491
    %493 = vdwg.mxu0
    %495 = vrot.lane.b32.xlu0 %v492, 64
    %v496 = vpop.permute.xlu0 %495
    %498 = vst.msk [vmem:[#allocation2 + $0x8] sm:$0xff] %vm360, %v496
    %v499 = vld [vmem:[#allocation2] sm:$0xff]
    %v500 = vld [vmem:[#allocation2 + $0x8] sm:$0xff]
    %v501 = vld [vmem:[%s4] sm:$0xff]
    %v502 = vld [vmem:[%s4 + $0x8] sm:$0xff]
    %v503 = vld [vmem:[%s4 + $0x10] sm:$0xff]
    %v504 = vld [vmem:[%s4 + $0x18] sm:$0xff]
    %v505 = vld [vmem:[%s4 + $0x20] sm:$0xff]
    %v506 = vld [vmem:[%s4 + $0x28] sm:$0xff]
    %v507 = vld [vmem:[%s4 + $0x30] sm:$0xff]
    %v508 = vld [vmem:[%s4 + $0x38] sm:$0xff]
    %v509 = vld [vmem:[%s4 + $0x40] sm:$0xff]
    %v510 = vld [vmem:[%s4 + $0x48] sm:$0xff]
    %v511 = vld [vmem:[%s4 + $0x50] sm:$0xff]
    %v512 = vld [vmem:[%s4 + $0x58] sm:$0xff]
    %v513 = vld [vmem:[%s4 + $0x60] sm:$0xff]
    %v514 = vld [vmem:[%s4 + $0x68] sm:$0xff]
    %v515 = vld [vmem:[%s4 + $0x70] sm:$0xff]
    %v516 = vld [vmem:[%s4 + $0x78] sm:$0xff]
    %v517 = vld [vmem:[%s5] sm:$0x1]
    %v519 = vperm.slane %v517, 0
    %521 = vmatpush.msra.mxu0 %v516
    %522 = vmatpush.msra.mxu0 %v515
    %523 = vmatpush.msra.mxu0 %v514
    %524 = vmatpush.msra.mxu0 %v513
    %525 = vmatpush.msra.mxu0 %v512
    %526 = vmatpush.msra.mxu0 %v511
    %527 = vmatpush.msra.mxu0 %v510
    %528 = vmatpush.msra.mxu0 %v509
    %529 = vmatpush.msra.mxu0 %v508
    %530 = vmatpush.msra.mxu0 %v507
    %531 = vmatpush.msra.mxu0 %v506
    %532 = vmatpush.msra.mxu0 %v505
    %533 = vmatpush.msra.mxu0 %v504
    %534 = vmatpush.msra.mxu0 %v503
    %535 = vmatpush.msra.mxu0 %v502
    %536 = vmatpush.msra.mxu0 %v501
    %537 = vmatmul.f32.gmra.mxu0 %v499
    %v538 = vpop.f32.mrf.mxu0
    %v539 = vadd.f32 %v519, %v538
    %540 = vmatmul.f32.gmra.mxu0 %v500
    %v541 = vpop.f32.mrf.mxu0
    %v542 = vadd.f32 %v519, %v541
    %543 = vdwg.mxu0
    %v544 = vadd.f32 %v94, %v539
    %v545 = vadd.f32 %v95, %v542
    %v546 = vld [vmem:[%s6] sm:$0x1]
    %v547 = vld [vmem:[%s7] sm:$0x1]
    %548 = vadd.xlane.f32.xlu0 %v544
    %v549 = vpop.xlane.xlu0 %548
    %550 = vadd.xlane.f32.xlu0 %v545
    %v551 = vpop.xlane.xlu0 %550
    %v552 = vrcp.pop 128.0
    %v553 = vmul.f32 128.0, %v552
    %v554 = vsub.f32 1.0, %v553
    %v555 = vmul.f32 %v552, %v554
    %v556 = vadd.f32 %v552, %v555
    %vm557 = vweird.f32 %v552
    %v558 = vsel %vm557, %v552, %v556
    %v559 = vmul.f32 %v549, %v558
    %v560 = vmul.f32 %v551, %v558
    %v561 = vsub.f32 %v544, %v559
    %v562 = vsub.f32 %v545, %v560
    %v563 = vmul.f32 %v561, %v561
    %v564 = vmul.f32 %v562, %v562
    %565 = vadd.xlane.f32.xlu0 %v563
    %v566 = vpop.xlane.xlu0 %565
    %567 = vadd.xlane.f32.xlu0 %v564
    %v568 = vpop.xlane.xlu0 %567
    %v569 = vmul.f32 %v566, %v558
    %v570 = vmul.f32 %v568, %v558
    %v571 = vadd.f32 %v569, 1e-12
    %v572 = vadd.f32 %v570, 1e-12
    %v573 = vrsqrt.pop %v571
    %v574 = vmul.f32 %v573, %v571
    %v575 = vmul.f32 %v574, %v573
    %v576 = vmul.f32 0.5, %v575
    %v577 = vsub.f32 1.5, %v576
    %v578 = vmul.f32 %v573, %v577
    %vm579 = vweird.f32 %v571
    %vm580 = vweird.f32 %v573
    %vm581 = vmor %vm579, %vm580
    %v582 = vsel %vm581, %v573, %v578
    %v583 = vrsqrt.pop %v572
    %v584 = vmul.f32 %v583, %v572
    %v585 = vmul.f32 %v584, %v583
    %v586 = vmul.f32 0.5, %v585
    %v587 = vsub.f32 1.5, %v586
    %v588 = vmul.f32 %v583, %v587
    %vm589 = vweird.f32 %v572
    %vm590 = vweird.f32 %v583
    %vm591 = vmor %vm589, %vm590
    %v592 = vsel %vm591, %v583, %v588
    %v593 = vmul.f32 %v561, %v582
    %v594 = vmul.f32 %v562, %v592
    %v596 = vperm.slane %v546, 0
    %v598 = vmul.f32 %v593, %v596
    %v599 = vmul.f32 %v594, %v596
    %v601 = vperm.slane %v547, 0
    %v603 = vadd.f32 %v598, %v601
    %v604 = vadd.f32 %v599, %v601
    %v605 = vld [vmem:[#allocation5] sm:$0xff]
    %v606 = vld [vmem:[#allocation5 + $0x8] sm:$0xff]
    %v607 = vld [vmem:[#allocation5 + $0x10] sm:$0xff]
    %v608 = vld [vmem:[#allocation5 + $0x18] sm:$0xff]
    %v609 = vld [vmem:[#allocation5 + $0x20] sm:$0xff]
    %v610 = vld [vmem:[#allocation5 + $0x28] sm:$0xff]
    %v611 = vld [vmem:[#allocation5 + $0x30] sm:$0xff]
    %v612 = vld [vmem:[#allocation5 + $0x38] sm:$0xff]
    %v613 = vld [vmem:[#allocation5 + $0x40] sm:$0xff]
    %v614 = vld [vmem:[#allocation5 + $0x48] sm:$0xff]
    %v615 = vld [vmem:[#allocation5 + $0x50] sm:$0xff]
    %v616 = vld [vmem:[#allocation5 + $0x58] sm:$0xff]
    %v617 = vld [vmem:[#allocation5 + $0x60] sm:$0xff]
    %v618 = vld [vmem:[#allocation5 + $0x68] sm:$0xff]
    %v619 = vld [vmem:[#allocation5 + $0x70] sm:$0xff]
    %v620 = vld [vmem:[#allocation5 + $0x78] sm:$0xff]
    %v621 = vld [vmem:[#allocation5 + $0x80] sm:$0xff]
    %v622 = vld [vmem:[#allocation5 + $0x88] sm:$0xff]
    %v623 = vld [vmem:[#allocation5 + $0x90] sm:$0xff]
    %v624 = vld [vmem:[#allocation5 + $0x98] sm:$0xff]
    %v625 = vld [vmem:[#allocation5 + $0xa0] sm:$0xff]
    %v626 = vld [vmem:[#allocation5 + $0xa8] sm:$0xff]
    %v627 = vld [vmem:[#allocation5 + $0xb0] sm:$0xff]
    %v628 = vld [vmem:[#allocation5 + $0xb8] sm:$0xff]
    %v629 = vld [vmem:[#allocation5 + $0xc0] sm:$0xff]
    %v630 = vld [vmem:[#allocation5 + $0xc8] sm:$0xff]
    %v631 = vld [vmem:[#allocation5 + $0xd0] sm:$0xff]
    %v632 = vld [vmem:[#allocation5 + $0xd8] sm:$0xff]
    %v633 = vld [vmem:[#allocation5 + $0xe0] sm:$0xff]
    %v634 = vld [vmem:[#allocation5 + $0xe8] sm:$0xff]
    %v635 = vld [vmem:[#allocation5 + $0xf0] sm:$0xff]
    %v636 = vld [vmem:[#allocation5 + $0xf8] sm:$0xff]
    %v637 = vld [vmem:[%s9] sm:$0x3]
    %v639 = vperm.slane %v637, 0
    %v640 = vperm.slane %v637, 1
    %643 = vmatpush.msra.mxu0 %v635
    %644 = vmatpush.msra.mxu0 %v633
    %645 = vmatpush.msra.mxu0 %v631
    %646 = vmatpush.msra.mxu0 %v629
    %647 = vmatpush.msra.mxu0 %v627
    %648 = vmatpush.msra.mxu0 %v625
    %649 = vmatpush.msra.mxu0 %v623
    %650 = vmatpush.msra.mxu0 %v621
    %651 = vmatpush.msra.mxu0 %v619
    %652 = vmatpush.msra.mxu0 %v617
    %653 = vmatpush.msra.mxu0 %v615
    %654 = vmatpush.msra.mxu0 %v613
    %655 = vmatpush.msra.mxu0 %v611
    %656 = vmatpush.msra.mxu0 %v609
    %657 = vmatpush.msra.mxu0 %v607
    %658 = vmatpush.msra.mxu0 %v605
    %659 = vmatmul.f32.gmra.mxu0 %v603
    %v660 = vpop.f32.mrf.mxu0
    %v661 = vadd.f32 %v639, %v660
    %662 = vmatmul.f32.gmra.mxu0 %v604
    %v663 = vpop.f32.mrf.mxu0
    %v664 = vadd.f32 %v639, %v663
    %665 = vdwg.mxu0
    %666 = vmatpush.msra.mxu0 %v636
    %667 = vmatpush.msra.mxu0 %v634
    %668 = vmatpush.msra.mxu0 %v632
    %669 = vmatpush.msra.mxu0 %v630
    %670 = vmatpush.msra.mxu0 %v628
    %671 = vmatpush.msra.mxu0 %v626
    %672 = vmatpush.msra.mxu0 %v624
    %673 = vmatpush.msra.mxu0 %v622
    %674 = vmatpush.msra.mxu0 %v620
    %675 = vmatpush.msra.mxu0 %v618
    %676 = vmatpush.msra.mxu0 %v616
    %677 = vmatpush.msra.mxu0 %v614
    %678 = vmatpush.msra.mxu0 %v612
    %679 = vmatpush.msra.mxu0 %v610
    %680 = vmatpush.msra.mxu0 %v608
    %681 = vmatpush.msra.mxu0 %v606
    %682 = vmatmul.f32.gmra.mxu0 %v603
    %v683 = vpop.f32.mrf.mxu0
    %v684 = vadd.f32 %v640, %v683
    %685 = vmatmul.f32.gmra.mxu0 %v604
    %v686 = vpop.f32.mrf.mxu0
    %v687 = vadd.f32 %v640, %v686
    %688 = vdwg.mxu0
    %v689 = vmul.f32 %v661, 0.5
    %v690 = vmul.f32 %v684, 0.5
    %v691 = vmul.f32 %v664, 0.5
    %v692 = vmul.f32 %v687, 0.5
    %v693 = vmul.f32 %v661, 0.044715
    %v694 = vmul.f32 %v684, 0.044715
    %v695 = vmul.f32 %v664, 0.044715
    %v696 = vmul.f32 %v687, 0.044715
    %v697 = vmul.f32 %v693, %v661
    %v698 = vmul.f32 %v694, %v684
    %v699 = vmul.f32 %v695, %v664
    %v700 = vmul.f32 %v696, %v687
    %v701 = vmul.f32 %v697, %v661
    %v702 = vmul.f32 %v698, %v684
    %v703 = vmul.f32 %v699, %v664
    %v704 = vmul.f32 %v700, %v687
    %v705 = vadd.f32 %v661, %v701
    %v706 = vadd.f32 %v684, %v702
    %v707 = vadd.f32 %v664, %v703
    %v708 = vadd.f32 %v687, %v704
    %v709 = vmul.f32 %v705, 0.7978846
    %v710 = vmul.f32 %v706, 0.7978846
    %v711 = vmul.f32 %v707, 0.7978846
    %v712 = vmul.f32 %v708, 0.7978846
    %v713 = vtanh.pop %v709
    %v714 = vtanh.pop %v710
    %v715 = vtanh.pop %v711
    %v716 = vtanh.pop %v712
    %v717 = vadd.f32 %v713, 1.0
    %v718 = vadd.f32 %v714, 1.0
    %v719 = vadd.f32 %v715, 1.0
    %v720 = vadd.f32 %v716, 1.0
    %v721 = vmul.f32 %v689, %v717
    %v722 = vmul.f32 %v690, %v718
    %v723 = vmul.f32 %v691, %v719
    %v724 = vmul.f32 %v692, %v720
    %v725 = vld [vmem:[#allocation7] sm:$0xff]
    %v726 = vld [vmem:[#allocation7 + $0x8] sm:$0xff]
    %v727 = vld [vmem:[#allocation7 + $0x10] sm:$0xff]
    %v728 = vld [vmem:[#allocation7 + $0x18] sm:$0xff]
    %v729 = vld [vmem:[#allocation7 + $0x20] sm:$0xff]
    %v730 = vld [vmem:[#allocation7 + $0x28] sm:$0xff]
    %v731 = vld [vmem:[#allocation7 + $0x30] sm:$0xff]
    %v732 = vld [vmem:[#allocation7 + $0x38] sm:$0xff]
    %v733 = vld [vmem:[#allocation7 + $0x40] sm:$0xff]
    %v734 = vld [vmem:[#allocation7 + $0x48] sm:$0xff]
    %v735 = vld [vmem:[#allocation7 + $0x50] sm:$0xff]
    %v736 = vld [vmem:[#allocation7 + $0x58] sm:$0xff]
    %v737 = vld [vmem:[#allocation7 + $0x60] sm:$0xff]
    %v738 = vld [vmem:[#allocation7 + $0x68] sm:$0xff]
    %v739 = vld [vmem:[#allocation7 + $0x70] sm:$0xff]
    %v740 = vld [vmem:[#allocation7 + $0x78] sm:$0xff]
    %v741 = vld [vmem:[#allocation7 + $0x80] sm:$0xff]
    %v742 = vld [vmem:[#allocation7 + $0x88] sm:$0xff]
    %v743 = vld [vmem:[#allocation7 + $0x90] sm:$0xff]
    %v744 = vld [vmem:[#allocation7 + $0x98] sm:$0xff]
    %v745 = vld [vmem:[#allocation7 + $0xa0] sm:$0xff]
    %v746 = vld [vmem:[#allocation7 + $0xa8] sm:$0xff]
    %v747 = vld [vmem:[#allocation7 + $0xb0] sm:$0xff]
    %v748 = vld [vmem:[#allocation7 + $0xb8] sm:$0xff]
    %v749 = vld [vmem:[#allocation7 + $0xc0] sm:$0xff]
    %v750 = vld [vmem:[#allocation7 + $0xc8] sm:$0xff]
    %v751 = vld [vmem:[#allocation7 + $0xd0] sm:$0xff]
    %v752 = vld [vmem:[#allocation7 + $0xd8] sm:$0xff]
    %v753 = vld [vmem:[#allocation7 + $0xe0] sm:$0xff]
    %v754 = vld [vmem:[#allocation7 + $0xe8] sm:$0xff]
    %v755 = vld [vmem:[#allocation7 + $0xf0] sm:$0xff]
    %v756 = vld [vmem:[#allocation7 + $0xf8] sm:$0xff]
    %v757 = vld [vmem:[%s11] sm:$0x1]
    %v759 = vperm.slane %v757, 0
    %761 = vmatpush.msra.mxu0 %v740
    %762 = vmatpush.msra.mxu0 %v739
    %763 = vmatpush.msra.mxu0 %v738
    %764 = vmatpush.msra.mxu0 %v737
    %765 = vmatpush.msra.mxu0 %v736
    %766 = vmatpush.msra.mxu0 %v735
    %767 = vmatpush.msra.mxu0 %v734
    %768 = vmatpush.msra.mxu0 %v733
    %769 = vmatpush.msra.mxu0 %v732
    %770 = vmatpush.msra.mxu0 %v731
    %771 = vmatpush.msra.mxu0 %v730
    %772 = vmatpush.msra.mxu0 %v729
    %773 = vmatpush.msra.mxu0 %v728
    %774 = vmatpush.msra.mxu0 %v727
    %775 = vmatpush.msra.mxu0 %v726
    %776 = vmatpush.msra.mxu0 %v725
    %777 = vmatmul.f32.gmra.mxu0 %v721
    %v778 = vpop.f32.mrf.mxu0
    %v779 = vadd.f32 %v759, %v778
    %780 = vmatmul.f32.gmra.mxu0 %v723
    %v781 = vpop.f32.mrf.mxu0
    %v782 = vadd.f32 %v759, %v781
    %783 = vdwg.mxu0
    %784 = vmatpush.msra.mxu0 %v756
    %785 = vmatpush.msra.mxu0 %v755
    %786 = vmatpush.msra.mxu0 %v754
    %787 = vmatpush.msra.mxu0 %v753
    %788 = vmatpush.msra.mxu0 %v752
    %789 = vmatpush.msra.mxu0 %v751
    %790 = vmatpush.msra.mxu0 %v750
    %791 = vmatpush.msra.mxu0 %v749
    %792 = vmatpush.msra.mxu0 %v748
    %793 = vmatpush.msra.mxu0 %v747
    %794 = vmatpush.msra.mxu0 %v746
    %795 = vmatpush.msra.mxu0 %v745
    %796 = vmatpush.msra.mxu0 %v744
    %797 = vmatpush.msra.mxu0 %v743
    %798 = vmatpush.msra.mxu0 %v742
    %799 = vmatpush.msra.mxu0 %v741
    %800 = vmatmul.f32.gmra.mxu0 %v722
    %v801 = vpop.f32.mrf.mxu0
    %v802 = vadd.f32 %v779, %v801
    %803 = vmatmul.f32.gmra.mxu0 %v724
    %v804 = vpop.f32.mrf.mxu0
    %v805 = vadd.f32 %v782, %v804
    %806 = vdwg.mxu0
    %v807 = vadd.f32 %v603, %v802
    %v808 = vadd.f32 %v604, %v805
    %v809 = vld [vmem:[%s12] sm:$0x1]
    %v810 = vld [vmem:[%s13] sm:$0x1]
    %811 = vadd.xlane.f32.xlu0 %v807
    %v812 = vpop.xlane.xlu0 %811
    %813 = vadd.xlane.f32.xlu0 %v808
    %v814 = vpop.xlane.xlu0 %813
    %v815 = vmul.f32 %v812, %v558
    %v816 = vmul.f32 %v814, %v558
    %v817 = vsub.f32 %v807, %v815
    %v818 = vsub.f32 %v808, %v816
    %v819 = vmul.f32 %v817, %v817
    %v820 = vmul.f32 %v818, %v818
    %821 = vadd.xlane.f32.xlu0 %v819
    %v822 = vpop.xlane.xlu0 %821
    %823 = vadd.xlane.f32.xlu0 %v820
    %v824 = vpop.xlane.xlu0 %823
    %v825 = vmul.f32 %v822, %v558
    %v826 = vmul.f32 %v824, %v558
    %v827 = vadd.f32 %v825, 1e-12
    %v828 = vadd.f32 %v826, 1e-12
    %v829 = vrsqrt.pop %v827
    %v830 = vmul.f32 %v829, %v827
    %v831 = vmul.f32 %v830, %v829
    %v832 = vmul.f32 0.5, %v831
    %v833 = vsub.f32 1.5, %v832
    %v834 = vmul.f32 %v829, %v833
    %vm835 = vweird.f32 %v827
    %vm836 = vweird.f32 %v829
    %vm837 = vmor %vm835, %vm836
    %v838 = vsel %vm837, %v829, %v834
    %v839 = vrsqrt.pop %v828
    %v840 = vmul.f32 %v839, %v828
    %v841 = vmul.f32 %v840, %v839
    %v842 = vmul.f32 0.5, %v841
    %v843 = vsub.f32 1.5, %v842
    %v844 = vmul.f32 %v839, %v843
    %vm845 = vweird.f32 %v828
    %vm846 = vweird.f32 %v839
    %vm847 = vmor %vm845, %vm846
    %v848 = vsel %vm847, %v839, %v844
    %v849 = vmul.f32 %v817, %v838
    %v850 = vmul.f32 %v818, %v848
    %v852 = vperm.slane %v809, 0
    %v854 = vmul.f32 %v849, %v852
    %v855 = vmul.f32 %v850, %v852
    %v857 = vperm.slane %v810, 0
    %v859 = vadd.f32 %v854, %v857
    %v860 = vadd.f32 %v855, %v857
    %861 = vst [vmem:[%s14] sm:$0xff] %v859
    %862 = vst [vmem:[%s14 + $0x8] sm:$0xff] %v860
    // Predicated region
    $region70: #{bert_encoder_forward.5} parent=1 // pred_check
      _
    $region71: #{bert_encoder_forward.5} parent=1 // pred_check_branch
      %864 = sbr.rel (0) target = $region73
    $region72: #{bert_encoder_forward.5} parent=1 // pred_region
      _
    $region73: #{bert_encoder_forward.5} parent=1 // pred_fallthru
      _
    // Predicated region
    $region74: #{bert_encoder_forward.5} parent=1 // pred_check
      _
    $region75: #{bert_encoder_forward.5} parent=1 // pred_check_branch
      %866 = sbr.rel (0) target = $region77
    $region76: #{bert_encoder_forward.5} parent=1 // pred_region
      _
    $region77: #{bert_encoder_forward.5} parent=1 // pred_fallthru
      _
    %867 = vsyncpa [#allocation4], 1
    %868 = vsyncpa [#allocation6], 1

// kernel: bert_encoder_forward.6
$region0: #{bert_encoder_forward.6}
  #allocation0 [shape = 'u32[]', space=smem, size = 0x4, offset = 0x4, fixed_abs, tag = 'smem constant byte address 0x4 - core index']
  #allocation1 [shape = 'u32[72,128]{1,0:T(1,128)}', space=vmem, size = 0x9000, scoped, tag = 'internal scratch']
  #allocation2 [shape = 'f32[16,128]{1,0:T(8,128)}', space=vmem, size = 0x2000, scoped, tag = 'scratch operand']
  %s0 = inlined_call_operand.vmem [shape: f32[16,128], index: 0, kind: input, shape index: {}]
  %s1 = inlined_call_operand.vmem [shape: f32[2,8], index: 1, kind: input, shape index: {}]
  %s2 = inlined_call_operand.hbm [shape: f32[128,384], index: 2, kind: input, shape index: {}]
  %s3 = inlined_call_operand.vmem [shape: f32[1,384], index: 3, kind: input, shape index: {}]
  %s4 = inlined_call_operand.hbm [shape: f32[128,128], index: 4, kind: input, shape index: {}]
  %s5 = inlined_call_operand.vmem [shape: f32[1,128], index: 5, kind: input, shape index: {}]
  %s6 = inlined_call_operand.vmem [shape: f32[1,128], index: 6, kind: input, shape index: {}]
  %s7 = inlined_call_operand.vmem [shape: f32[1,128], index: 7, kind: input, shape index: {}]
  %s8 = inlined_call_operand.hbm [shape: f32[128,256], index: 8, kind: input, shape index: {}]
  %s9 = inlined_call_operand.vmem [shape: f32[1,256], index: 9, kind: input, shape index: {}]
  %s10 = inlined_call_operand.hbm [shape: f32[256,128], index: 10, kind: input, shape index: {}]
  %s11 = inlined_call_operand.vmem [shape: f32[1,128], index: 11, kind: input, shape index: {}]
  %s12 = inlined_call_operand.vmem [shape: f32[1,128], index: 12, kind: input, shape index: {}]
  %s13 = inlined_call_operand.vmem [shape: f32[1,128], index: 13, kind: input, shape index: {}]
  %s14 = inlined_call_operand.vmem [shape: f32[16,128], index: 14, kind: output, shape index: {}]
  %s15 = sld [smem:[#allocation0]]
  $region82: #{bert_encoder_forward.6} parent=0
    _
  %s17 = ssub.s32 1, %s15
  %s18 = scalar_select 0, %s17, %s15
  $region1: #{bert_encoder_forward.6} parent=0
    #allocation3 [shape = 'u8[196608]{0}', space=vmem, size = 0x30000, scoped, tag = 'input window, operand 2, single buffered']
    #allocation4 [shape = 's32[1]{0}', space=sflag, size = 0x4, scoped, tag = 'scoped memory for bert_encoder_forward.6']
    #allocation5 [shape = 'u8[65536]{0}', space=vmem, size = 0x10000, scoped, tag = 'input window, operand 4, single buffered']
    #allocation6 [shape = 's32[1]{0}', space=sflag, size = 0x4, scoped, tag = 'scoped memory for bert_encoder_forward.6']
    #allocation7 [shape = 'u8[131072]{0}', space=vmem, size = 0x20000, scoped, tag = 'input window, operand 8, single buffered']
    #allocation8 [shape = 'u8[131072]{0}', space=vmem, size = 0x20000, scoped, tag = 'input window, operand 10, single buffered']
    #allocation9 [shape = 's32[1]{0}', space=sflag, size = 0x4, scoped, tag = 'scoped memory for bert_encoder_forward.6']
    %19 = vsyncpa [#allocation4], 0
    %20 = vsyncpa [#allocation6], 0
    %21 = vsyncpa [#allocation9], 0
    // Predicated region
    $region2: #{bert_encoder_forward.6} parent=1 // pred_check
      _
    $region3: #{bert_encoder_forward.6} parent=1 // pred_check_branch
      %23 = sbr.rel (0) target = $region5
    $region4: #{bert_encoder_forward.6} parent=1 // pred_region
      _
    $region5: #{bert_encoder_forward.6} parent=1 // pred_fallthru
      _
    // Predicated region
    $region6: #{bert_encoder_forward.6} parent=1 // pred_check
      _
    $region7: #{bert_encoder_forward.6} parent=1 // pred_check_branch
      %25 = sbr.rel (0) target = $region9
    $region8: #{bert_encoder_forward.6} parent=1 // pred_region
      _
    $region9: #{bert_encoder_forward.6} parent=1 // pred_fallthru
      _
    // Predicated region
    $region10: #{bert_encoder_forward.6} parent=1 // pred_check
      _
    $region11: #{bert_encoder_forward.6} parent=1 // pred_check_branch
      %27 = sbr.rel (0) target = $region13
    $region12: #{bert_encoder_forward.6} parent=1 // pred_region
      %29 = vsyncadd [#allocation4], 0
      %s30 = sshll.u32 %s2, 4
      %s31 = int_to_ptr.hbm [resolvable:$true] %s30
      %s32 = sshll.u32 [#allocation3], 4
      %s33 = int_to_ptr.vmem [resolvable:$true] %s32
      %38 = dma.hbm_to_vmem [thread:$0]  %s31, 6144, %s33, [#allocation4], 384, 384, 24
    $region13: #{bert_encoder_forward.6} parent=1 // pred_fallthru
      _
    // Predicated region
    $region14: #{bert_encoder_forward.6} parent=1 // pred_check
      _
    $region15: #{bert_encoder_forward.6} parent=1 // pred_check_branch
      %40 = sbr.rel (0) target = $region17
    $region16: #{bert_encoder_forward.6} parent=1 // pred_region
      _
    $region17: #{bert_encoder_forward.6} parent=1 // pred_fallthru
      _
    // Predicated region
    $region18: #{bert_encoder_forward.6} parent=1 // pred_check
      _
    $region19: #{bert_encoder_forward.6} parent=1 // pred_check_branch
      %42 = sbr.rel (0) target = $region21
    $region20: #{bert_encoder_forward.6} parent=1 // pred_region
      %44 = vsyncadd [#allocation6], 0
      %s45 = sshll.u32 %s4, 4
      %s46 = int_to_ptr.hbm [resolvable:$true] %s45
      %s47 = sshll.u32 [#allocation5], 4
      %s48 = int_to_ptr.vmem [resolvable:$true] %s47
      %53 = dma.hbm_to_vmem [thread:$0]  %s46, 2048, %s48, [#allocation6], 128, 128, 8
    $region21: #{bert_encoder_forward.6} parent=1 // pred_fallthru
      _
    // Predicated region
    $region22: #{bert_encoder_forward.6} parent=1 // pred_check
      _
    $region23: #{bert_encoder_forward.6} parent=1 // pred_check_branch
      %55 = sbr.rel (0) target = $region25
    $region24: #{bert_encoder_forward.6} parent=1 // pred_region
      _
    $region25: #{bert_encoder_forward.6} parent=1 // pred_fallthru
      _
    // Predicated region
    $region26: #{bert_encoder_forward.6} parent=1 // pred_check
      _
    $region27: #{bert_encoder_forward.6} parent=1 // pred_check_branch
      %57 = sbr.rel (0) target = $region29
    $region28: #{bert_encoder_forward.6} parent=1 // pred_region
      _
    $region29: #{bert_encoder_forward.6} parent=1 // pred_fallthru
      _
    // Predicated region
    $region30: #{bert_encoder_forward.6} parent=1 // pred_check
      _
    $region31: #{bert_encoder_forward.6} parent=1 // pred_check_branch
      %59 = sbr.rel (0) target = $region33
    $region32: #{bert_encoder_forward.6} parent=1 // pred_region
      _
    $region33: #{bert_encoder_forward.6} parent=1 // pred_fallthru
      _
    // Predicated region
    $region34: #{bert_encoder_forward.6} parent=1 // pred_check
      _
    $region35: #{bert_encoder_forward.6} parent=1 // pred_check_branch
      %61 = sbr.rel (0) target = $region37
    $region36: #{bert_encoder_forward.6} parent=1 // pred_region
      %63 = vsyncadd [#allocation6], 0
      %s64 = sshll.u32 %s8, 4
      %s65 = int_to_ptr.hbm [resolvable:$true] %s64
      %s66 = sshll.u32 [#allocation7], 4
      %s67 = int_to_ptr.vmem [resolvable:$true] %s66
      %72 = dma.hbm_to_vmem [thread:$0]  %s65, 4096, %s67, [#allocation6], 256, 256, 16
    $region37: #{bert_encoder_forward.6} parent=1 // pred_fallthru
      _
    // Predicated region
    $region38: #{bert_encoder_forward.6} parent=1 // pred_check
      _
    $region39: #{bert_encoder_forward.6} parent=1 // pred_check_branch
      %74 = sbr.rel (0) target = $region41
    $region40: #{bert_encoder_forward.6} parent=1 // pred_region
      _
    $region41: #{bert_encoder_forward.6} parent=1 // pred_fallthru
      _
    // Predicated region
    $region42: #{bert_encoder_forward.6} parent=1 // pred_check
      _
    $region43: #{bert_encoder_forward.6} parent=1 // pred_check_branch
      %76 = sbr.rel (0) target = $region45
    $region44: #{bert_encoder_forward.6} parent=1 // pred_region
      %78 = vsyncadd [#allocation9], 0
      %s79 = sshll.u32 %s10, 4
      %s80 = int_to_ptr.hbm [resolvable:$true] %s79
      %s81 = sshll.u32 [#allocation8], 4
      %s82 = int_to_ptr.vmem [resolvable:$true] %s81
      %87 = dma.hbm_to_vmem [thread:$0]  %s80, 4096, %s82, [#allocation9], 128, 128, 8
    $region45: #{bert_encoder_forward.6} parent=1 // pred_fallthru
      _
    // Predicated region
    $region46: #{bert_encoder_forward.6} parent=1 // pred_check
      _
    $region47: #{bert_encoder_forward.6} parent=1 // pred_check_branch
      %89 = sbr.rel (0) target = $region49
    $region48: #{bert_encoder_forward.6} parent=1 // pred_region
      _
    $region49: #{bert_encoder_forward.6} parent=1 // pred_fallthru
      _
    // Predicated region
    $region50: #{bert_encoder_forward.6} parent=1 // pred_check
      _
    $region51: #{bert_encoder_forward.6} parent=1 // pred_check_branch
      %91 = sbr.rel (0) target = $region53
    $region52: #{bert_encoder_forward.6} parent=1 // pred_region
      _
    $region53: #{bert_encoder_forward.6} parent=1 // pred_fallthru
      _
    // Predicated region
    $region54: #{bert_encoder_forward.6} parent=1 // pred_check
      _
    $region55: #{bert_encoder_forward.6} parent=1 // pred_check_branch
      %93 = sbr.rel (0) target = $region57
    $region56: #{bert_encoder_forward.6} parent=1 // pred_region
      _
    $region57: #{bert_encoder_forward.6} parent=1 // pred_fallthru
      _
    // Predicated region
    $region58: #{bert_encoder_forward.6} parent=1 // pred_check
      _
    $region59: #{bert_encoder_forward.6} parent=1 // pred_check_branch
      %95 = sbr.rel (0) target = $region61
    $region60: #{bert_encoder_forward.6} parent=1 // pred_region
      %97 = dma.done [#allocation4], 6144
    $region61: #{bert_encoder_forward.6} parent=1 // pred_fallthru
      _
    // Predicated region
    $region62: #{bert_encoder_forward.6} parent=1 // pred_check
      _
    $region63: #{bert_encoder_forward.6} parent=1 // pred_check_branch
      %99 = sbr.rel (0) target = $region65
    $region64: #{bert_encoder_forward.6} parent=1 // pred_region
      %101 = dma.done [#allocation6], 2048
    $region65: #{bert_encoder_forward.6} parent=1 // pred_fallthru
      _
    // Predicated region
    $region66: #{bert_encoder_forward.6} parent=1 // pred_check
      _
    $region67: #{bert_encoder_forward.6} parent=1 // pred_check_branch
      %103 = sbr.rel (0) target = $region69
    $region68: #{bert_encoder_forward.6} parent=1 // pred_region
      %105 = dma.done [#allocation6], 4096
    $region69: #{bert_encoder_forward.6} parent=1 // pred_fallthru
      _
    // Predicated region
    $region70: #{bert_encoder_forward.6} parent=1 // pred_check
      _
    $region71: #{bert_encoder_forward.6} parent=1 // pred_check_branch
      %107 = sbr.rel (0) target = $region73
    $region72: #{bert_encoder_forward.6} parent=1 // pred_region
      %109 = dma.done [#allocation9], 4096
    $region73: #{bert_encoder_forward.6} parent=1 // pred_fallthru
      _
    %v110 = vld [vmem:[%s0] sm:$0xff]
    %v111 = vld [vmem:[%s0 + $0x8] sm:$0xff]
    %v112 = vld [vmem:[%s1] sm:$0x3]
    %v113 = vld [vmem:[#allocation3] sm:$0xff]
    %v114 = vld [vmem:[#allocation3 + $0x8] sm:$0xff]
    %v115 = vld [vmem:[#allocation3 + $0x10] sm:$0xff]
    %v116 = vld [vmem:[#allocation3 + $0x18] sm:$0xff]
    %v117 = vld [vmem:[#allocation3 + $0x20] sm:$0xff]
    %v118 = vld [vmem:[#allocation3 + $0x28] sm:$0xff]
    %v119 = vld [vmem:[#allocation3 + $0x30] sm:$0xff]
    %v120 = vld [vmem:[#allocation3 + $0x38] sm:$0xff]
    %v121 = vld [vmem:[#allocation3 + $0x40] sm:$0xff]
    %v122 = vld [vmem:[#allocation3 + $0x48] sm:$0xff]
    %v123 = vld [vmem:[#allocation3 + $0x50] sm:$0xff]
    %v124 = vld [vmem:[#allocation3 + $0x58] sm:$0xff]
    %v125 = vld [vmem:[#allocation3 + $0x60] sm:$0xff]
    %v126 = vld [vmem:[#allocation3 + $0x68] sm:$0xff]
    %v127 = vld [vmem:[#allocation3 + $0x70] sm:$0xff]
    %v128 = vld [vmem:[#allocation3 + $0x78] sm:$0xff]
    %v129 = vld [vmem:[#allocation3 + $0x80] sm:$0xff]
    %v130 = vld [vmem:[#allocation3 + $0x88] sm:$0xff]
    %v131 = vld [vmem:[#allocation3 + $0x90] sm:$0xff]
    %v132 = vld [vmem:[#allocation3 + $0x98] sm:$0xff]
    %v133 = vld [vmem:[#allocation3 + $0xa0] sm:$0xff]
    %v134 = vld [vmem:[#allocation3 + $0xa8] sm:$0xff]
    %v135 = vld [vmem:[#allocation3 + $0xb0] sm:$0xff]
    %v136 = vld [vmem:[#allocation3 + $0xb8] sm:$0xff]
    %v137 = vld [vmem:[#allocation3 + $0xc0] sm:$0xff]
    %v138 = vld [vmem:[#allocation3 + $0xc8] sm:$0xff]
    %v139 = vld [vmem:[#allocation3 + $0xd0] sm:$0xff]
    %v140 = vld [vmem:[#allocation3 + $0xd8] sm:$0xff]
    %v141 = vld [vmem:[#allocation3 + $0xe0] sm:$0xff]
    %v142 = vld [vmem:[#allocation3 + $0xe8] sm:$0xff]
    %v143 = vld [vmem:[#allocation3 + $0xf0] sm:$0xff]
    %v144 = vld [vmem:[#allocation3 + $0xf8] sm:$0xff]
    %v145 = vld [vmem:[#allocation3 + $0x100] sm:$0xff]
    %v146 = vld [vmem:[#allocation3 + $0x108] sm:$0xff]
    %v147 = vld [vmem:[#allocation3 + $0x110] sm:$0xff]
    %v148 = vld [vmem:[#allocation3 + $0x118] sm:$0xff]
    %v149 = vld [vmem:[#allocation3 + $0x120] sm:$0xff]
    %v150 = vld [vmem:[#allocation3 + $0x128] sm:$0xff]
    %v151 = vld [vmem:[#allocation3 + $0x130] sm:$0xff]
    %v152 = vld [vmem:[#allocation3 + $0x138] sm:$0xff]
    %v153 = vld [vmem:[#allocation3 + $0x140] sm:$0xff]
    %v154 = vld [vmem:[#allocation3 + $0x148] sm:$0xff]
    %v155 = vld [vmem:[#allocation3 + $0x150] sm:$0xff]
    %v156 = vld [vmem:[#allocation3 + $0x158] sm:$0xff]
    %v157 = vld [vmem:[#allocation3 + $0x160] sm:$0xff]
    %v158 = vld [vmem:[#allocation3 + $0x168] sm:$0xff]
    %v159 = vld [vmem:[#allocation3 + $0x170] sm:$0xff]
    %v160 = vld [vmem:[#allocation3 + $0x178] sm:$0xff]
    %v161 = vld [vmem:[%s3] sm:$0x7]
    %v163 = vperm.slane %v161, 0
    %v164 = vperm.slane %v161, 1
    %v165 = vperm.slane %v161, 2
    %169 = vmatpush.msra.mxu0 %v158
    %170 = vmatpush.msra.mxu0 %v155
    %171 = vmatpush.msra.mxu0 %v152
    %172 = vmatpush.msra.mxu0 %v149
    %173 = vmatpush.msra.mxu0 %v146
    %174 = vmatpush.msra.mxu0 %v143
    %175 = vmatpush.msra.mxu0 %v140
    %176 = vmatpush.msra.mxu0 %v137
    %177 = vmatpush.msra.mxu0 %v134
    %178 = vmatpush.msra.mxu0 %v131
    %179 = vmatpush.msra.mxu0 %v128
    %180 = vmatpush.msra.mxu0 %v125
    %181 = vmatpush.msra.mxu0 %v122
    %182 = vmatpush.msra.mxu0 %v119
    %183 = vmatpush.msra.mxu0 %v116
    %184 = vmatpush.msra.mxu0 %v113
    %185 = vmatmul.f32.gmra.mxu0 %v110
    %v186 = vpop.f32.mrf.mxu0
    %v187 = vadd.f32 %v163, %v186
    %188 = vmatmul.f32.gmra.mxu0 %v111
    %v189 = vpop.f32.mrf.mxu0
    %v190 = vadd.f32 %v163, %v189
    %191 = vdwg.mxu0
    %192 = vmatpush.msra.mxu0 %v159
    %193 = vmatpush.msra.mxu0 %v156
    %194 = vmatpush.msra.mxu0 %v153
    %195 = vmatpush.msra.mxu0 %v150
    %196 = vmatpush.msra.mxu0 %v147
    %197 = vmatpush.msra.mxu0 %v144
    %198 = vmatpush.msra.mxu0 %v141
    %199 = vmatpush.msra.mxu0 %v138
    %200 = vmatpush.msra.mxu0 %v135
    %201 = vmatpush.msra.mxu0 %v132
    %202 = vmatpush.msra.mxu0 %v129
    %203 = vmatpush.msra.mxu0 %v126
    %204 = vmatpush.msra.mxu0 %v123
    %205 = vmatpush.msra.mxu0 %v120
    %206 = vmatpush.msra.mxu0 %v117
    %207 = vmatpush.msra.mxu0 %v114
    %208 = vmatmul.f32.gmra.mxu0 %v110
    %v209 = vpop.f32.mrf.mxu0
    %v210 = vadd.f32 %v164, %v209
    %211 = vmatmul.f32.gmra.mxu0 %v111
    %v212 = vpop.f32.mrf.mxu0
    %v213 = vadd.f32 %v164, %v212
    %214 = vdwg.mxu0
    %215 = vmatpush.msra.mxu0 %v160
    %216 = vmatpush.msra.mxu0 %v157
    %217 = vmatpush.msra.mxu0 %v154
    %218 = vmatpush.msra.mxu0 %v151
    %219 = vmatpush.msra.mxu0 %v148
    %220 = vmatpush.msra.mxu0 %v145
    %221 = vmatpush.msra.mxu0 %v142
    %222 = vmatpush.msra.mxu0 %v139
    %223 = vmatpush.msra.mxu0 %v136
    %224 = vmatpush.msra.mxu0 %v133
    %225 = vmatpush.msra.mxu0 %v130
    %226 = vmatpush.msra.mxu0 %v127
    %227 = vmatpush.msra.mxu0 %v124
    %228 = vmatpush.msra.mxu0 %v121
    %229 = vmatpush.msra.mxu0 %v118
    %230 = vmatpush.msra.mxu0 %v115
    %231 = vmatmul.f32.gmra.mxu0 %v110
    %v232 = vpop.f32.mrf.mxu0
    %v233 = vadd.f32 %v165, %v232
    %234 = vmatmul.f32.gmra.mxu0 %v111
    %v235 = vpop.f32.mrf.mxu0
    %v236 = vadd.f32 %v165, %v235
    %237 = vdwg.mxu0
    %vm238 = vcmask 523264
    %v240 = vsel %vm238, %v187, 0
    %v243 = vsel %vm238, %v210, 0
    %245 = vmatpush.xpose.msra.mxu0 0.0
    %246 = vmatpush.xpose.msra.mxu0 0.0
    %247 = vmatpush.xpose.msra.mxu0 0.0
    %248 = vmatpush.xpose.msra.mxu0 0.0
    %249 = vmatpush.xpose.msra.mxu0 0.0
    %250 = vmatpush.xpose.msra.mxu0 0.0
    %251 = vmatpush.xpose.msra.mxu0 0.0
    %252 = vmatpush.xpose.msra.mxu0 0.0
    %253 = vmatpush.xpose.msra.mxu0 0.0
    %254 = vmatpush.xpose.msra.mxu0 0.0
    %255 = vmatpush.xpose.msra.mxu0 0.0
    %256 = vmatpush.xpose.msra.mxu0 0.0
    %257 = vmatpush.xpose.msra.mxu0 0.0
    %258 = vmatpush.xpose.msra.mxu0 0.0
    %259 = vmatpush.xpose.msra.mxu0 0.0
    %260 = vmatpush.xpose.msra.mxu0 %v243
    %261 = vmatmul.f32.gmra.mxu0 %v240
    %v262 = vpop.f32.mrf.mxu0
    %v263 = vadd.f32 0.0, %v262
    %264 = vdwg.mxu0
    %v265 = vmul.f32 %v263, 0.125
    %v266 = vperm.slane %v112, 0
    %v267 = vadd.f32 %v265, %v266
    %vm268 = vcmask 64512
    %v269 = vsel %vm268, %v267, -inf
    %270 = vmax.xlane.f32.xlu0 %v269
    %v271 = vpop.xlane.xlu0 %270
    %v272 = vsub.f32 %v267, %v271
    %v273 = vmul.f32 %v272, 1.442695
    %v274 = vpow.pop %v273
    %v275 = vsel %vm268, %v274, 0.0
    %276 = vadd.xlane.f32.xlu0 %v275
    %v277 = vpop.xlane.xlu0 %276
    %v278 = vrcp.pop %v277
    %v279 = vmul.f32 %v274, %v278
    %v281 = vsel %vm268, %v279, 0
    %283 = vmatpush.msra.mxu0 0.0
    %284 = vmatpush.msra.mxu0 0.0
    %285 = vmatpush.msra.mxu0 0.0
    %286 = vmatpush.msra.mxu0 0.0
    %287 = vmatpush.msra.mxu0 0.0
    %288 = vmatpush.msra.mxu0 0.0
    %289 = vmatpush.msra.mxu0 0.0
    %290 = vmatpush.msra.mxu0 0.0
    %291 = vmatpush.msra.mxu0 0.0
    %292 = vmatpush.msra.mxu0 0.0
    %293 = vmatpush.msra.mxu0 0.0
    %294 = vmatpush.msra.mxu0 0.0
    %295 = vmatpush.msra.mxu0 0.0
    %296 = vmatpush.msra.mxu0 0.0
    %297 = vmatpush.msra.mxu0 0.0
    %298 = vmatpush.msra.mxu0 %v233
    %299 = vmatmul.f32.gmra.mxu0 %v281
    %v300 = vpop.f32.mrf.mxu0
    %v301 = vadd.f32 0.0, %v300
    %302 = vdwg.mxu0
    %303 = vst.msk [vmem:[#allocation2] sm:$0xff] %vm238, %v301
    %304 = vrot.lane.b32.xlu0 %v187, 64
    %v305 = vpop.permute.xlu0 %304
    %306 = vrot.lane.b32.xlu0 %v210, 64
    %v307 = vpop.permute.xlu0 %306
    %v308 = vsel %vm238, %v305, 0
    %v310 = vsel %vm238, %v307, 0
    %312 = vmatpush.xpose.msra.mxu0 0.0
    %313 = vmatpush.xpose.msra.mxu0 0.0
    %314 = vmatpush.xpose.msra.mxu0 0.0
    %315 = vmatpush.xpose.msra.mxu0 0.0
    %316 = vmatpush.xpose.msra.mxu0 0.0
    %317 = vmatpush.xpose.msra.mxu0 0.0
    %318 = vmatpush.xpose.msra.mxu0 0.0
    %319 = vmatpush.xpose.msra.mxu0 0.0
    %320 = vmatpush.xpose.msra.mxu0 0.0
    %321 = vmatpush.xpose.msra.mxu0 0.0
    %322 = vmatpush.xpose.msra.mxu0 0.0
    %323 = vmatpush.xpose.msra.mxu0 0.0
    %324 = vmatpush.xpose.msra.mxu0 0.0
    %325 = vmatpush.xpose.msra.mxu0 0.0
    %326 = vmatpush.xpose.msra.mxu0 0.0
    %327 = vmatpush.xpose.msra.mxu0 %v310
    %328 = vmatmul.f32.gmra.mxu0 %v308
    %v329 = vpop.f32.mrf.mxu0
    %v330 = vadd.f32 0.0, %v329
    %331 = vdwg.mxu0
    %v332 = vmul.f32 %v330, 0.125
    %v333 = vadd.f32 %v332, %v266
    %v334 = vsel %vm268, %v333, -inf
    %335 = vmax.xlane.f32.xlu0 %v334
    %v336 = vpop.xlane.xlu0 %335
    %v337 = vsub.f32 %v333, %v336
    %v338 = vmul.f32 %v337, 1.442695
    %v339 = vpow.pop %v338
    %v340 = vsel %vm268, %v339, 0.0
    %341 = vadd.xlane.f32.xlu0 %v340
    %v342 = vpop.xlane.xlu0 %341
    %v343 = vrcp.pop %v342
    %v344 = vmul.f32 %v339, %v343
    %346 = vrot.lane.b32.xlu0 %v233, 64
    %v347 = vpop.permute.xlu0 %346
    %v350 = vsel %vm268, %v344, 0
    %352 = vmatpush.msra.mxu0 0.0
    %353 = vmatpush.msra.mxu0 0.0
    %354 = vmatpush.msra.mxu0 0.0
    %355 = vmatpush.msra.mxu0 0.0
    %356 = vmatpush.msra.mxu0 0.0
    %357 = vmatpush.msra.mxu0 0.0
    %358 = vmatpush.msra.mxu0 0.0
    %359 = vmatpush.msra.mxu0 0.0
    %360 = vmatpush.msra.mxu0 0.0
    %361 = vmatpush.msra.mxu0 0.0
    %362 = vmatpush.msra.mxu0 0.0
    %363 = vmatpush.msra.mxu0 0.0
    %364 = vmatpush.msra.mxu0 0.0
    %365 = vmatpush.msra.mxu0 0.0
    %366 = vmatpush.msra.mxu0 0.0
    %367 = vmatpush.msra.mxu0 %v347
    %368 = vmatmul.f32.gmra.mxu0 %v350
    %v369 = vpop.f32.mrf.mxu0
    %v370 = vadd.f32 0.0, %v369
    %371 = vdwg.mxu0
    %373 = vrot.lane.b32.xlu0 %v370, 64
    %v374 = vpop.permute.xlu0 %373
    %vm376 = vcmask 1048064
    %377 = vst.msk [vmem:[#allocation2] sm:$0xff] %vm376, %v374
    %v379 = vsel %vm238, %v190, 0
    %v382 = vsel %vm238, %v213, 0
    %384 = vmatpush.xpose.msra.mxu0 0.0
    %385 = vmatpush.xpose.msra.mxu0 0.0
    %386 = vmatpush.xpose.msra.mxu0 0.0
    %387 = vmatpush.xpose.msra.mxu0 0.0
    %388 = vmatpush.xpose.msra.mxu0 0.0
    %389 = vmatpush.xpose.msra.mxu0 0.0
    %390 = vmatpush.xpose.msra.mxu0 0.0
    %391 = vmatpush.xpose.msra.mxu0 0.0
    %392 = vmatpush.xpose.msra.mxu0 0.0
    %393 = vmatpush.xpose.msra.mxu0 0.0
    %394 = vmatpush.xpose.msra.mxu0 0.0
    %395 = vmatpush.xpose.msra.mxu0 0.0
    %396 = vmatpush.xpose.msra.mxu0 0.0
    %397 = vmatpush.xpose.msra.mxu0 0.0
    %398 = vmatpush.xpose.msra.mxu0 0.0
    %399 = vmatpush.xpose.msra.mxu0 %v382
    %400 = vmatmul.f32.gmra.mxu0 %v379
    %v401 = vpop.f32.mrf.mxu0
    %v402 = vadd.f32 0.0, %v401
    %403 = vdwg.mxu0
    %v404 = vmul.f32 %v402, 0.125
    %v405 = vperm.slane %v112, 1
    %v406 = vadd.f32 %v404, %v405
    %v407 = vsel %vm268, %v406, -inf
    %408 = vmax.xlane.f32.xlu0 %v407
    %v409 = vpop.xlane.xlu0 %408
    %v410 = vsub.f32 %v406, %v409
    %v411 = vmul.f32 %v410, 1.442695
    %v412 = vpow.pop %v411
    %v413 = vsel %vm268, %v412, 0.0
    %414 = vadd.xlane.f32.xlu0 %v413
    %v415 = vpop.xlane.xlu0 %414
    %v416 = vrcp.pop %v415
    %v417 = vmul.f32 %v412, %v416
    %v419 = vsel %vm268, %v417, 0
    %421 = vmatpush.msra.mxu0 0.0
    %422 = vmatpush.msra.mxu0 0.0
    %423 = vmatpush.msra.mxu0 0.0
    %424 = vmatpush.msra.mxu0 0.0
    %425 = vmatpush.msra.mxu0 0.0
    %426 = vmatpush.msra.mxu0 0.0
    %427 = vmatpush.msra.mxu0 0.0
    %428 = vmatpush.msra.mxu0 0.0
    %429 = vmatpush.msra.mxu0 0.0
    %430 = vmatpush.msra.mxu0 0.0
    %431 = vmatpush.msra.mxu0 0.0
    %432 = vmatpush.msra.mxu0 0.0
    %433 = vmatpush.msra.mxu0 0.0
    %434 = vmatpush.msra.mxu0 0.0
    %435 = vmatpush.msra.mxu0 0.0
    %436 = vmatpush.msra.mxu0 %v236
    %437 = vmatmul.f32.gmra.mxu0 %v419
    %v438 = vpop.f32.mrf.mxu0
    %v439 = vadd.f32 0.0, %v438
    %440 = vdwg.mxu0
    %441 = vst.msk [vmem:[#allocation2 + $0x8] sm:$0xff] %vm238, %v439
    %442 = vrot.lane.b32.xlu0 %v190, 64
    %v443 = vpop.permute.xlu0 %442
    %444 = vrot.lane.b32.xlu0 %v213, 64
    %v445 = vpop.permute.xlu0 %444
    %v446 = vsel %vm238, %v443, 0
    %v448 = vsel %vm238, %v445, 0
    %450 = vmatpush.xpose.msra.mxu0 0.0
    %451 = vmatpush.xpose.msra.mxu0 0.0
    %452 = vmatpush.xpose.msra.mxu0 0.0
    %453 = vmatpush.xpose.msra.mxu0 0.0
    %454 = vmatpush.xpose.msra.mxu0 0.0
    %455 = vmatpush.xpose.msra.mxu0 0.0
    %456 = vmatpush.xpose.msra.mxu0 0.0
    %457 = vmatpush.xpose.msra.mxu0 0.0
    %458 = vmatpush.xpose.msra.mxu0 0.0
    %459 = vmatpush.xpose.msra.mxu0 0.0
    %460 = vmatpush.xpose.msra.mxu0 0.0
    %461 = vmatpush.xpose.msra.mxu0 0.0
    %462 = vmatpush.xpose.msra.mxu0 0.0
    %463 = vmatpush.xpose.msra.mxu0 0.0
    %464 = vmatpush.xpose.msra.mxu0 0.0
    %465 = vmatpush.xpose.msra.mxu0 %v448
    %466 = vmatmul.f32.gmra.mxu0 %v446
    %v467 = vpop.f32.mrf.mxu0
    %v468 = vadd.f32 0.0, %v467
    %469 = vdwg.mxu0
    %v470 = vmul.f32 %v468, 0.125
    %v471 = vadd.f32 %v470, %v405
    %v472 = vsel %vm268, %v471, -inf
    %473 = vmax.xlane.f32.xlu0 %v472
    %v474 = vpop.xlane.xlu0 %473
    %v475 = vsub.f32 %v471, %v474
    %v476 = vmul.f32 %v475, 1.442695
    %v477 = vpow.pop %v476
    %v478 = vsel %vm268, %v477, 0.0
    %479 = vadd.xlane.f32.xlu0 %v478
    %v480 = vpop.xlane.xlu0 %479
    %v481 = vrcp.pop %v480
    %v482 = vmul.f32 %v477, %v481
    %484 = vrot.lane.b32.xlu0 %v236, 64
    %v485 = vpop.permute.xlu0 %484
    %v488 = vsel %vm268, %v482, 0
    %490 = vmatpush.msra.mxu0 0.0
    %491 = vmatpush.msra.mxu0 0.0
    %492 = vmatpush.msra.mxu0 0.0
    %493 = vmatpush.msra.mxu0 0.0
    %494 = vmatpush.msra.mxu0 0.0
    %495 = vmatpush.msra.mxu0 0.0
    %496 = vmatpush.msra.mxu0 0.0
    %497 = vmatpush.msra.mxu0 0.0
    %498 = vmatpush.msra.mxu0 0.0
    %499 = vmatpush.msra.mxu0 0.0
    %500 = vmatpush.msra.mxu0 0.0
    %501 = vmatpush.msra.mxu0 0.0
    %502 = vmatpush.msra.mxu0 0.0
    %503 = vmatpush.msra.mxu0 0.0
    %504 = vmatpush.msra.mxu0 0.0
    %505 = vmatpush.msra.mxu0 %v485
    %506 = vmatmul.f32.gmra.mxu0 %v488
    %v507 = vpop.f32.mrf.mxu0
    %v508 = vadd.f32 0.0, %v507
    %509 = vdwg.mxu0
    %511 = vrot.lane.b32.xlu0 %v508, 64
    %v512 = vpop.permute.xlu0 %511
    %514 = vst.msk [vmem:[#allocation2 + $0x8] sm:$0xff] %vm376, %v512
    %v515 = vld [vmem:[#allocation2] sm:$0xff]
    %v516 = vld [vmem:[#allocation2 + $0x8] sm:$0xff]
    %v517 = vld [vmem:[#allocation5] sm:$0xff]
    %v518 = vld [vmem:[#allocation5 + $0x8] sm:$0xff]
    %v519 = vld [vmem:[#allocation5 + $0x10] sm:$0xff]
    %v520 = vld [vmem:[#allocation5 + $0x18] sm:$0xff]
    %v521 = vld [vmem:[#allocation5 + $0x20] sm:$0xff]
    %v522 = vld [vmem:[#allocation5 + $0x28] sm:$0xff]
    %v523 = vld [vmem:[#allocation5 + $0x30] sm:$0xff]
    %v524 = vld [vmem:[#allocation5 + $0x38] sm:$0xff]
    %v525 = vld [vmem:[#allocation5 + $0x40] sm:$0xff]
    %v526 = vld [vmem:[#allocation5 + $0x48] sm:$0xff]
    %v527 = vld [vmem:[#allocation5 + $0x50] sm:$0xff]
    %v528 = vld [vmem:[#allocation5 + $0x58] sm:$0xff]
    %v529 = vld [vmem:[#allocation5 + $0x60] sm:$0xff]
    %v530 = vld [vmem:[#allocation5 + $0x68] sm:$0xff]
    %v531 = vld [vmem:[#allocation5 + $0x70] sm:$0xff]
    %v532 = vld [vmem:[#allocation5 + $0x78] sm:$0xff]
    %v533 = vld [vmem:[%s5] sm:$0x1]
    %v535 = vperm.slane %v533, 0
    %537 = vmatpush.msra.mxu0 %v532
    %538 = vmatpush.msra.mxu0 %v531
    %539 = vmatpush.msra.mxu0 %v530
    %540 = vmatpush.msra.mxu0 %v529
    %541 = vmatpush.msra.mxu0 %v528
    %542 = vmatpush.msra.mxu0 %v527
    %543 = vmatpush.msra.mxu0 %v526
    %544 = vmatpush.msra.mxu0 %v525
    %545 = vmatpush.msra.mxu0 %v524
    %546 = vmatpush.msra.mxu0 %v523
    %547 = vmatpush.msra.mxu0 %v522
    %548 = vmatpush.msra.mxu0 %v521
    %549 = vmatpush.msra.mxu0 %v520
    %550 = vmatpush.msra.mxu0 %v519
    %551 = vmatpush.msra.mxu0 %v518
    %552 = vmatpush.msra.mxu0 %v517
    %553 = vmatmul.f32.gmra.mxu0 %v515
    %v554 = vpop.f32.mrf.mxu0
    %v555 = vadd.f32 %v535, %v554
    %556 = vmatmul.f32.gmra.mxu0 %v516
    %v557 = vpop.f32.mrf.mxu0
    %v558 = vadd.f32 %v535, %v557
    %559 = vdwg.mxu0
    %v560 = vadd.f32 %v110, %v555
    %v561 = vadd.f32 %v111, %v558
    %v562 = vld [vmem:[%s6] sm:$0x1]
    %v563 = vld [vmem:[%s7] sm:$0x1]
    %564 = vadd.xlane.f32.xlu0 %v560
    %v565 = vpop.xlane.xlu0 %564
    %566 = vadd.xlane.f32.xlu0 %v561
    %v567 = vpop.xlane.xlu0 %566
    %v568 = vrcp.pop 128.0
    %v569 = vmul.f32 128.0, %v568
    %v570 = vsub.f32 1.0, %v569
    %v571 = vmul.f32 %v568, %v570
    %v572 = vadd.f32 %v568, %v571
    %vm573 = vweird.f32 %v568
    %v574 = vsel %vm573, %v568, %v572
    %v575 = vmul.f32 %v565, %v574
    %v576 = vmul.f32 %v567, %v574
    %v577 = vsub.f32 %v560, %v575
    %v578 = vsub.f32 %v561, %v576
    %v579 = vmul.f32 %v577, %v577
    %v580 = vmul.f32 %v578, %v578
    %581 = vadd.xlane.f32.xlu0 %v579
    %v582 = vpop.xlane.xlu0 %581
    %583 = vadd.xlane.f32.xlu0 %v580
    %v584 = vpop.xlane.xlu0 %583
    %v585 = vmul.f32 %v582, %v574
    %v586 = vmul.f32 %v584, %v574
    %v587 = vadd.f32 %v585, 1e-12
    %v588 = vadd.f32 %v586, 1e-12
    %v589 = vrsqrt.pop %v587
    %v590 = vmul.f32 %v589, %v587
    %v591 = vmul.f32 %v590, %v589
    %v592 = vmul.f32 0.5, %v591
    %v593 = vsub.f32 1.5, %v592
    %v594 = vmul.f32 %v589, %v593
    %vm595 = vweird.f32 %v587
    %vm596 = vweird.f32 %v589
    %vm597 = vmor %vm595, %vm596
    %v598 = vsel %vm597, %v589, %v594
    %v599 = vrsqrt.pop %v588
    %v600 = vmul.f32 %v599, %v588
    %v601 = vmul.f32 %v600, %v599
    %v602 = vmul.f32 0.5, %v601
    %v603 = vsub.f32 1.5, %v602
    %v604 = vmul.f32 %v599, %v603
    %vm605 = vweird.f32 %v588
    %vm606 = vweird.f32 %v599
    %vm607 = vmor %vm605, %vm606
    %v608 = vsel %vm607, %v599, %v604
    %v609 = vmul.f32 %v577, %v598
    %v610 = vmul.f32 %v578, %v608
    %v612 = vperm.slane %v562, 0
    %v614 = vmul.f32 %v609, %v612
    %v615 = vmul.f32 %v610, %v612
    %v617 = vperm.slane %v563, 0
    %v619 = vadd.f32 %v614, %v617
    %v620 = vadd.f32 %v615, %v617
    %v621 = vld [vmem:[#allocation7] sm:$0xff]
    %v622 = vld [vmem:[#allocation7 + $0x8] sm:$0xff]
    %v623 = vld [vmem:[#allocation7 + $0x10] sm:$0xff]
    %v624 = vld [vmem:[#allocation7 + $0x18] sm:$0xff]
    %v625 = vld [vmem:[#allocation7 + $0x20] sm:$0xff]
    %v626 = vld [vmem:[#allocation7 + $0x28] sm:$0xff]
    %v627 = vld [vmem:[#allocation7 + $0x30] sm:$0xff]
    %v628 = vld [vmem:[#allocation7 + $0x38] sm:$0xff]
    %v629 = vld [vmem:[#allocation7 + $0x40] sm:$0xff]
    %v630 = vld [vmem:[#allocation7 + $0x48] sm:$0xff]
    %v631 = vld [vmem:[#allocation7 + $0x50] sm:$0xff]
    %v632 = vld [vmem:[#allocation7 + $0x58] sm:$0xff]
    %v633 = vld [vmem:[#allocation7 + $0x60] sm:$0xff]
    %v634 = vld [vmem:[#allocation7 + $0x68] sm:$0xff]
    %v635 = vld [vmem:[#allocation7 + $0x70] sm:$0xff]
    %v636 = vld [vmem:[#allocation7 + $0x78] sm:$0xff]
    %v637 = vld [vmem:[#allocation7 + $0x80] sm:$0xff]
    %v638 = vld [vmem:[#allocation7 + $0x88] sm:$0xff]
    %v639 = vld [vmem:[#allocation7 + $0x90] sm:$0xff]
    %v640 = vld [vmem:[#allocation7 + $0x98] sm:$0xff]
    %v641 = vld [vmem:[#allocation7 + $0xa0] sm:$0xff]
    %v642 = vld [vmem:[#allocation7 + $0xa8] sm:$0xff]
    %v643 = vld [vmem:[#allocation7 + $0xb0] sm:$0xff]
    %v644 = vld [vmem:[#allocation7 + $0xb8] sm:$0xff]
    %v645 = vld [vmem:[#allocation7 + $0xc0] sm:$0xff]
    %v646 = vld [vmem:[#allocation7 + $0xc8] sm:$0xff]
    %v647 = vld [vmem:[#allocation7 + $0xd0] sm:$0xff]
    %v648 = vld [vmem:[#allocation7 + $0xd8] sm:$0xff]
    %v649 = vld [vmem:[#allocation7 + $0xe0] sm:$0xff]
    %v650 = vld [vmem:[#allocation7 + $0xe8] sm:$0xff]
    %v651 = vld [vmem:[#allocation7 + $0xf0] sm:$0xff]
    %v652 = vld [vmem:[#allocation7 + $0xf8] sm:$0xff]
    %v653 = vld [vmem:[%s9] sm:$0x3]
    %v655 = vperm.slane %v653, 0
    %v656 = vperm.slane %v653, 1
    %659 = vmatpush.msra.mxu0 %v651
    %660 = vmatpush.msra.mxu0 %v649
    %661 = vmatpush.msra.mxu0 %v647
    %662 = vmatpush.msra.mxu0 %v645
    %663 = vmatpush.msra.mxu0 %v643
    %664 = vmatpush.msra.mxu0 %v641
    %665 = vmatpush.msra.mxu0 %v639
    %666 = vmatpush.msra.mxu0 %v637
    %667 = vmatpush.msra.mxu0 %v635
    %668 = vmatpush.msra.mxu0 %v633
    %669 = vmatpush.msra.mxu0 %v631
    %670 = vmatpush.msra.mxu0 %v629
    %671 = vmatpush.msra.mxu0 %v627
    %672 = vmatpush.msra.mxu0 %v625
    %673 = vmatpush.msra.mxu0 %v623
    %674 = vmatpush.msra.mxu0 %v621
    %675 = vmatmul.f32.gmra.mxu0 %v619
    %v676 = vpop.f32.mrf.mxu0
    %v677 = vadd.f32 %v655, %v676
    %678 = vmatmul.f32.gmra.mxu0 %v620
    %v679 = vpop.f32.mrf.mxu0
    %v680 = vadd.f32 %v655, %v679
    %681 = vdwg.mxu0
    %682 = vmatpush.msra.mxu0 %v652
    %683 = vmatpush.msra.mxu0 %v650
    %684 = vmatpush.msra.mxu0 %v648
    %685 = vmatpush.msra.mxu0 %v646
    %686 = vmatpush.msra.mxu0 %v644
    %687 = vmatpush.msra.mxu0 %v642
    %688 = vmatpush.msra.mxu0 %v640
    %689 = vmatpush.msra.mxu0 %v638
    %690 = vmatpush.msra.mxu0 %v636
    %691 = vmatpush.msra.mxu0 %v634
    %692 = vmatpush.msra.mxu0 %v632
    %693 = vmatpush.msra.mxu0 %v630
    %694 = vmatpush.msra.mxu0 %v628
    %695 = vmatpush.msra.mxu0 %v626
    %696 = vmatpush.msra.mxu0 %v624
    %697 = vmatpush.msra.mxu0 %v622
    %698 = vmatmul.f32.gmra.mxu0 %v619
    %v699 = vpop.f32.mrf.mxu0
    %v700 = vadd.f32 %v656, %v699
    %701 = vmatmul.f32.gmra.mxu0 %v620
    %v702 = vpop.f32.mrf.mxu0
    %v703 = vadd.f32 %v656, %v702
    %704 = vdwg.mxu0
    %v705 = vmul.f32 %v677, 0.5
    %v706 = vmul.f32 %v700, 0.5
    %v707 = vmul.f32 %v680, 0.5
    %v708 = vmul.f32 %v703, 0.5
    %v709 = vmul.f32 %v677, 0.044715
    %v710 = vmul.f32 %v700, 0.044715
    %v711 = vmul.f32 %v680, 0.044715
    %v712 = vmul.f32 %v703, 0.044715
    %v713 = vmul.f32 %v709, %v677
    %v714 = vmul.f32 %v710, %v700
    %v715 = vmul.f32 %v711, %v680
    %v716 = vmul.f32 %v712, %v703
    %v717 = vmul.f32 %v713, %v677
    %v718 = vmul.f32 %v714, %v700
    %v719 = vmul.f32 %v715, %v680
    %v720 = vmul.f32 %v716, %v703
    %v721 = vadd.f32 %v677, %v717
    %v722 = vadd.f32 %v700, %v718
    %v723 = vadd.f32 %v680, %v719
    %v724 = vadd.f32 %v703, %v720
    %v725 = vmul.f32 %v721, 0.7978846
    %v726 = vmul.f32 %v722, 0.7978846
    %v727 = vmul.f32 %v723, 0.7978846
    %v728 = vmul.f32 %v724, 0.7978846
    %v729 = vtanh.pop %v725
    %v730 = vtanh.pop %v726
    %v731 = vtanh.pop %v727
    %v732 = vtanh.pop %v728
    %v733 = vadd.f32 %v729, 1.0
    %v734 = vadd.f32 %v730, 1.0
    %v735 = vadd.f32 %v731, 1.0
    %v736 = vadd.f32 %v732, 1.0
    %v737 = vmul.f32 %v705, %v733
    %v738 = vmul.f32 %v706, %v734
    %v739 = vmul.f32 %v707, %v735
    %v740 = vmul.f32 %v708, %v736
    %v741 = vld [vmem:[#allocation8] sm:$0xff]
    %v742 = vld [vmem:[#allocation8 + $0x8] sm:$0xff]
    %v743 = vld [vmem:[#allocation8 + $0x10] sm:$0xff]
    %v744 = vld [vmem:[#allocation8 + $0x18] sm:$0xff]
    %v745 = vld [vmem:[#allocation8 + $0x20] sm:$0xff]
    %v746 = vld [vmem:[#allocation8 + $0x28] sm:$0xff]
    %v747 = vld [vmem:[#allocation8 + $0x30] sm:$0xff]
    %v748 = vld [vmem:[#allocation8 + $0x38] sm:$0xff]
    %v749 = vld [vmem:[#allocation8 + $0x40] sm:$0xff]
    %v750 = vld [vmem:[#allocation8 + $0x48] sm:$0xff]
    %v751 = vld [vmem:[#allocation8 + $0x50] sm:$0xff]
    %v752 = vld [vmem:[#allocation8 + $0x58] sm:$0xff]
    %v753 = vld [vmem:[#allocation8 + $0x60] sm:$0xff]
    %v754 = vld [vmem:[#allocation8 + $0x68] sm:$0xff]
    %v755 = vld [vmem:[#allocation8 + $0x70] sm:$0xff]
    %v756 = vld [vmem:[#allocation8 + $0x78] sm:$0xff]
    %v757 = vld [vmem:[#allocation8 + $0x80] sm:$0xff]
    %v758 = vld [vmem:[#allocation8 + $0x88] sm:$0xff]
    %v759 = vld [vmem:[#allocation8 + $0x90] sm:$0xff]
    %v760 = vld [vmem:[#allocation8 + $0x98] sm:$0xff]
    %v761 = vld [vmem:[#allocation8 + $0xa0] sm:$0xff]
    %v762 = vld [vmem:[#allocation8 + $0xa8] sm:$0xff]
    %v763 = vld [vmem:[#allocation8 + $0xb0] sm:$0xff]
    %v764 = vld [vmem:[#allocation8 + $0xb8] sm:$0xff]
    %v765 = vld [vmem:[#allocation8 + $0xc0] sm:$0xff]
    %v766 = vld [vmem:[#allocation8 + $0xc8] sm:$0xff]
    %v767 = vld [vmem:[#allocation8 + $0xd0] sm:$0xff]
    %v768 = vld [vmem:[#allocation8 + $0xd8] sm:$0xff]
    %v769 = vld [vmem:[#allocation8 + $0xe0] sm:$0xff]
    %v770 = vld [vmem:[#allocation8 + $0xe8] sm:$0xff]
    %v771 = vld [vmem:[#allocation8 + $0xf0] sm:$0xff]
    %v772 = vld [vmem:[#allocation8 + $0xf8] sm:$0xff]
    %v773 = vld [vmem:[%s11] sm:$0x1]
    %v775 = vperm.slane %v773, 0
    %777 = vmatpush.msra.mxu0 %v756
    %778 = vmatpush.msra.mxu0 %v755
    %779 = vmatpush.msra.mxu0 %v754
    %780 = vmatpush.msra.mxu0 %v753
    %781 = vmatpush.msra.mxu0 %v752
    %782 = vmatpush.msra.mxu0 %v751
    %783 = vmatpush.msra.mxu0 %v750
    %784 = vmatpush.msra.mxu0 %v749
    %785 = vmatpush.msra.mxu0 %v748
    %786 = vmatpush.msra.mxu0 %v747
    %787 = vmatpush.msra.mxu0 %v746
    %788 = vmatpush.msra.mxu0 %v745
    %789 = vmatpush.msra.mxu0 %v744
    %790 = vmatpush.msra.mxu0 %v743
    %791 = vmatpush.msra.mxu0 %v742
    %792 = vmatpush.msra.mxu0 %v741
    %793 = vmatmul.f32.gmra.mxu0 %v737
    %v794 = vpop.f32.mrf.mxu0
    %v795 = vadd.f32 %v775, %v794
    %796 = vmatmul.f32.gmra.mxu0 %v739
    %v797 = vpop.f32.mrf.mxu0
    %v798 = vadd.f32 %v775, %v797
    %799 = vdwg.mxu0
    %800 = vmatpush.msra.mxu0 %v772
    %801 = vmatpush.msra.mxu0 %v771
    %802 = vmatpush.msra.mxu0 %v770
    %803 = vmatpush.msra.mxu0 %v769
    %804 = vmatpush.msra.mxu0 %v768
    %805 = vmatpush.msra.mxu0 %v767
    %806 = vmatpush.msra.mxu0 %v766
    %807 = vmatpush.msra.mxu0 %v765
    %808 = vmatpush.msra.mxu0 %v764
    %809 = vmatpush.msra.mxu0 %v763
    %810 = vmatpush.msra.mxu0 %v762
    %811 = vmatpush.msra.mxu0 %v761
    %812 = vmatpush.msra.mxu0 %v760
    %813 = vmatpush.msra.mxu0 %v759
    %814 = vmatpush.msra.mxu0 %v758
    %815 = vmatpush.msra.mxu0 %v757
    %816 = vmatmul.f32.gmra.mxu0 %v738
    %v817 = vpop.f32.mrf.mxu0
    %v818 = vadd.f32 %v795, %v817
    %819 = vmatmul.f32.gmra.mxu0 %v740
    %v820 = vpop.f32.mrf.mxu0
    %v821 = vadd.f32 %v798, %v820
    %822 = vdwg.mxu0
    %v823 = vadd.f32 %v619, %v818
    %v824 = vadd.f32 %v620, %v821
    %v825 = vld [vmem:[%s12] sm:$0x1]
    %v826 = vld [vmem:[%s13] sm:$0x1]
    %827 = vadd.xlane.f32.xlu0 %v823
    %v828 = vpop.xlane.xlu0 %827
    %829 = vadd.xlane.f32.xlu0 %v824
    %v830 = vpop.xlane.xlu0 %829
    %v831 = vmul.f32 %v828, %v574
    %v832 = vmul.f32 %v830, %v574
    %v833 = vsub.f32 %v823, %v831
    %v834 = vsub.f32 %v824, %v832
    %v835 = vmul.f32 %v833, %v833
    %v836 = vmul.f32 %v834, %v834
    %837 = vadd.xlane.f32.xlu0 %v835
    %v838 = vpop.xlane.xlu0 %837
    %839 = vadd.xlane.f32.xlu0 %v836
    %v840 = vpop.xlane.xlu0 %839
    %v841 = vmul.f32 %v838, %v574
    %v842 = vmul.f32 %v840, %v574
    %v843 = vadd.f32 %v841, 1e-12
    %v844 = vadd.f32 %v842, 1e-12
    %v845 = vrsqrt.pop %v843
    %v846 = vmul.f32 %v845, %v843
    %v847 = vmul.f32 %v846, %v845
    %v848 = vmul.f32 0.5, %v847
    %v849 = vsub.f32 1.5, %v848
    %v850 = vmul.f32 %v845, %v849
    %vm851 = vweird.f32 %v843
    %vm852 = vweird.f32 %v845
    %vm853 = vmor %vm851, %vm852
    %v854 = vsel %vm853, %v845, %v850
    %v855 = vrsqrt.pop %v844
    %v856 = vmul.f32 %v855, %v844
    %v857 = vmul.f32 %v856, %v855
    %v858 = vmul.f32 0.5, %v857
    %v859 = vsub.f32 1.5, %v858
    %v860 = vmul.f32 %v855, %v859
    %vm861 = vweird.f32 %v844
    %vm862 = vweird.f32 %v855
    %vm863 = vmor %vm861, %vm862
    %v864 = vsel %vm863, %v855, %v860
    %v865 = vmul.f32 %v833, %v854
    %v866 = vmul.f32 %v834, %v864
    %v868 = vperm.slane %v825, 0
    %v870 = vmul.f32 %v865, %v868
    %v871 = vmul.f32 %v866, %v868
    %v873 = vperm.slane %v826, 0
    %v875 = vadd.f32 %v870, %v873
    %v876 = vadd.f32 %v871, %v873
    %877 = vst [vmem:[%s14] sm:$0xff] %v875
    %878 = vst [vmem:[%s14 + $0x8] sm:$0xff] %v876
    // Predicated region
    $region74: #{bert_encoder_forward.6} parent=1 // pred_check
      _
    $region75: #{bert_encoder_forward.6} parent=1 // pred_check_branch
      %880 = sbr.rel (0) target = $region77
    $region76: #{bert_encoder_forward.6} parent=1 // pred_region
      _
    $region77: #{bert_encoder_forward.6} parent=1 // pred_fallthru
      _
    // Predicated region
    $region78: #{bert_encoder_forward.6} parent=1 // pred_check
      _
    $region79: #{bert_encoder_forward.6} parent=1 // pred_check_branch
      %882 = sbr.rel (0) target = $region81
    $region80: #{bert_encoder_forward.6} parent=1 // pred_region
      _
    $region81: #{bert_encoder_forward.6} parent=1 // pred_fallthru
      _
    %883 = vsyncpa [#allocation4], 1
    %884 = vsyncpa [#allocation6], 1
    %885 = vsyncpa [#allocation9], 1

</llo_original>
